<compile_context>
chip_gen: v6e
topology: v6e:2x2x1
jax: 0.10.0
libtpu: 0.0.40
codegen_flags: <defaults>
</compile_context>

<pallas_src>
import jax
import jax.numpy as jnp
from jax.experimental import pallas as pl
from jax.experimental.pallas import tpu as pltpu

# ----------------------------- model dimensions -----------------------------
HIDDEN = 32
NHEAD = 4
HEAD_DIM = HIDDEN // NHEAD
DIM_FF = 2048            # PyTorch TransformerEncoderLayer default dim_feedforward
NUM_LAYERS = 2
LN_EPS = 1e-5
META_DIM = 8
SENSOR_DIM = 16
OUTPUT_DIM = 4
MAX_POS = 25000          # positional_encoding parameter length (as in __init__)

ROW_BLOCK = 256          # q / row tile (multiple of 8), per review suggestion
VMEM_LIMIT = 32 * 1024 * 1024


def _round_up(n, m):
    return ((n + m - 1) // m) * m


# ------------------------------ in-kernel helpers ----------------------------
def _layer_norm(y, g, b):
    mu = jnp.mean(y, axis=-1, keepdims=True)
    var = jnp.mean(jnp.square(y - mu), axis=-1, keepdims=True)
    return (y - mu) * jax.lax.rsqrt(var + LN_EPS) * g + b


# ----------------------- kernel 1: sensor proj + pos-enc ---------------------
def _embed_kernel(sensor_ref, pos_ref, sw_ref, sb_ref, o_ref):
    # sensor_ref: (1, TQ, SENSOR_DIM) f32; pos_ref: (1, TQ, HIDDEN) f32
    x = jnp.dot(sensor_ref[0].astype(jnp.bfloat16), sw_ref[...],
                preferred_element_type=jnp.float32)
    o_ref[0] = x + sb_ref[...] + pos_ref[0]


def _embed_call(sensor, pos, sw, sb, tq):
    B, S, _ = sensor.shape
    nq = pl.cdiv(S, tq)
    const2 = lambda b, q: (0, 0)
    return pl.pallas_call(
        _embed_kernel,
        grid=(B, nq),
        in_specs=[
            pl.BlockSpec((1, tq, SENSOR_DIM), lambda b, q: (b, q, 0)),
            # pos table: only the needed row blocks are DMA'd (no wrapper slice)
            pl.BlockSpec((1, tq, HIDDEN), lambda b, q: (0, q, 0)),
            pl.BlockSpec(sw.shape, const2),
            pl.BlockSpec(sb.shape, const2),
        ],
        out_specs=pl.BlockSpec((1, tq, HIDDEN), lambda b, q: (b, q, 0)),
        out_shape=jax.ShapeDtypeStruct((B, S, HIDDEN), jnp.float32),
        compiler_params=pltpu.CompilerParams(
            dimension_semantics=("parallel", "parallel"),
            vmem_limit_bytes=VMEM_LIMIT),
    )(sensor, pos, sw, sb)


# --------------------- kernel 2: one transformer encoder layer ---------------
def _encoder_layer_kernel(xq_ref, xf_ref,
                          wq, bq, wk, bk, wv, bv, wo, bo,
                          w1, b1, w2t, b2, g1, be1, g2, be2,
                          o_ref):
    TQ = xq_ref.shape[1]
    S = xf_ref.shape[1]
    x_q = xq_ref[0]                               # (TQ, H) f32  (residual path)
    xq_b = x_q.astype(jnp.bfloat16)
    xf_b = xf_ref[0].astype(jnp.bfloat16)         # (S, H)  bf16 (K/V source)

    # Q for this block, K/V for the whole sequence (single matmuls each).
    q = jnp.dot(xq_b, wq[...], preferred_element_type=jnp.float32) + bq[...]
    k = jnp.dot(xf_b, wk[...], preferred_element_type=jnp.float32) + bk[...]
    v = jnp.dot(xf_b, wv[...], preferred_element_type=jnp.float32) + bv[...]

    qb = q.astype(jnp.bfloat16)
    kb = k.astype(jnp.bfloat16)
    vb = v.astype(jnp.bfloat16)
    # Head split -> (NHEAD, rows, HEAD_DIM); static slices + one stack each.
    q3 = jnp.stack([qb[:, h * HEAD_DIM:(h + 1) * HEAD_DIM] for h in range(NHEAD)], axis=0)
    k3 = jnp.stack([kb[:, h * HEAD_DIM:(h + 1) * HEAD_DIM] for h in range(NHEAD)], axis=0)
    v3 = jnp.stack([vb[:, h * HEAD_DIM:(h + 1) * HEAD_DIM] for h in range(NHEAD)], axis=0)

    # One batched contraction for all heads (review item 1).
    scale = 1.0 / float(HEAD_DIM) ** 0.5
    s = jnp.einsum('hqd,hkd->hqk', q3, k3,
                   preferred_element_type=jnp.float32) * scale   # (NHEAD, TQ, S)

    # causal mask, applied once per (layer, q-block), with global q positions
    q_start = pl.program_id(1) * TQ
    q_pos = q_start + jax.lax.broadcasted_iota(jnp.int32, s.shape, 1)
    k_pos = jax.lax.broadcasted_iota(jnp.int32, s.shape, 2)
    s = jnp.where(k_pos > q_pos, -1e30, s)

    s = s - jnp.max(s, axis=-1, keepdims=True)
    p = jnp.exp(s)
    p = p * pl.reciprocal(jnp.sum(p, axis=-1, keepdims=True), approx=True)

    # TODO(synk): for very long S (>> 4k) the (NHEAD, TQ, S) score tile should
    # be flash-blocked over K to bound VMEM; full K/V per q-block is used here.
    o3 = jnp.einsum('hqk,hkd->hqd', p.astype(jnp.bfloat16), v3,
                    preferred_element_type=jnp.float32)           # (NHEAD, TQ, HEAD_DIM)
    attn = jnp.concatenate([o3[h] for h in range(NHEAD)], axis=-1)  # (TQ, H)
    attn = jnp.dot(attn.astype(jnp.bfloat16), wo[...],
                   preferred_element_type=jnp.float32) + bo[...]

    y = _layer_norm(x_q + attn, g1[...], be1[...])                # post-norm 1 (dropout = id)

    # FFN: (TQ, H) @ (H, 2048) -> ReLU -> trans_b contraction over 2048 (lane-dense w2t)
    ff = jnp.dot(y.astype(jnp.bfloat16), w1[...],
                 preferred_element_type=jnp.float32) + b1[...]    # (TQ, DIM_FF)
    ff = jnp.maximum(ff, 0.0)
    ff = jax.lax.dot_general(ff.astype(jnp.bfloat16), w2t[...],
                             (((1,), (1,)), ((), ())),
                             preferred_element_type=jnp.float32) + b2[...]
    o_ref[0] = _layer_norm(y + ff, g2[...], be2[...])             # post-norm 2


_LAYER_WEIGHT_NAMES = ("wq", "bq", "wk", "bk", "wv", "bv", "wo", "bo",
                       "w1", "b1", "w2t", "b2",
                       "ln1_g", "ln1_b", "ln2_g", "ln2_b")


def _encoder_layer_call(x, lp, tq):
    B, S, H = x.shape
    nq = pl.cdiv(S, tq)
    weights = [lp[n] for n in _LAYER_WEIGHT_NAMES]
    const2 = lambda b, q: (0, 0)   # weights: constant index_map -> DMA'd once per batch row
    in_specs = ([pl.BlockSpec((1, tq, H), lambda b, q: (b, q, 0)),   # q rows of this block
                 pl.BlockSpec((1, S, H), lambda b, q: (b, 0, 0))]    # full sequence for K/V
                + [pl.BlockSpec(w.shape, const2) for w in weights])
    return pl.pallas_call(
        _encoder_layer_kernel,
        grid=(B, nq),
        in_specs=in_specs,
        out_specs=pl.BlockSpec((1, tq, H), lambda b, q: (b, q, 0)),
        out_shape=jax.ShapeDtypeStruct((B, S, H), jnp.float32),
        compiler_params=pltpu.CompilerParams(
            dimension_semantics=("parallel", "parallel"),   # megacore split on v7x
            vmem_limit_bytes=VMEM_LIMIT),
    )(x, x, *weights)


# -------------- kernel 3: metadata branch + sequence mean + fusion head ------
def _head_kernel(meta_ref, x_ref, mw1, mb1, mw2, mb2, fw1, fb1, fw2, fb2, o_ref):
    # metadata branch: mean(dim=1) -> Linear -> ReLU -> Linear  (vectorized)
    meta_avg = jnp.mean(meta_ref[...], axis=1)                                   # (B, Dm)
    mh = jnp.dot(meta_avg, mw1[...], preferred_element_type=jnp.float32) + mb1[...]
    mh = jnp.maximum(mh, 0.0)
    meta_feat = jnp.dot(mh, mw2[...], preferred_element_type=jnp.float32) + mb2[...]

    enc_mean = jnp.mean(x_ref[...], axis=1)                                      # (B, H)

    # fusion: cat([meta, enc]) @ W1 done as two matmuls (no lane concat needed)
    w1 = fw1[...]
    fh = (jnp.dot(meta_feat, w1[:HIDDEN, :], preferred_element_type=jnp.float32)
          + jnp.dot(enc_mean, w1[HIDDEN:, :], preferred_element_type=jnp.float32)
          + fb1[...])
    fh = jnp.where(fh >= 0.0, fh, 0.01 * fh)                                     # LeakyReLU(0.01)
    logits = jnp.dot(fh, fw2[...], preferred_element_type=jnp.float32) + fb2[...]
    o_ref[...] = 1.0 / (1.0 + jnp.exp(-logits))                                  # Sigmoid


def _head_call(metadata, x, params):
    B = metadata.shape[0]
    names = ("meta_w1", "meta_b1", "meta_w2", "meta_b2",
             "fuse_w1", "fuse_b1", "fuse_w2", "fuse_b2")
    inputs = [metadata, x] + [params[n] for n in names]
    in_specs = [pl.BlockSpec(a.shape, lambda i, _z=(0,) * a.ndim: _z) for a in inputs]
    return pl.pallas_call(
        _head_kernel,
        grid=(1,),
        in_specs=in_specs,
        out_specs=pl.BlockSpec((B, OUTPUT_DIM), lambda i: (0, 0)),
        out_shape=jax.ShapeDtypeStruct((B, OUTPUT_DIM), jnp.float32),
        compiler_params=pltpu.CompilerParams(
            dimension_semantics=("arbitrary",),
            vmem_limit_bytes=VMEM_LIMIT),
    )(*inputs)


# ------------------------------ parameter init -------------------------------
def init_params(key):
    def nrm(k, shape, dtype=jnp.float32, scale=0.02):
        return (scale * jax.random.normal(k, shape)).astype(dtype)

    keys = iter(jax.random.split(key, 40))
    bf16 = jnp.bfloat16
    p = {
        # sensor_linear (matmul weight in bf16, bias f32)
        "sensor_w": nrm(next(keys), (SENSOR_DIM, HIDDEN), bf16),
        "sensor_b": nrm(next(keys), (1, HIDDEN)),
        # positional_encoding parameter (1, 25000, H)
        "pos_enc": jax.random.normal(next(keys), (1, MAX_POS, HIDDEN), jnp.float32),
        # metadata_branch
        "meta_w1": nrm(next(keys), (META_DIM, HIDDEN)),
        "meta_b1": nrm(next(keys), (1, HIDDEN)),
        "meta_w2": nrm(next(keys), (HIDDEN, HIDDEN)),
        "meta_b2": nrm(next(keys), (1, HIDDEN)),
        # fusion head
        "fuse_w1": nrm(next(keys), (2 * HIDDEN, HIDDEN)),
        "fuse_b1": nrm(next(keys), (1, HIDDEN)),
        "fuse_w2": nrm(next(keys), (HIDDEN, OUTPUT_DIM)),
        "fuse_b2": nrm(next(keys), (1, OUTPUT_DIM)),
    }
    layers = []
    for _ in range(NUM_LAYERS):
        layers.append({
            # q/k/v stored split (PyTorch packs them as in_proj rows [q;k;v]);
            # all matmul weights are (in, out) layout and bf16.
            "wq": nrm(next(keys), (HIDDEN, HIDDEN), bf16),
            "bq": nrm(next(keys), (1, HIDDEN)),
            "wk": nrm(next(keys), (HIDDEN, HIDDEN), bf16),
            "bk": nrm(next(keys), (1, HIDDEN)),
            "wv": nrm(next(keys), (HIDDEN, HIDDEN), bf16),
            "bv": nrm(next(keys), (1, HIDDEN)),
            "wo": nrm(next(keys), (HIDDEN, HIDDEN), bf16),
            "bo": nrm(next(keys), (1, HIDDEN)),
            "w1": nrm(next(keys), (HIDDEN, DIM_FF), bf16),
            "b1": nrm(next(keys), (1, DIM_FF)),
            # linear2 stored transposed = lane-dense (HIDDEN, DIM_FF); consumed
            # via a trans_b dot_general in the kernel (review item 3).
            "w2t": nrm(next(keys), (HIDDEN, DIM_FF), bf16),
            "b2": nrm(next(keys), (1, HIDDEN)),
            "ln1_g": jnp.ones((1, HIDDEN), jnp.float32),
            "ln1_b": jnp.zeros((1, HIDDEN), jnp.float32),
            "ln2_g": jnp.ones((1, HIDDEN), jnp.float32),
            "ln2_b": jnp.zeros((1, HIDDEN), jnp.float32),
        })
    p["layers"] = layers
    return p


# -------------------------------- forward pass --------------------------------
def forward(params, metadata, sensor_data):
    _, S, _ = sensor_data.shape
    if S > MAX_POS:
        raise ValueError(f"sequence length {S} exceeds positional encoding size {MAX_POS}")
    tq = min(ROW_BLOCK, _round_up(S, 8))     # row tile, multiple of 8

    x = _embed_call(sensor_data, params["pos_enc"],
                    params["sensor_w"], params["sensor_b"], tq)
    for lp in params["layers"]:
        x = _encoder_layer_call(x, lp, tq)
    return _head_call(metadata, x, params)


# ------------------------------------ main ------------------------------------
if __name__ == "__main__":
    key = jax.random.PRNGKey(0)
    kp, km, ks = jax.random.split(key, 3)
    params = init_params(kp)

    B, T_META, S = 2, 5, 8
    metadata = jax.random.normal(km, (B, T_META, META_DIM), jnp.float32)
    sensor = jax.random.normal(ks, (B, S, SENSOR_DIM), jnp.float32)

    out = jax.jit(forward)(params, metadata, sensor)
    out = jax.block_until_ready(out)
    assert out.shape == (B, OUTPUT_DIM)
    assert bool(jnp.all(jnp.isfinite(out)))
    assert bool(jnp.all((out >= 0.0) & (out <= 1.0)))   # sigmoid output range
    print("KERNEL_OK")
</pallas_src>

<mosaic_0001>
module attributes {stable_mosaic.version = 11 : i64} {
  func.func @_embed_kernel(%arg0: i32, %arg1: i32, %arg2: memref<1x8x16xf32, #tpu.memory_space<vmem>>, %arg3: memref<1x8x32xf32, #tpu.memory_space<vmem>>, %arg4: memref<16x32xbf16, #tpu.memory_space<vmem>>, %arg5: memref<1x32xf32, #tpu.memory_space<vmem>>, %arg6: memref<1x8x32xf32, #tpu.memory_space<vmem>>) attributes {dimension_semantics = [#tpu.dimension_semantics<parallel>, #tpu.dimension_semantics<parallel>], iteration_bounds = array<i64: 2, 1>, scalar_prefetch = 0 : i64, scratch_operands = 0 : i64, tpu.core_type = #tpu.core_type<tc>, window_params = [{transform_indices = @transform_0, window_bounds = array<i64: 1, 8, 16>}, {transform_indices = @transform_1, window_bounds = array<i64: 1, 8, 32>}, {pipeline_mode = #tpu.pipeline_mode<synchronous>, transform_indices = @transform_2, window_bounds = array<i64: 16, 32>}, {pipeline_mode = #tpu.pipeline_mode<synchronous>, transform_indices = @transform_3, window_bounds = array<i64: 1, 32>}, {transform_indices = @transform_4, window_bounds = array<i64: 1, 8, 32>}]} {
    %c0 = arith.constant 0 : index
    %c0_0 = arith.constant 0 : index
    %c0_1 = arith.constant 0 : index
    %0 = vector.load %arg2[%c0, %c0_0, %c0_1] : memref<1x8x16xf32, #tpu.memory_space<vmem>>, vector<1x8x16xf32>
    %1 = vector.shape_cast %0 : vector<1x8x16xf32> to vector<8x16xf32>
    %2 = arith.truncf %1 : vector<8x16xf32> to vector<8x16xbf16>
    %c0_2 = arith.constant 0 : index
    %c0_3 = arith.constant 0 : index
    %3 = vector.load %arg4[%c0_2, %c0_3] : memref<16x32xbf16, #tpu.memory_space<vmem>>, vector<16x32xbf16>
    %cst = arith.constant dense<0.000000e+00> : vector<8x32xf32>
    %4 = tpu.matmul %2, %3, %cst {dimension_numbers = #tpu.dot_dimension_numbers<[1], [0], [0], [1], [0, 0, 1, 1], [], []>} : vector<8x16xbf16>, vector<16x32xbf16>, vector<8x32xf32> -> vector<8x32xf32>
    %c0_4 = arith.constant 0 : index
    %c0_5 = arith.constant 0 : index
    %5 = vector.load %arg5[%c0_4, %c0_5] : memref<1x32xf32, #tpu.memory_space<vmem>>, vector<1x32xf32>
    %6 = vector.broadcast %5 : vector<1x32xf32> to vector<8x32xf32>
    %7 = arith.addf %4, %6 : vector<8x32xf32>
    %c0_6 = arith.constant 0 : index
    %c0_7 = arith.constant 0 : index
    %c0_8 = arith.constant 0 : index
    %8 = vector.load %arg3[%c0_6, %c0_7, %c0_8] : memref<1x8x32xf32, #tpu.memory_space<vmem>>, vector<1x8x32xf32>
    %9 = vector.shape_cast %8 : vector<1x8x32xf32> to vector<8x32xf32>
    %10 = arith.addf %7, %9 : vector<8x32xf32>
    %c0_9 = arith.constant 0 : index
    %c0_10 = arith.constant 0 : index
    %c0_11 = arith.constant 0 : index
    %11 = vector.load %arg6[%c0_9, %c0_10, %c0_11] : memref<1x8x32xf32, #tpu.memory_space<vmem>>, vector<1x8x32xf32>
    %12 = vector.shape_cast %11 : vector<1x8x32xf32> to vector<8x32xf32>
    %13 = vector.shape_cast %10 : vector<8x32xf32> to vector<1x8x32xf32>
    tpu.vector_store %arg6[%c0_9, %c0_10, %c0_11], %13 {strides = array<i32>} : memref<1x8x32xf32, #tpu.memory_space<vmem>>, vector<1x8x32xf32>,
    return
  }
  func.func @transform_0(%arg0: i32, %arg1: i32) -> (i32, i32, i32) {
    %c0_i32 = arith.constant 0 : i32
    %c0_i32_0 = arith.constant 0 : i32
    return %arg0, %arg1, %c0_i32 : i32, i32, i32
  }
  func.func @transform_1(%arg0: i32, %arg1: i32) -> (i32, i32, i32) {
    %c0_i32 = arith.constant 0 : i32
    %c0_i32_0 = arith.constant 0 : i32
    %c0_i32_1 = arith.constant 0 : i32
    return %c0_i32, %arg1, %c0_i32_0 : i32, i32, i32
  }
  func.func @transform_2(%arg0: i32, %arg1: i32) -> (i32, i32) {
    %c0_i32 = arith.constant 0 : i32
    %c0_i32_0 = arith.constant 0 : i32
    %c0_i32_1 = arith.constant 0 : i32
    return %c0_i32, %c0_i32_0 : i32, i32
  }
  func.func @transform_3(%arg0: i32, %arg1: i32) -> (i32, i32) {
    %c0_i32 = arith.constant 0 : i32
    %c0_i32_0 = arith.constant 0 : i32
    %c0_i32_1 = arith.constant 0 : i32
    return %c0_i32, %c0_i32_0 : i32, i32
  }
  func.func @transform_4(%arg0: i32, %arg1: i32) -> (i32, i32, i32) {
    %c0_i32 = arith.constant 0 : i32
    %c0_i32_0 = arith.constant 0 : i32
    return %arg0, %arg1, %c0_i32 : i32, i32, i32
  }
}

module attributes {stable_mosaic.version = 11 : i64} {
  func.func @_encoder_layer_kernel(%arg0: i32, %arg1: i32, %arg2: memref<1x8x32xf32, #tpu.memory_space<vmem>>, %arg3: memref<1x8x32xf32, #tpu.memory_space<vmem>>, %arg4: memref<32x32xbf16, #tpu.memory_space<vmem>>, %arg5: memref<1x32xf32, #tpu.memory_space<vmem>>, %arg6: memref<32x32xbf16, #tpu.memory_space<vmem>>, %arg7: memref<1x32xf32, #tpu.memory_space<vmem>>, %arg8: memref<32x32xbf16, #tpu.memory_space<vmem>>, %arg9: memref<1x32xf32, #tpu.memory_space<vmem>>, %arg10: memref<32x32xbf16, #tpu.memory_space<vmem>>, %arg11: memref<1x32xf32, #tpu.memory_space<vmem>>, %arg12: memref<32x2048xbf16, #tpu.memory_space<vmem>>, %arg13: memref<1x2048xf32, #tpu.memory_space<vmem>>, %arg14: memref<32x2048xbf16, #tpu.memory_space<vmem>>, %arg15: memref<1x32xf32, #tpu.memory_space<vmem>>, %arg16: memref<1x32xf32, #tpu.memory_space<vmem>>, %arg17: memref<1x32xf32, #tpu.memory_space<vmem>>, %arg18: memref<1x32xf32, #tpu.memory_space<vmem>>, %arg19: memref<1x32xf32, #tpu.memory_space<vmem>>, %arg20: memref<1x8x32xf32, #tpu.memory_space<vmem>>) attributes {dimension_semantics = [#tpu.dimension_semantics<parallel>, #tpu.dimension_semantics<parallel>], iteration_bounds = array<i64: 2, 1>, scalar_prefetch = 0 : i64, scratch_operands = 0 : i64, tpu.core_type = #tpu.core_type<tc>, window_params = [{transform_indices = @transform_0, window_bounds = array<i64: 1, 8, 32>}, {transform_indices = @transform_1, window_bounds = array<i64: 1, 8, 32>}, {pipeline_mode = #tpu.pipeline_mode<synchronous>, transform_indices = @transform_2, window_bounds = array<i64: 32, 32>}, {pipeline_mode = #tpu.pipeline_mode<synchronous>, transform_indices = @transform_3, window_bounds = array<i64: 1, 32>}, {pipeline_mode = #tpu.pipeline_mode<synchronous>, transform_indices = @transform_4, window_bounds = array<i64: 32, 32>}, {pipeline_mode = #tpu.pipeline_mode<synchronous>, transform_indices = @transform_5, window_bounds = array<i64: 1, 32>}, {pipeline_mode = #tpu.pipeline_mode<synchronous>, transform_indices = @transform_6, window_bounds = array<i64: 32, 32>}, {pipeline_mode = #tpu.pipeline_mode<synchronous>, transform_indices = @transform_7, window_bounds = array<i64: 1, 32>}, {pipeline_mode = #tpu.pipeline_mode<synchronous>, transform_indices = @transform_8, window_bounds = array<i64: 32, 32>}, {pipeline_mode = #tpu.pipeline_mode<synchronous>, transform_indices = @transform_9, window_bounds = array<i64: 1, 32>}, {pipeline_mode = #tpu.pipeline_mode<synchronous>, transform_indices = @transform_10, window_bounds = array<i64: 32, 2048>}, {pipeline_mode = #tpu.pipeline_mode<synchronous>, transform_indices = @transform_11, window_bounds = array<i64: 1, 2048>}, {pipeline_mode = #tpu.pipeline_mode<synchronous>, transform_indices = @transform_12, window_bounds = array<i64: 32, 2048>}, {pipeline_mode = #tpu.pipeline_mode<synchronous>, transform_indices = @transform_13, window_bounds = array<i64: 1, 32>}, {pipeline_mode = #tpu.pipeline_mode<synchronous>, transform_indices = @transform_14, window_bounds = array<i64: 1, 32>}, {pipeline_mode = #tpu.pipeline_mode<synchronous>, transform_indices = @transform_15, window_bounds = array<i64: 1, 32>}, {pipeline_mode = #tpu.pipeline_mode<synchronous>, transform_indices = @transform_16, window_bounds = array<i64: 1, 32>}, {pipeline_mode = #tpu.pipeline_mode<synchronous>, transform_indices = @transform_17, window_bounds = array<i64: 1, 32>}, {transform_indices = @transform_18, window_bounds = array<i64: 1, 8, 32>}]} {
    %c0 = arith.constant 0 : index
    %c0_0 = arith.constant 0 : index
    %c0_1 = arith.constant 0 : index
    %0 = vector.load %arg2[%c0, %c0_0, %c0_1] : memref<1x8x32xf32, #tpu.memory_space<vmem>>, vector<1x8x32xf32>
    %1 = vector.shape_cast %0 : vector<1x8x32xf32> to vector<8x32xf32>
    %2 = arith.truncf %1 : vector<8x32xf32> to vector<8x32xbf16>
    %c0_2 = arith.constant 0 : index
    %c0_3 = arith.constant 0 : index
    %c0_4 = arith.constant 0 : index
    %3 = vector.load %arg3[%c0_2, %c0_3, %c0_4] : memref<1x8x32xf32, #tpu.memory_space<vmem>>, vector<1x8x32xf32>
    %4 = vector.shape_cast %3 : vector<1x8x32xf32> to vector<8x32xf32>
    %5 = arith.truncf %4 : vector<8x32xf32> to vector<8x32xbf16>
    %c0_5 = arith.constant 0 : index
    %c0_6 = arith.constant 0 : index
    %6 = vector.load %arg4[%c0_5, %c0_6] : memref<32x32xbf16, #tpu.memory_space<vmem>>, vector<32x32xbf16>
    %cst = arith.constant dense<0.000000e+00> : vector<8x32xf32>
    %7 = tpu.matmul %2, %6, %cst {dimension_numbers = #tpu.dot_dimension_numbers<[1], [0], [0], [1], [0, 0, 1, 1], [], []>} : vector<8x32xbf16>, vector<32x32xbf16>, vector<8x32xf32> -> vector<8x32xf32>
    %c0_7 = arith.constant 0 : index
    %c0_8 = arith.constant 0 : index
    %8 = vector.load %arg5[%c0_7, %c0_8] : memref<1x32xf32, #tpu.memory_space<vmem>>, vector<1x32xf32>
    %9 = vector.broadcast %8 : vector<1x32xf32> to vector<8x32xf32>
    %10 = arith.addf %7, %9 : vector<8x32xf32>
    %c0_9 = arith.constant 0 : index
    %c0_10 = arith.constant 0 : index
    %11 = vector.load %arg6[%c0_9, %c0_10] : memref<32x32xbf16, #tpu.memory_space<vmem>>, vector<32x32xbf16>
    %cst_11 = arith.constant dense<0.000000e+00> : vector<8x32xf32>
    %12 = tpu.matmul %5, %11, %cst_11 {dimension_numbers = #tpu.dot_dimension_numbers<[1], [0], [0], [1], [0, 0, 1, 1], [], []>} : vector<8x32xbf16>, vector<32x32xbf16>, vector<8x32xf32> -> vector<8x32xf32>
    %c0_12 = arith.constant 0 : index
    %c0_13 = arith.constant 0 : index
    %13 = vector.load %arg7[%c0_12, %c0_13] : memref<1x32xf32, #tpu.memory_space<vmem>>, vector<1x32xf32>
    %14 = vector.broadcast %13 : vector<1x32xf32> to vector<8x32xf32>
    %15 = arith.addf %12, %14 : vector<8x32xf32>
    %c0_14 = arith.constant 0 : index
    %c0_15 = arith.constant 0 : index
    %16 = vector.load %arg8[%c0_14, %c0_15] : memref<32x32xbf16, #tpu.memory_space<vmem>>, vector<32x32xbf16>
    %cst_16 = arith.constant dense<0.000000e+00> : vector<8x32xf32>
    %17 = tpu.matmul %5, %16, %cst_16 {dimension_numbers = #tpu.dot_dimension_numbers<[1], [0], [0], [1], [0, 0, 1, 1], [], []>} : vector<8x32xbf16>, vector<32x32xbf16>, vector<8x32xf32> -> vector<8x32xf32>
    %c0_17 = arith.constant 0 : index
    %c0_18 = arith.constant 0 : index
    %18 = vector.load %arg9[%c0_17, %c0_18] : memref<1x32xf32, #tpu.memory_space<vmem>>, vector<1x32xf32>
    %19 = vector.broadcast %18 : vector<1x32xf32> to vector<8x32xf32>
    %20 = arith.addf %17, %19 : vector<8x32xf32>
    %21 = arith.truncf %10 : vector<8x32xf32> to vector<8x32xbf16>
    %22 = arith.truncf %15 : vector<8x32xf32> to vector<8x32xbf16>
    %23 = arith.truncf %20 : vector<8x32xf32> to vector<8x32xbf16>
    %24 = vector.extract_strided_slice %21 {offsets = [0, 0], sizes = [8, 8], strides = [1, 1]} : vector<8x32xbf16> to vector<8x8xbf16>
    %25 = vector.extract_strided_slice %21 {offsets = [0, 8], sizes = [8, 8], strides = [1, 1]} : vector<8x32xbf16> to vector<8x8xbf16>
    %26 = vector.extract_strided_slice %21 {offsets = [0, 16], sizes = [8, 8], strides = [1, 1]} : vector<8x32xbf16> to vector<8x8xbf16>
    %27 = vector.extract_strided_slice %21 {offsets = [0, 24], sizes = [8, 8], strides = [1, 1]} : vector<8x32xbf16> to vector<8x8xbf16>
    %28 = vector.shape_cast %24 : vector<8x8xbf16> to vector<1x8x8xbf16>
    %29 = vector.shape_cast %25 : vector<8x8xbf16> to vector<1x8x8xbf16>
    %30 = vector.shape_cast %26 : vector<8x8xbf16> to vector<1x8x8xbf16>
    %31 = vector.shape_cast %27 : vector<8x8xbf16> to vector<1x8x8xbf16>
    %32 = tpu.concatenate %28, %29, %30, %31 in 0 : vector<1x8x8xbf16>, vector<1x8x8xbf16>, vector<1x8x8xbf16>, vector<1x8x8xbf16> -> vector<4x8x8xbf16>
    %33 = vector.extract_strided_slice %22 {offsets = [0, 0], sizes = [8, 8], strides = [1, 1]} : vector<8x32xbf16> to vector<8x8xbf16>
    %34 = vector.extract_strided_slice %22 {offsets = [0, 8], sizes = [8, 8], strides = [1, 1]} : vector<8x32xbf16> to vector<8x8xbf16>
    %35 = vector.extract_strided_slice %22 {offsets = [0, 16], sizes = [8, 8], strides = [1, 1]} : vector<8x32xbf16> to vector<8x8xbf16>
    %36 = vector.extract_strided_slice %22 {offsets = [0, 24], sizes = [8, 8], strides = [1, 1]} : vector<8x32xbf16> to vector<8x8xbf16>
    %37 = vector.shape_cast %33 : vector<8x8xbf16> to vector<1x8x8xbf16>
    %38 = vector.shape_cast %34 : vector<8x8xbf16> to vector<1x8x8xbf16>
    %39 = vector.shape_cast %35 : vector<8x8xbf16> to vector<1x8x8xbf16>
    %40 = vector.shape_cast %36 : vector<8x8xbf16> to vector<1x8x8xbf16>
    %41 = tpu.concatenate %37, %38, %39, %40 in 0 : vector<1x8x8xbf16>, vector<1x8x8xbf16>, vector<1x8x8xbf16>, vector<1x8x8xbf16> -> vector<4x8x8xbf16>
    %42 = vector.extract_strided_slice %23 {offsets = [0, 0], sizes = [8, 8], strides = [1, 1]} : vector<8x32xbf16> to vector<8x8xbf16>
    %43 = vector.extract_strided_slice %23 {offsets = [0, 8], sizes = [8, 8], strides = [1, 1]} : vector<8x32xbf16> to vector<8x8xbf16>
    %44 = vector.extract_strided_slice %23 {offsets = [0, 16], sizes = [8, 8], strides = [1, 1]} : vector<8x32xbf16> to vector<8x8xbf16>
    %45 = vector.extract_strided_slice %23 {offsets = [0, 24], sizes = [8, 8], strides = [1, 1]} : vector<8x32xbf16> to vector<8x8xbf16>
    %46 = vector.shape_cast %42 : vector<8x8xbf16> to vector<1x8x8xbf16>
    %47 = vector.shape_cast %43 : vector<8x8xbf16> to vector<1x8x8xbf16>
    %48 = vector.shape_cast %44 : vector<8x8xbf16> to vector<1x8x8xbf16>
    %49 = vector.shape_cast %45 : vector<8x8xbf16> to vector<1x8x8xbf16>
    %50 = tpu.concatenate %46, %47, %48, %49 in 0 : vector<1x8x8xbf16>, vector<1x8x8xbf16>, vector<1x8x8xbf16>, vector<1x8x8xbf16> -> vector<4x8x8xbf16>
    "tpu.trace_start"() <{level = 10 : i32, message = "hqd,hkd->hqk"}> : () -> ()
    %cst_19 = arith.constant dense<0.000000e+00> : vector<4x8x8xf32>
    %51 = tpu.matmul %32, %41, %cst_19 {dimension_numbers = #tpu.dot_dimension_numbers<[2], [2], [1], [1], [0, 0, 0, 1, 1, 1], [0], [0]>} : vector<4x8x8xbf16>, vector<4x8x8xbf16>, vector<4x8x8xf32> -> vector<4x8x8xf32>
    "tpu.trace_stop"() : () -> ()
    %cst_20 = arith.constant 0.353553385 : f32
    %52 = vector.broadcast %cst_20 : f32 to vector<4x8x8xf32>
    %53 = arith.mulf %51, %52 : vector<4x8x8xf32>
    %c8_i32 = arith.constant 8 : i32
    %54 = arith.muli %arg1, %c8_i32 : i32
    %55 = tpu.iota {dimensions = array<i32: 1>} : vector<4x8x8xi32>
    %56 = vector.broadcast %54 : i32 to vector<4x8x8xi32>
    %57 = arith.addi %56, %55 : vector<4x8x8xi32>
    %58 = tpu.iota {dimensions = array<i32: 2>} : vector<4x8x8xi32>
    %59 = arith.cmpi sgt, %58, %57 : vector<4x8x8xi32>
    %cst_21 = arith.constant -1.000000e+30 : f32
    %60 = vector.broadcast %cst_21 : f32 to vector<4x8x8xf32>
    %61 = arith.select %59, %60, %53 : vector<4x8x8xi1>, vector<4x8x8xf32>
    %cst_22 = arith.constant dense<0xFF800000> : vector<4x8xf32>
    %62 = vector.multi_reduction <maximumf>, %61, %cst_22 [2] : vector<4x8x8xf32> to vector<4x8xf32>
    %63 = vector.shape_cast %62 : vector<4x8xf32> to vector<4x8x1xf32>
    %64 = vector.broadcast %63 : vector<4x8x1xf32> to vector<4x8x8xf32>
    %65 = arith.subf %61, %64 : vector<4x8x8xf32>
    %66 = math.exp %65 : vector<4x8x8xf32>
    %cst_23 = arith.constant dense<0.000000e+00> : vector<4x8xf32>
    %67 = vector.multi_reduction <add>, %66, %cst_23 [2] : vector<4x8x8xf32> to vector<4x8xf32>
    %68 = vector.shape_cast %67 : vector<4x8xf32> to vector<4x8x1xf32>
    %69 = tpu.reciprocal %68 {approx = true} : vector<4x8x1xf32> -> vector<4x8x1xf32>
    %70 = vector.broadcast %69 : vector<4x8x1xf32> to vector<4x8x8xf32>
    %71 = arith.mulf %66, %70 : vector<4x8x8xf32>
    %72 = arith.truncf %71 : vector<4x8x8xf32> to vector<4x8x8xbf16>
    "tpu.trace_start"() <{level = 10 : i32, message = "hqk,hkd->hqd"}> : () -> ()
    %cst_24 = arith.constant dense<0.000000e+00> : vector<4x8x8xf32>
    %73 = tpu.matmul %72, %50, %cst_24 {dimension_numbers = #tpu.dot_dimension_numbers<[2], [1], [1], [2], [0, 0, 0, 1, 1, 2], [0], [0]>} : vector<4x8x8xbf16>, vector<4x8x8xbf16>, vector<4x8x8xf32> -> vector<4x8x8xf32>
    "tpu.trace_stop"() : () -> ()
    %74 = vector.extract_strided_slice %73 {offsets = [0, 0, 0], sizes = [1, 8, 8], strides = [1, 1, 1]} : vector<4x8x8xf32> to vector<1x8x8xf32>
    %75 = vector.shape_cast %74 : vector<1x8x8xf32> to vector<8x8xf32>
    %76 = vector.extract_strided_slice %73 {offsets = [1, 0, 0], sizes = [1, 8, 8], strides = [1, 1, 1]} : vector<4x8x8xf32> to vector<1x8x8xf32>
    %77 = vector.shape_cast %76 : vector<1x8x8xf32> to vector<8x8xf32>
    %78 = vector.extract_strided_slice %73 {offsets = [2, 0, 0], sizes = [1, 8, 8], strides = [1, 1, 1]} : vector<4x8x8xf32> to vector<1x8x8xf32>
    %79 = vector.shape_cast %78 : vector<1x8x8xf32> to vector<8x8xf32>
    %80 = vector.extract_strided_slice %73 {offsets = [3, 0, 0], sizes = [1, 8, 8], strides = [1, 1, 1]} : vector<4x8x8xf32> to vector<1x8x8xf32>
    %81 = vector.shape_cast %80 : vector<1x8x8xf32> to vector<8x8xf32>
    %82 = tpu.concatenate %75, %77, %79, %81 in 1 : vector<8x8xf32>, vector<8x8xf32>, vector<8x8xf32>, vector<8x8xf32> -> vector<8x32xf32>
    %83 = arith.truncf %82 : vector<8x32xf32> to vector<8x32xbf16>
    %c0_25 = arith.constant 0 : index
    %c0_26 = arith.constant 0 : index
    %84 = vector.load %arg10[%c0_25, %c0_26] : memref<32x32xbf16, #tpu.memory_space<vmem>>, vector<32x32xbf16>
    %cst_27 = arith.constant dense<0.000000e+00> : vector<8x32xf32>
    %85 = tpu.matmul %83, %84, %cst_27 {dimension_numbers = #tpu.dot_dimension_numbers<[1], [0], [0], [1], [0, 0, 1, 1], [], []>} : vector<8x32xbf16>, vector<32x32xbf16>, vector<8x32xf32> -> vector<8x32xf32>
    %c0_28 = arith.constant 0 : index
    %c0_29 = arith.constant 0 : index
    %86 = vector.load %arg11[%c0_28, %c0_29] : memref<1x32xf32, #tpu.memory_space<vmem>>, vector<1x32xf32>
    %87 = vector.broadcast %86 : vector<1x32xf32> to vector<8x32xf32>
    %88 = arith.addf %85, %87 : vector<8x32xf32>
    %89 = arith.addf %1, %88 : vector<8x32xf32>
    %c0_30 = arith.constant 0 : index
    %c0_31 = arith.constant 0 : index
    %90 = vector.load %arg16[%c0_30, %c0_31] : memref<1x32xf32, #tpu.memory_space<vmem>>, vector<1x32xf32>
    %c0_32 = arith.constant 0 : index
    %c0_33 = arith.constant 0 : index
    %91 = vector.load %arg17[%c0_32, %c0_33] : memref<1x32xf32, #tpu.memory_space<vmem>>, vector<1x32xf32>
    %cst_34 = arith.constant dense<0.000000e+00> : vector<8xf32>
    %92 = vector.multi_reduction <add>, %89, %cst_34 [1] : vector<8x32xf32> to vector<8xf32>
    %93 = vector.shape_cast %92 : vector<8xf32> to vector<8x1xf32>
    %cst_35 = arith.constant 3.200000e+01 : f32
    %94 = vector.broadcast %cst_35 : f32 to vector<8x1xf32>
    %95 = arith.divf %93, %94 : vector<8x1xf32>
    %96 = vector.broadcast %95 : vector<8x1xf32> to vector<8x32xf32>
    %97 = arith.subf %89, %96 : vector<8x32xf32>
    %98 = arith.mulf %97, %97 : vector<8x32xf32>
    %cst_36 = arith.constant dense<0.000000e+00> : vector<8xf32>
    %99 = vector.multi_reduction <add>, %98, %cst_36 [1] : vector<8x32xf32> to vector<8xf32>
    %100 = vector.shape_cast %99 : vector<8xf32> to vector<8x1xf32>
    %cst_37 = arith.constant 3.200000e+01 : f32
    %101 = vector.broadcast %cst_37 : f32 to vector<8x1xf32>
    %102 = arith.divf %100, %101 : vector<8x1xf32>
    %103 = vector.broadcast %95 : vector<8x1xf32> to vector<8x32xf32>
    %104 = arith.subf %89, %103 : vector<8x32xf32>
    %cst_38 = arith.constant 9.99999974E-6 : f32
    %105 = vector.broadcast %cst_38 : f32 to vector<8x1xf32>
    %106 = arith.addf %102, %105 : vector<8x1xf32>
    %107 = math.rsqrt %106 : vector<8x1xf32>
    %108 = vector.broadcast %107 : vector<8x1xf32> to vector<8x32xf32>
    %109 = arith.mulf %104, %108 : vector<8x32xf32>
    %110 = vector.broadcast %90 : vector<1x32xf32> to vector<8x32xf32>
    %111 = arith.mulf %109, %110 : vector<8x32xf32>
    %112 = vector.broadcast %91 : vector<1x32xf32> to vector<8x32xf32>
    %113 = arith.addf %111, %112 : vector<8x32xf32>
    %114 = arith.truncf %113 : vector<8x32xf32> to vector<8x32xbf16>
    %c0_39 = arith.constant 0 : index
    %c0_40 = arith.constant 0 : index
    %115 = vector.load %arg12[%c0_39, %c0_40] : memref<32x2048xbf16, #tpu.memory_space<vmem>>, vector<32x2048xbf16>
    %cst_41 = arith.constant dense<0.000000e+00> : vector<8x2048xf32>
    %116 = tpu.matmul %114, %115, %cst_41 {dimension_numbers = #tpu.dot_dimension_numbers<[1], [0], [0], [1], [0, 0, 1, 1], [], []>} : vector<8x32xbf16>, vector<32x2048xbf16>, vector<8x2048xf32> -> vector<8x2048xf32>
    %c0_42 = arith.constant 0 : index
    %c0_43 = arith.constant 0 : index
    %117 = vector.load %arg13[%c0_42, %c0_43] : memref<1x2048xf32, #tpu.memory_space<vmem>>, vector<1x2048xf32>
    %118 = vector.broadcast %117 : vector<1x2048xf32> to vector<8x2048xf32>
    %119 = arith.addf %116, %118 : vector<8x2048xf32>
    %cst_44 = arith.constant 0.000000e+00 : f32
    %120 = vector.broadcast %cst_44 : f32 to vector<8x2048xf32>
    %121 = arith.maximumf %119, %120 : vector<8x2048xf32>
    %122 = arith.truncf %121 : vector<8x2048xf32> to vector<8x2048xbf16>
    %c0_45 = arith.constant 0 : index
    %c0_46 = arith.constant 0 : index
    %123 = vector.load %arg14[%c0_45, %c0_46] : memref<32x2048xbf16, #tpu.memory_space<vmem>>, vector<32x2048xbf16>
    %cst_47 = arith.constant dense<0.000000e+00> : vector<8x32xf32>
    %124 = tpu.matmul %122, %123, %cst_47 {dimension_numbers = #tpu.dot_dimension_numbers<[1], [1], [0], [0], [0, 0, 1, 0], [], []>} : vector<8x2048xbf16>, vector<32x2048xbf16>, vector<8x32xf32> -> vector<8x32xf32>
    %c0_48 = arith.constant 0 : index
    %c0_49 = arith.constant 0 : index
    %125 = vector.load %arg15[%c0_48, %c0_49] : memref<1x32xf32, #tpu.memory_space<vmem>>, vector<1x32xf32>
    %126 = vector.broadcast %125 : vector<1x32xf32> to vector<8x32xf32>
    %127 = arith.addf %124, %126 : vector<8x32xf32>
    %128 = arith.addf %113, %127 : vector<8x32xf32>
    %c0_50 = arith.constant 0 : index
    %c0_51 = arith.constant 0 : index
    %129 = vector.load %arg18[%c0_50, %c0_51] : memref<1x32xf32, #tpu.memory_space<vmem>>, vector<1x32xf32>
    %c0_52 = arith.constant 0 : index
    %c0_53 = arith.constant 0 : index
    %130 = vector.load %arg19[%c0_52, %c0_53] : memref<1x32xf32, #tpu.memory_space<vmem>>, vector<1x32xf32>
    %cst_54 = arith.constant dense<0.000000e+00> : vector<8xf32>
    %131 = vector.multi_reduction <add>, %128, %cst_54 [1] : vector<8x32xf32> to vector<8xf32>
    %132 = vector.shape_cast %131 : vector<8xf32> to vector<8x1xf32>
    %cst_55 = arith.constant 3.200000e+01 : f32
    %133 = vector.broadcast %cst_55 : f32 to vector<8x1xf32>
    %134 = arith.divf %132, %133 : vector<8x1xf32>
    %135 = vector.broadcast %134 : vector<8x1xf32> to vector<8x32xf32>
    %136 = arith.subf %128, %135 : vector<8x32xf32>
    %137 = arith.mulf %136, %136 : vector<8x32xf32>
    %cst_56 = arith.constant dense<0.000000e+00> : vector<8xf32>
    %138 = vector.multi_reduction <add>, %137, %cst_56 [1] : vector<8x32xf32> to vector<8xf32>
    %139 = vector.shape_cast %138 : vector<8xf32> to vector<8x1xf32>
    %cst_57 = arith.constant 3.200000e+01 : f32
    %140 = vector.broadcast %cst_57 : f32 to vector<8x1xf32>
    %141 = arith.divf %139, %140 : vector<8x1xf32>
    %142 = vector.broadcast %134 : vector<8x1xf32> to vector<8x32xf32>
    %143 = arith.subf %128, %142 : vector<8x32xf32>
    %cst_58 = arith.constant 9.99999974E-6 : f32
    %144 = vector.broadcast %cst_58 : f32 to vector<8x1xf32>
    %145 = arith.addf %141, %144 : vector<8x1xf32>
    %146 = math.rsqrt %145 : vector<8x1xf32>
    %147 = vector.broadcast %146 : vector<8x1xf32> to vector<8x32xf32>
    %148 = arith.mulf %143, %147 : vector<8x32xf32>
    %149 = vector.broadcast %129 : vector<1x32xf32> to vector<8x32xf32>
    %150 = arith.mulf %148, %149 : vector<8x32xf32>
    %151 = vector.broadcast %130 : vector<1x32xf32> to vector<8x32xf32>
    %152 = arith.addf %150, %151 : vector<8x32xf32>
    %c0_59 = arith.constant 0 : index
    %c0_60 = arith.constant 0 : index
    %c0_61 = arith.constant 0 : index
    %153 = vector.load %arg20[%c0_59, %c0_60, %c0_61] : memref<1x8x32xf32, #tpu.memory_space<vmem>>, vector<1x8x32xf32>
    %154 = vector.shape_cast %153 : vector<1x8x32xf32> to vector<8x32xf32>
    %155 = vector.shape_cast %152 : vector<8x32xf32> to vector<1x8x32xf32>
    tpu.vector_store %arg20[%c0_59, %c0_60, %c0_61], %155 {strides = array<i32>} : memref<1x8x32xf32, #tpu.memory_space<vmem>>, vector<1x8x32xf32>,
    return
  }
  func.func @transform_0(%arg0: i32, %arg1: i32) -> (i32, i32, i32) {
    %c0_i32 = arith.constant 0 : i32
    %c0_i32_0 = arith.constant 0 : i32
    return %arg0, %arg1, %c0_i32 : i32, i32, i32
  }
  func.func @transform_1(%arg0: i32, %arg1: i32) -> (i32, i32, i32) {
    %c0_i32 = arith.constant 0 : i32
    %c0_i32_0 = arith.constant 0 : i32
    %c0_i32_1 = arith.constant 0 : i32
    return %arg0, %c0_i32, %c0_i32_0 : i32, i32, i32
  }
  func.func @transform_2(%arg0: i32, %arg1: i32) -> (i32, i32) {
    %c0_i32 = arith.constant 0 : i32
    %c0_i32_0 = arith.constant 0 : i32
    %c0_i32_1 = arith.constant 0 : i32
    return %c0_i32, %c0_i32_0 : i32, i32
  }
  func.func @transform_3(%arg0: i32, %arg1: i32) -> (i32, i32) {
    %c0_i32 = arith.constant 0 : i32
    %c0_i32_0 = arith.constant 0 : i32
    %c0_i32_1 = arith.constant 0 : i32
    return %c0_i32, %c0_i32_0 : i32, i32
  }
  func.func @transform_4(%arg0: i32, %arg1: i32) -> (i32, i32) {
    %c0_i32 = arith.constant 0 : i32
    %c0_i32_0 = arith.constant 0 : i32
    %c0_i32_1 = arith.constant 0 : i32
    return %c0_i32, %c0_i32_0 : i32, i32
  }
  func.func @transform_5(%arg0: i32, %arg1: i32) -> (i32, i32) {
    %c0_i32 = arith.constant 0 : i32
    %c0_i32_0 = arith.constant 0 : i32
    %c0_i32_1 = arith.constant 0 : i32
    return %c0_i32, %c0_i32_0 : i32, i32
  }
  func.func @transform_6(%arg0: i32, %arg1: i32) -> (i32, i32) {
    %c0_i32 = arith.constant 0 : i32
    %c0_i32_0 = arith.constant 0 : i32
    %c0_i32_1 = arith.constant 0 : i32
    return %c0_i32, %c0_i32_0 : i32, i32
  }
  func.func @transform_7(%arg0: i32, %arg1: i32) -> (i32, i32) {
    %c0_i32 = arith.constant 0 : i32
    %c0_i32_0 = arith.constant 0 : i32
    %c0_i32_1 = arith.constant 0 : i32
    return %c0_i32, %c0_i32_0 : i32, i32
  }
  func.func @transform_8(%arg0: i32, %arg1: i32) -> (i32, i32) {
    %c0_i32 = arith.constant 0 : i32
    %c0_i32_0 = arith.constant 0 : i32
    %c0_i32_1 = arith.constant 0 : i32
    return %c0_i32, %c0_i32_0 : i32, i32
  }
  func.func @transform_9(%arg0: i32, %arg1: i32) -> (i32, i32) {
    %c0_i32 = arith.constant 0 : i32
    %c0_i32_0 = arith.constant 0 : i32
    %c0_i32_1 = arith.constant 0 : i32
    return %c0_i32, %c0_i32_0 : i32, i32
  }
  func.func @transform_10(%arg0: i32, %arg1: i32) -> (i32, i32) {
    %c0_i32 = arith.constant 0 : i32
    %c0_i32_0 = arith.constant 0 : i32
    %c0_i32_1 = arith.constant 0 : i32
    return %c0_i32, %c0_i32_0 : i32, i32
  }
  func.func @transform_11(%arg0: i32, %arg1: i32) -> (i32, i32) {
    %c0_i32 = arith.constant 0 : i32
    %c0_i32_0 = arith.constant 0 : i32
    %c0_i32_1 = arith.constant 0 : i32
    return %c0_i32, %c0_i32_0 : i32, i32
  }
  func.func @transform_12(%arg0: i32, %arg1: i32) -> (i32, i32) {
    %c0_i32 = arith.constant 0 : i32
    %c0_i32_0 = arith.constant 0 : i32
    %c0_i32_1 = arith.constant 0 : i32
    return %c0_i32, %c0_i32_0 : i32, i32
  }
  func.func @transform_13(%arg0: i32, %arg1: i32) -> (i32, i32) {
    %c0_i32 = arith.constant 0 : i32
    %c0_i32_0 = arith.constant 0 : i32
    %c0_i32_1 = arith.constant 0 : i32
    return %c0_i32, %c0_i32_0 : i32, i32
  }
  func.func @transform_14(%arg0: i32, %arg1: i32) -> (i32, i32) {
    %c0_i32 = arith.constant 0 : i32
    %c0_i32_0 = arith.constant 0 : i32
    %c0_i32_1 = arith.constant 0 : i32
    return %c0_i32, %c0_i32_0 : i32, i32
  }
  func.func @transform_15(%arg0: i32, %arg1: i32) -> (i32, i32) {
    %c0_i32 = arith.constant 0 : i32
    %c0_i32_0 = arith.constant 0 : i32
    %c0_i32_1 = arith.constant 0 : i32
    return %c0_i32, %c0_i32_0 : i32, i32
  }
  func.func @transform_16(%arg0: i32, %arg1: i32) -> (i32, i32) {
    %c0_i32 = arith.constant 0 : i32
    %c0_i32_0 = arith.constant 0 : i32
    %c0_i32_1 = arith.constant 0 : i32
    return %c0_i32, %c0_i32_0 : i32, i32
  }
  func.func @transform_17(%arg0: i32, %arg1: i32) -> (i32, i32) {
    %c0_i32 = arith.constant 0 : i32
    %c0_i32_0 = arith.constant 0 : i32
    %c0_i32_1 = arith.constant 0 : i32
    return %c0_i32, %c0_i32_0 : i32, i32
  }
  func.func @transform_18(%arg0: i32, %arg1: i32) -> (i32, i32, i32) {
    %c0_i32 = arith.constant 0 : i32
    %c0_i32_0 = arith.constant 0 : i32
    return %arg0, %arg1, %c0_i32 : i32, i32, i32
  }
}

module attributes {stable_mosaic.version = 11 : i64} {
  func.func @_head_kernel(%arg0: i32, %arg1: memref<2x5x8xf32, #tpu.memory_space<vmem>>, %arg2: memref<2x8x32xf32, #tpu.memory_space<vmem>>, %arg3: memref<8x32xf32, #tpu.memory_space<vmem>>, %arg4: memref<1x32xf32, #tpu.memory_space<vmem>>, %arg5: memref<32x32xf32, #tpu.memory_space<vmem>>, %arg6: memref<1x32xf32, #tpu.memory_space<vmem>>, %arg7: memref<64x32xf32, #tpu.memory_space<vmem>>, %arg8: memref<1x32xf32, #tpu.memory_space<vmem>>, %arg9: memref<32x4xf32, #tpu.memory_space<vmem>>, %arg10: memref<1x4xf32, #tpu.memory_space<vmem>>, %arg11: memref<2x4xf32, #tpu.memory_space<vmem>>) attributes {dimension_semantics = [#tpu.dimension_semantics<arbitrary>], iteration_bounds = array<i64: 1>, scalar_prefetch = 0 : i64, scratch_operands = 0 : i64, tpu.core_type = #tpu.core_type<tc>, window_params = [{pipeline_mode = #tpu.pipeline_mode<synchronous>, transform_indices = @transform_0, window_bounds = array<i64: 2, 5, 8>}, {pipeline_mode = #tpu.pipeline_mode<synchronous>, transform_indices = @transform_1, window_bounds = array<i64: 2, 8, 32>}, {pipeline_mode = #tpu.pipeline_mode<synchronous>, transform_indices = @transform_2, window_bounds = array<i64: 8, 32>}, {pipeline_mode = #tpu.pipeline_mode<synchronous>, transform_indices = @transform_3, window_bounds = array<i64: 1, 32>}, {pipeline_mode = #tpu.pipeline_mode<synchronous>, transform_indices = @transform_4, window_bounds = array<i64: 32, 32>}, {pipeline_mode = #tpu.pipeline_mode<synchronous>, transform_indices = @transform_5, window_bounds = array<i64: 1, 32>}, {pipeline_mode = #tpu.pipeline_mode<synchronous>, transform_indices = @transform_6, window_bounds = array<i64: 64, 32>}, {pipeline_mode = #tpu.pipeline_mode<synchronous>, transform_indices = @transform_7, window_bounds = array<i64: 1, 32>}, {pipeline_mode = #tpu.pipeline_mode<synchronous>, transform_indices = @transform_8, window_bounds = array<i64: 32, 4>}, {pipeline_mode = #tpu.pipeline_mode<synchronous>, transform_indices = @transform_9, window_bounds = array<i64: 1, 4>}, {pipeline_mode = #tpu.pipeline_mode<synchronous>, transform_indices = @transform_10, window_bounds = array<i64: 2, 4>}]} {
    %c0 = arith.constant 0 : index
    %c0_0 = arith.constant 0 : index
    %c0_1 = arith.constant 0 : index
    %0 = vector.load %arg1[%c0, %c0_0, %c0_1] : memref<2x5x8xf32, #tpu.memory_space<vmem>>, vector<2x5x8xf32>
    %cst = arith.constant dense<0.000000e+00> : vector<2x8xf32>
    %1 = vector.multi_reduction <add>, %0, %cst [1] : vector<2x5x8xf32> to vector<2x8xf32>
    %cst_2 = arith.constant 5.000000e+00 : f32
    %2 = vector.broadcast %cst_2 : f32 to vector<2x8xf32>
    %3 = arith.divf %1, %2 : vector<2x8xf32>
    %c0_3 = arith.constant 0 : index
    %c0_4 = arith.constant 0 : index
    %4 = vector.load %arg3[%c0_3, %c0_4] : memref<8x32xf32, #tpu.memory_space<vmem>>, vector<8x32xf32>
    %cst_5 = arith.constant dense<0.000000e+00> : vector<2x32xf32>
    %5 = tpu.matmul %3, %4, %cst_5 {dimension_numbers = #tpu.dot_dimension_numbers<[1], [0], [0], [1], [0, 0, 1, 1], [], []>} : vector<2x8xf32>, vector<8x32xf32>, vector<2x32xf32> -> vector<2x32xf32>
    %c0_6 = arith.constant 0 : index
    %c0_7 = arith.constant 0 : index
    %6 = vector.load %arg4[%c0_6, %c0_7] : memref<1x32xf32, #tpu.memory_space<vmem>>, vector<1x32xf32>
    %7 = vector.broadcast %6 : vector<1x32xf32> to vector<2x32xf32>
    %8 = arith.addf %5, %7 : vector<2x32xf32>
    %cst_8 = arith.constant 0.000000e+00 : f32
    %9 = vector.broadcast %cst_8 : f32 to vector<2x32xf32>
    %10 = arith.maximumf %8, %9 : vector<2x32xf32>
    %c0_9 = arith.constant 0 : index
    %c0_10 = arith.constant 0 : index
    %11 = vector.load %arg5[%c0_9, %c0_10] : memref<32x32xf32, #tpu.memory_space<vmem>>, vector<32x32xf32>
    %cst_11 = arith.constant dense<0.000000e+00> : vector<2x32xf32>
    %12 = tpu.matmul %10, %11, %cst_11 {dimension_numbers = #tpu.dot_dimension_numbers<[1], [0], [0], [1], [0, 0, 1, 1], [], []>} : vector<2x32xf32>, vector<32x32xf32>, vector<2x32xf32> -> vector<2x32xf32>
    %c0_12 = arith.constant 0 : index
    %c0_13 = arith.constant 0 : index
    %13 = vector.load %arg6[%c0_12, %c0_13] : memref<1x32xf32, #tpu.memory_space<vmem>>, vector<1x32xf32>
    %14 = vector.broadcast %13 : vector<1x32xf32> to vector<2x32xf32>
    %15 = arith.addf %12, %14 : vector<2x32xf32>
    %c0_14 = arith.constant 0 : index
    %c0_15 = arith.constant 0 : index
    %c0_16 = arith.constant 0 : index
    %16 = vector.load %arg2[%c0_14, %c0_15, %c0_16] : memref<2x8x32xf32, #tpu.memory_space<vmem>>, vector<2x8x32xf32>
    %cst_17 = arith.constant dense<0.000000e+00> : vector<2x32xf32>
    %17 = vector.multi_reduction <add>, %16, %cst_17 [1] : vector<2x8x32xf32> to vector<2x32xf32>
    %cst_18 = arith.constant 8.000000e+00 : f32
    %18 = vector.broadcast %cst_18 : f32 to vector<2x32xf32>
    %19 = arith.divf %17, %18 : vector<2x32xf32>
    %c0_19 = arith.constant 0 : index
    %c0_20 = arith.constant 0 : index
    %20 = vector.load %arg7[%c0_19, %c0_20] : memref<64x32xf32, #tpu.memory_space<vmem>>, vector<64x32xf32>
    %21 = vector.extract_strided_slice %20 {offsets = [0, 0], sizes = [32, 32], strides = [1, 1]} : vector<64x32xf32> to vector<32x32xf32>
    %cst_21 = arith.constant dense<0.000000e+00> : vector<2x32xf32>
    %22 = tpu.matmul %15, %21, %cst_21 {dimension_numbers = #tpu.dot_dimension_numbers<[1], [0], [0], [1], [0, 0, 1, 1], [], []>} : vector<2x32xf32>, vector<32x32xf32>, vector<2x32xf32> -> vector<2x32xf32>
    %23 = vector.extract_strided_slice %20 {offsets = [32, 0], sizes = [32, 32], strides = [1, 1]} : vector<64x32xf32> to vector<32x32xf32>
    %cst_22 = arith.constant dense<0.000000e+00> : vector<2x32xf32>
    %24 = tpu.matmul %19, %23, %cst_22 {dimension_numbers = #tpu.dot_dimension_numbers<[1], [0], [0], [1], [0, 0, 1, 1], [], []>} : vector<2x32xf32>, vector<32x32xf32>, vector<2x32xf32> -> vector<2x32xf32>
    %25 = arith.addf %22, %24 : vector<2x32xf32>
    %c0_23 = arith.constant 0 : index
    %c0_24 = arith.constant 0 : index
    %26 = vector.load %arg8[%c0_23, %c0_24] : memref<1x32xf32, #tpu.memory_space<vmem>>, vector<1x32xf32>
    %27 = vector.broadcast %26 : vector<1x32xf32> to vector<2x32xf32>
    %28 = arith.addf %25, %27 : vector<2x32xf32>
    %cst_25 = arith.constant 0.000000e+00 : f32
    %29 = vector.broadcast %cst_25 : f32 to vector<2x32xf32>
    %30 = arith.cmpf oge, %28, %29 : vector<2x32xf32>
    %cst_26 = arith.constant 0.00999999977 : f32
    %31 = vector.broadcast %cst_26 : f32 to vector<2x32xf32>
    %32 = arith.mulf %31, %28 : vector<2x32xf32>
    %33 = arith.select %30, %28, %32 : vector<2x32xi1>, vector<2x32xf32>
    %c0_27 = arith.constant 0 : index
    %c0_28 = arith.constant 0 : index
    %34 = vector.load %arg9[%c0_27, %c0_28] : memref<32x4xf32, #tpu.memory_space<vmem>>, vector<32x4xf32>
    %cst_29 = arith.constant dense<0.000000e+00> : vector<2x4xf32>
    %35 = tpu.matmul %33, %34, %cst_29 {dimension_numbers = #tpu.dot_dimension_numbers<[1], [0], [0], [1], [0, 0, 1, 1], [], []>} : vector<2x32xf32>, vector<32x4xf32>, vector<2x4xf32> -> vector<2x4xf32>
    %c0_30 = arith.constant 0 : index
    %c0_31 = arith.constant 0 : index
    %36 = vector.load %arg10[%c0_30, %c0_31] : memref<1x4xf32, #tpu.memory_space<vmem>>, vector<1x4xf32>
    %37 = vector.broadcast %36 : vector<1x4xf32> to vector<2x4xf32>
    %38 = arith.addf %35, %37 : vector<2x4xf32>
    %cst_32 = arith.constant 0.000000e+00 : f32
    %39 = vector.broadcast %cst_32 : f32 to vector<2x4xf32>
    %40 = arith.subf %39, %38 : vector<2x4xf32>
    %41 = math.exp %40 : vector<2x4xf32>
    %cst_33 = arith.constant 1.000000e+00 : f32
    %42 = vector.broadcast %cst_33 : f32 to vector<2x4xf32>
    %43 = arith.addf %42, %41 : vector<2x4xf32>
    %cst_34 = arith.constant 1.000000e+00 : f32
    %44 = vector.broadcast %cst_34 : f32 to vector<2x4xf32>
    %45 = arith.divf %44, %43 : vector<2x4xf32>
    %c0_35 = arith.constant 0 : index
    %c0_36 = arith.constant 0 : index
    %46 = vector.load %arg11[%c0_35, %c0_36] : memref<2x4xf32, #tpu.memory_space<vmem>>, vector<2x4xf32>
    tpu.vector_store %arg11[%c0_35, %c0_36], %45 {strides = array<i32>} : memref<2x4xf32, #tpu.memory_space<vmem>>, vector<2x4xf32>,
    return
  }
  func.func @transform_0(%arg0: i32) -> (i32, i32, i32) {
    %c0_i32 = arith.constant 0 : i32
    %c0_i32_0 = arith.constant 0 : i32
    %c0_i32_1 = arith.constant 0 : i32
    %c0_i32_2 = arith.constant 0 : i32
    return %c0_i32, %c0_i32_0, %c0_i32_1 : i32, i32, i32
  }
  func.func @transform_1(%arg0: i32) -> (i32, i32, i32) {
    %c0_i32 = arith.constant 0 : i32
    %c0_i32_0 = arith.constant 0 : i32
    %c0_i32_1 = arith.constant 0 : i32
    %c0_i32_2 = arith.constant 0 : i32
    return %c0_i32, %c0_i32_0, %c0_i32_1 : i32, i32, i32
  }
  func.func @transform_2(%arg0: i32) -> (i32, i32) {
    %c0_i32 = arith.constant 0 : i32
    %c0_i32_0 = arith.constant 0 : i32
    %c0_i32_1 = arith.constant 0 : i32
    return %c0_i32, %c0_i32_0 : i32, i32
  }
  func.func @transform_3(%arg0: i32) -> (i32, i32) {
    %c0_i32 = arith.constant 0 : i32
    %c0_i32_0 = arith.constant 0 : i32
    %c0_i32_1 = arith.constant 0 : i32
    return %c0_i32, %c0_i32_0 : i32, i32
  }
  func.func @transform_4(%arg0: i32) -> (i32, i32) {
    %c0_i32 = arith.constant 0 : i32
    %c0_i32_0 = arith.constant 0 : i32
    %c0_i32_1 = arith.constant 0 : i32
    return %c0_i32, %c0_i32_0 : i32, i32
  }
  func.func @transform_5(%arg0: i32) -> (i32, i32) {
    %c0_i32 = arith.constant 0 : i32
    %c0_i32_0 = arith.constant 0 : i32
    %c0_i32_1 = arith.constant 0 : i32
    return %c0_i32, %c0_i32_0 : i32, i32
  }
  func.func @transform_6(%arg0: i32) -> (i32, i32) {
    %c0_i32 = arith.constant 0 : i32
    %c0_i32_0 = arith.constant 0 : i32
    %c0_i32_1 = arith.constant 0 : i32
    return %c0_i32, %c0_i32_0 : i32, i32
  }
  func.func @transform_7(%arg0: i32) -> (i32, i32) {
    %c0_i32 = arith.constant 0 : i32
    %c0_i32_0 = arith.constant 0 : i32
    %c0_i32_1 = arith.constant 0 : i32
    return %c0_i32, %c0_i32_0 : i32, i32
  }
  func.func @transform_8(%arg0: i32) -> (i32, i32) {
    %c0_i32 = arith.constant 0 : i32
    %c0_i32_0 = arith.constant 0 : i32
    %c0_i32_1 = arith.constant 0 : i32
    return %c0_i32, %c0_i32_0 : i32, i32
  }
  func.func @transform_9(%arg0: i32) -> (i32, i32) {
    %c0_i32 = arith.constant 0 : i32
    %c0_i32_0 = arith.constant 0 : i32
    %c0_i32_1 = arith.constant 0 : i32
    return %c0_i32, %c0_i32_0 : i32, i32
  }
  func.func @transform_10(%arg0: i32) -> (i32, i32) {
    %c0_i32 = arith.constant 0 : i32
    %c0_i32_0 = arith.constant 0 : i32
    %c0_i32_1 = arith.constant 0 : i32
    return %c0_i32, %c0_i32_0 : i32, i32
  }
}

</mosaic_0001>

<llo_original>
// kernel: forward.4
$region0: #{forward.4}
  #allocation0 [shape = 'u32[]', space=smem, size = 0x4, offset = 0x4, fixed_abs, tag = 'smem constant byte address 0x4 - core index']
  #allocation1 [shape = 'u32[144,128]{1,0:T(1,128)}', space=vmem, size = 0x12000, scoped, tag = 'internal scratch']
  %s0 = inlined_call_operand.vmem [shape: f32[2,8,16], index: 0, kind: input, shape index: {}]
  %s1 = inlined_call_operand.vmem [shape: f32[1,25000,32], index: 1, kind: input, shape index: {}]
  %s2 = inlined_call_operand.vmem [shape: bf16[16,32], index: 2, kind: input, shape index: {}]
  %s3 = inlined_call_operand.hbm [shape: f32[1,32], index: 3, kind: input, shape index: {}]
  %s4 = inlined_call_operand.vmem [shape: f32[2,8,32], index: 4, kind: output, shape index: {}]
  %s5 = sld [smem:[#allocation0]]
  $region53: #{forward.4} parent=0
    _
  %s7 = ssub.s32 1, %s5
  %s8 = scalar_select 0, %s7, %s5
  $region1: #{forward.4} parent=0
    #allocation2 [shape = 'u8[512]{0}', space=vmem, size = 0x400, scoped, tag = 'input window, operand 3, single buffered']
    #allocation3 [shape = 's32[2]{0}', space=sflag, size = 0x8, scoped, tag = 'scoped memory for forward.4']
    %9 = vsyncpa [#allocation3], 0
    loop: start=0, step=1, limit=4
    $region2: #{forward.4} parent=1 // loop_pre_header
      _
    $region3: #{forward.4} parent=1 // loop_header
      %s11 = sphi 0, %s15
      %p12 = scmp.ge.s32.totalorder %s11, 4
      %s18 = sphi 0, %s30
      %s19 = sphi 0, %s26
      %s20 = sphi 0, %s18
      %s21 = sphi 0, %s19
      %s22 = sphi 0, %s20
      %s23 = sphi 0, %s21
      %s35 = sphi 0, %s37
      %s38 = sphi 0, %s35
      %s39 = sphi 0, %s38
      %s55 = sphi 0, %s39
      %s61 = sphi 0, %s63
      %s64 = sphi 0, %s61
      %s65 = sphi 0, %s64
      %s81 = sphi 0, %s65
      %s85 = sphi 0, %s85
      %s87 = sphi 0, %s85
      %s88 = sphi 0, %s87
      %s102 = sphi 0, %s88
      %s106 = sphi 0, %s106
      %s108 = sphi 0, %s106
      %s109 = sphi 0, %s108
      %s123 = sphi 0, %s109
      %s131 = sphi 0, %s133
      %s134 = sphi 0, %s131
      %s135 = sphi 0, %s134
      %s151 = sphi 0, %s135
    $region4: #{forward.4} parent=1 // loop_header_branch
      %14 = sbr.rel (%p12) target = $region8
    $region5: #{forward.4} parent=1 // loop_body
      %s16 = ssub.s32 %s11, 1
      %s17 = ssub.s32 %s11, 2
      %s24 = sadd.s32 1, %s19
      %p25 = scmp.ge.s32.totalorder %s24, 1
      %s26 = scalar_select %p25, 0, %s24
      %s27 = sadd.s32 1, %s18
      %s28 = scalar_select %p25, %s27, %s18
      %p29 = scmp.ge.s32.totalorder %s28, 2
      %s30 = scalar_select %p29, 0, %s28
      %s31 = ssub.s32 %s18, %s30
      %s32 = ssub.s32 %s19, %s26
      %s33 = sor.u32 %s31, %s32
      %p34 = scmp.eq.s32.totalorder %s33, 0
      %s36 = sadd.s32 %s35, 1
      %s37 = scalar_select %p34, %s35, %s36
      %p40 = pneg %p34
      %p41 = scmp.eq.s32.totalorder %s11, 1
      %p42 = por %p40, %p41
      %p43 = scmp.ne.s32.totalorder %s35, %s38
      %p44 = scmp.eq.s32.totalorder %s11, 0
      %p45 = por %p43, %p44
      %p46 = scmp.ne.s32.totalorder %s35, %s38
      %p47 = scmp.eq.s32.totalorder %s16, 1
      %p48 = por %p46, %p47
      %p49 = scmp.ne.s32.totalorder %s38, %s39
      %p50 = scmp.eq.s32.totalorder %s16, 0
      %p51 = por %p49, %p50
      %p52 = scmp.ne.s32.totalorder %s38, %s39
      %p53 = scmp.eq.s32.totalorder %s17, 1
      %p54 = por %p52, %p53
      %p56 = scmp.ne.s32.totalorder %s39, %s55
      %p57 = scmp.eq.s32.totalorder %s17, 0
      %p58 = por %p56, %p57
      %s59 = ssub.s32 %s19, %s26
      %p60 = scmp.eq.s32.totalorder %s59, 0
      %s62 = sadd.s32 %s61, 1
      %s63 = scalar_select %p60, %s61, %s62
      %p66 = pneg %p60
      %p67 = scmp.eq.s32.totalorder %s11, 1
      %p68 = por %p66, %p67
      %p69 = scmp.ne.s32.totalorder %s61, %s64
      %p70 = scmp.eq.s32.totalorder %s11, 0
      %p71 = por %p69, %p70
      %p72 = scmp.ne.s32.totalorder %s61, %s64
      %p73 = scmp.eq.s32.totalorder %s16, 1
      %p74 = por %p72, %p73
      %p75 = scmp.ne.s32.totalorder %s64, %s65
      %p76 = scmp.eq.s32.totalorder %s16, 0
      %p77 = por %p75, %p76
      %p78 = scmp.ne.s32.totalorder %s64, %s65
      %p79 = scmp.eq.s32.totalorder %s17, 1
      %p80 = por %p78, %p79
      %p82 = scmp.ne.s32.totalorder %s65, %s81
      %p83 = scmp.eq.s32.totalorder %s17, 0
      %p84 = por %p82, %p83
      %s86 = sadd.s32 %s85, 1
      %p89 = scmp.eq.s32.totalorder %s11, 1
      %p90 = scmp.ne.s32.totalorder %s85, %s87
      %p91 = scmp.eq.s32.totalorder %s11, 0
      %p92 = por %p90, %p91
      %p93 = scmp.ne.s32.totalorder %s85, %s87
      %p94 = scmp.eq.s32.totalorder %s16, 1
      %p95 = por %p93, %p94
      %p96 = scmp.ne.s32.totalorder %s87, %s88
      %p97 = scmp.eq.s32.totalorder %s16, 0
      %p98 = por %p96, %p97
      %p99 = scmp.ne.s32.totalorder %s87, %s88
      %p100 = scmp.eq.s32.totalorder %s17, 1
      %p101 = por %p99, %p100
      %p103 = scmp.ne.s32.totalorder %s88, %s102
      %p104 = scmp.eq.s32.totalorder %s17, 0
      %p105 = por %p103, %p104
      %s107 = sadd.s32 %s106, 1
      %p110 = scmp.eq.s32.totalorder %s11, 1
      %p111 = scmp.ne.s32.totalorder %s106, %s108
      %p112 = scmp.eq.s32.totalorder %s11, 0
      %p113 = por %p111, %p112
      %p114 = scmp.ne.s32.totalorder %s106, %s108
      %p115 = scmp.eq.s32.totalorder %s16, 1
      %p116 = por %p114, %p115
      %p117 = scmp.ne.s32.totalorder %s108, %s109
      %p118 = scmp.eq.s32.totalorder %s16, 0
      %p119 = por %p117, %p118
      %p120 = scmp.ne.s32.totalorder %s108, %s109
      %p121 = scmp.eq.s32.totalorder %s17, 1
      %p122 = por %p120, %p121
      %p124 = scmp.ne.s32.totalorder %s109, %s123
      %p125 = scmp.eq.s32.totalorder %s17, 0
      %p126 = por %p124, %p125
      %s127 = ssub.s32 %s18, %s30
      %s128 = ssub.s32 %s19, %s26
      %s129 = sor.u32 %s127, %s128
      %p130 = scmp.eq.s32.totalorder %s129, 0
      %s132 = sadd.s32 %s131, 1
      %s133 = scalar_select %p130, %s131, %s132
      %p136 = pneg %p130
      %p137 = scmp.eq.s32.totalorder %s11, 1
      %p138 = por %p136, %p137
      %p139 = scmp.ne.s32.totalorder %s131, %s134
      %p140 = scmp.eq.s32.totalorder %s11, 0
      %p141 = por %p139, %p140
      %p142 = scmp.ne.s32.totalorder %s131, %s134
      %p143 = scmp.eq.s32.totalorder %s16, 1
      %p144 = por %p142, %p143
      %p145 = scmp.ne.s32.totalorder %s134, %s135
      %p146 = scmp.eq.s32.totalorder %s16, 0
      %p147 = por %p145, %p146
      %p148 = scmp.ne.s32.totalorder %s134, %s135
      %p149 = scmp.eq.s32.totalorder %s17, 1
      %p150 = por %p148, %p149
      %p152 = scmp.ne.s32.totalorder %s135, %s151
      %p153 = scmp.eq.s32.totalorder %s17, 0
      %p154 = por %p152, %p153
      %p155 = scmp.le.s32.totalorder 1, %s11
      %p156 = scmp.lt.s32.totalorder %s11, 3
      %p157 = pnand %p155, %p156
      %p158 = pneg %p157
      // Predicated region
      $region9: #{forward.4} parent=5 // pred_check
        _
      $region10: #{forward.4} parent=5 // pred_check_branch
        %160 = sbr.rel (%p157) target = $region12
      $region11: #{forward.4} parent=5 // pred_region
        %s161 = ssub.s32 %s11, 1
        // Predicated region
        $region13: #{forward.4} parent=11 // pred_check
          %p162 = pneg %p77
        $region14: #{forward.4} parent=11 // pred_check_branch
          %164 = sbr.rel (%p162) target = $region16
        $region15: #{forward.4} parent=11 // pred_region
          %p165 = scmp.lt.s32.totalorder %s21, 3124
          %s166 = scalar_select %p165, %s21, 3124
          %s167 = smul.addr %s166, 8
          %s168 = scalar_lea.vmem %s1, %s167
        $region16: #{forward.4} parent=11 // pred_fallthru
          _
        // Predicated region
        $region17: #{forward.4} parent=11 // pred_check
          %p169 = pneg %p98
        $region18: #{forward.4} parent=11 // pred_check_branch
          %171 = sbr.rel (%p169) target = $region20
        $region19: #{forward.4} parent=11 // pred_region
          _
        $region20: #{forward.4} parent=11 // pred_fallthru
          _
        // Predicated region
        $region21: #{forward.4} parent=11 // pred_check
          %p172 = pneg %p119
        $region22: #{forward.4} parent=11 // pred_check_branch
          %174 = sbr.rel (%p172) target = $region24
        $region23: #{forward.4} parent=11 // pred_region
          %s176 = ssub.s32 16, 16
          %177 = vsyncadd [#allocation3], %s176
          %s179 = sshll.u32 [#allocation2], 4
          %s180 = int_to_ptr.vmem [resolvable:$true] %s179
          %182 = dma.hbm_to_vmem [thread:$0]  %s3, 16, %s180, [#allocation3]
        $region24: #{forward.4} parent=11 // pred_fallthru
          _
      $region12: #{forward.4} parent=5 // pred_fallthru
        _
      %p183 = scmp.lt.s32.totalorder %s11, 2
      // Predicated region
      $region25: #{forward.4} parent=5 // pred_check
        %p184 = pneg %p183
      $region26: #{forward.4} parent=5 // pred_check_branch
        %186 = sbr.rel (%p184) target = $region28
      $region27: #{forward.4} parent=5 // pred_region
        // Predicated region
        $region29: #{forward.4} parent=27 // pred_check
          %p187 = pneg %p45
        $region30: #{forward.4} parent=27 // pred_check_branch
          %189 = sbr.rel (%p187) target = $region32
        $region31: #{forward.4} parent=27 // pred_region
          %p190 = scmp.lt.s32.totalorder %s18, 1
          %s191 = scalar_select %p190, %s18, 1
          %p192 = scmp.lt.s32.totalorder %s19, 0
          %s193 = scalar_select %p192, %s19, 0
          %s194 = sadd.s32 %s193, %s191
          %s195 = smul.addr %s194, 8
          %s196 = scalar_lea.vmem %s0, %s195
        $region32: #{forward.4} parent=27 // pred_fallthru
          _
      $region28: #{forward.4} parent=5 // pred_fallthru
        _
      %p197 = scmp.le.s32.totalorder 1, %s11
      %p198 = scmp.lt.s32.totalorder %s11, 3
      %p199 = pnand %p197, %p198
      %p200 = pneg %p199
      // Predicated region
      $region33: #{forward.4} parent=5 // pred_check
        _
      $region34: #{forward.4} parent=5 // pred_check_branch
        %202 = sbr.rel (%p199) target = $region36
      $region35: #{forward.4} parent=5 // pred_region
        %s203 = ssub.s32 %s11, 1
        // Predicated region
        $region37: #{forward.4} parent=35 // pred_check
          %p204 = pneg %p119
        $region38: #{forward.4} parent=35 // pred_check_branch
          %206 = sbr.rel (%p204) target = $region40
        $region39: #{forward.4} parent=35 // pred_region
          %207 = dma.done [#allocation3], 16
        $region40: #{forward.4} parent=35 // pred_fallthru
          _
        %p208 = scmp.lt.s32.totalorder %s20, 1
        %s209 = scalar_select %p208, %s20, 1
        %p210 = scmp.lt.s32.totalorder %s21, 0
        %s211 = scalar_select %p210, %s21, 0
        %s212 = sadd.s32 %s211, %s209
        %s213 = smul.addr %s212, 8
        %s214 = scalar_lea.vmem %s0, %s213
        %p215 = pneg %p51
        %p216 = pneg %p48
        %p217 = scmp.lt.s32.totalorder %s21, 3124
        %s218 = scalar_select %p217, %s21, 3124
        %s219 = smul.addr %s218, 8
        %s220 = scalar_lea.vmem %s1, %s219
        %p221 = pneg %p77
        %p222 = pneg %p74
        %p223 = pneg %p98
        %p224 = pneg %p95
        %p225 = pneg %p119
        %p226 = pneg %p116
        %p227 = pneg %p147
        %p228 = pneg %p144
        %p229 = scmp.lt.s32.totalorder %s20, 1
        %s230 = scalar_select %p229, %s20, 1
        %p231 = scmp.lt.s32.totalorder %s21, 0
        %s232 = scalar_select %p231, %s21, 0
        %s233 = sadd.s32 %s232, %s230
        %s234 = smul.addr %s233, 8
        %s235 = scalar_lea.vmem %s4, %s234
        %p236 = scmp.lt.s32.totalorder %s20, 1
        %s237 = scalar_select %p236, %s20, 1
        %p238 = scmp.lt.s32.totalorder %s21, 0
        %s239 = scalar_select %p238, %s21, 0
        %s240 = sadd.s32 %s239, %s237
        %s241 = smul.addr %s240, 8
        %s242 = scalar_lea.vmem %s0, %s241
        %p243 = scmp.lt.s32.totalorder %s21, 3124
        %s244 = scalar_select %p243, %s21, 3124
        %s245 = smul.addr %s244, 8
        %s246 = scalar_lea.vmem %s1, %s245
        %p247 = scmp.lt.s32.totalorder %s20, 1
        %s248 = scalar_select %p247, %s20, 1
        %p249 = scmp.lt.s32.totalorder %s21, 0
        %s250 = scalar_select %p249, %s21, 0
        %s251 = sadd.s32 %s250, %s248
        %s252 = smul.addr %s251, 8
        %s253 = scalar_lea.vmem %s4, %s252
        %v255 = vld [vmem:[%s242] sm:$0xff]
        %v256 = vpack.c.bf16 %v255, %v255
        %v257 = vld [vmem:[%s2] sm:$0xf]
        %v258 = vld [vmem:[%s2 + $0x4] sm:$0xf]
        %v259 = vld [vmem:[#allocation2] sm:$0x1]
        %v261 = vlaneseq
        %v262 = vshrl.u32 %v261, 7
        %v263 = vsub.s32 0, %v262
        %v264 = vrot.slane %v259, %v263
        %v268 = vunpack.c.l.b16 %v257
        %v269 = vunpack.c.l.b16 %v258
        %v270 = vpack.c.b16 %v269, %v268
        %vm272 = vcmask 130048
        %v274 = vsel %vm272, %v256, 0
        %276 = vmatprep.subr.bf16.mxu0 0
        %277 = vmatpush1.bf16.msra.mxu0 0
        %278 = vmatprep.subr.bf16.mxu0 0
        %279 = vmatpush1.bf16.msra.mxu0 0
        %280 = vmatprep.subr.bf16.mxu0 0
        %281 = vmatpush1.bf16.msra.mxu0 0
        %282 = vmatprep.subr.bf16.mxu0 0
        %283 = vmatpush1.bf16.msra.mxu0 0
        %284 = vmatprep.subr.bf16.mxu0 0
        %285 = vmatpush1.bf16.msra.mxu0 0
        %286 = vmatprep.subr.bf16.mxu0 0
        %287 = vmatpush1.bf16.msra.mxu0 0
        %288 = vmatprep.subr.bf16.mxu0 0
        %289 = vmatpush1.bf16.msra.mxu0 0
        %290 = vmatprep.subr.bf16.mxu0 0
        %291 = vmatpush1.bf16.msra.mxu0 %v270
        %292 = vmatprep.subr.bf16.mxu0 0
        %293 = vmatpush2.bf16.msra.mxu0 0
        %294 = vmatprep.subr.bf16.mxu0 0
        %295 = vmatpush2.bf16.msra.mxu0 0
        %296 = vmatprep.subr.bf16.mxu0 0
        %297 = vmatpush2.bf16.msra.mxu0 0
        %298 = vmatprep.subr.bf16.mxu0 0
        %299 = vmatpush2.bf16.msra.mxu0 0
        %300 = vmatprep.subr.bf16.mxu0 0
        %301 = vmatpush2.bf16.msra.mxu0 0
        %302 = vmatprep.subr.bf16.mxu0 0
        %303 = vmatpush2.bf16.msra.mxu0 0
        %304 = vmatprep.subr.bf16.mxu0 0
        %305 = vmatpush2.bf16.msra.mxu0 0
        %306 = vmatprep.subr.bf16.mxu0 0
        %307 = vmatpush2.bf16.msra.mxu0 0
        %308 = vmatprep.mubr.bf16.mxu0 0
        %309 = vmatmul.mubr.bf16.gmra.mxu0 %v274
        %v310 = vpop.f32.mrf.mxu0
        %v311 = vadd.f32 %v264, %v310
        %v312 = vpop.f32.mrf.mxu0
        %v313 = vpop.f32.mrf.mxu0
        %v314 = vpop.f32.mrf.mxu0
        %315 = vdwg.mxu0
        %v316 = vld [vmem:[%s246] sm:$0xff]
        %v317 = vadd.f32 %v311, %v316
        %vm318 = vcmask 261120
        %319 = vst.msk [vmem:[%s253] sm:$0xff] %vm318, %v317
        %p320 = scmp.lt.s32.totalorder %s20, 1
        %s321 = scalar_select %p320, %s20, 1
        %p322 = scmp.lt.s32.totalorder %s21, 0
        %s323 = scalar_select %p322, %s21, 0
        %s324 = sadd.s32 %s323, %s321
        %s325 = smul.addr %s324, 8
        %s326 = scalar_lea.vmem %s4, %s325
        // Predicated region
        $region41: #{forward.4} parent=35 // pred_check
          %p327 = pneg %p144
        $region42: #{forward.4} parent=35 // pred_check_branch
          %329 = sbr.rel (%p327) target = $region44
        $region43: #{forward.4} parent=35 // pred_region
          _
        $region44: #{forward.4} parent=35 // pred_fallthru
          _
      $region36: #{forward.4} parent=5 // pred_fallthru
        _
      %p330 = scmp.le.s32.totalorder 2, %s11
      // Predicated region
      $region45: #{forward.4} parent=5 // pred_check
        %p331 = pneg %p330
      $region46: #{forward.4} parent=5 // pred_check_branch
        %333 = sbr.rel (%p331) target = $region48
      $region47: #{forward.4} parent=5 // pred_region
        %s334 = ssub.s32 %s11, 2
        // Predicated region
        $region49: #{forward.4} parent=47 // pred_check
          %p335 = pneg %p150
        $region50: #{forward.4} parent=47 // pred_check_branch
          %337 = sbr.rel (%p335) target = $region52
        $region51: #{forward.4} parent=47 // pred_region
          %p338 = scmp.lt.s32.totalorder %s22, 1
          %s339 = scalar_select %p338, %s22, 1
          %p340 = scmp.lt.s32.totalorder %s23, 0
          %s341 = scalar_select %p340, %s23, 0
          %s342 = sadd.s32 %s341, %s339
          %s343 = smul.addr %s342, 8
          %s344 = scalar_lea.vmem %s4, %s343
        $region52: #{forward.4} parent=47 // pred_fallthru
          _
      $region48: #{forward.4} parent=5 // pred_fallthru
        _
    $region6: #{forward.4} parent=1 // loop_footer
      %s15 = sadd.s32 1, %s11
    $region7: #{forward.4} parent=1 // loop_footer_branch
      %10 = sbr.rel target = $region3
    $region8: #{forward.4} parent=1 // loop_exit
      _
    %345 = vsyncpa [#allocation3], 1
    %s346 = scalar_lea.sflag [#allocation3], 1
    %347 = vsyncpa %s346, 1

// kernel: forward.7
$region0: #{forward.7}
  #allocation0 [shape = 'u32[]', space=smem, size = 0x4, offset = 0x4, fixed_abs, tag = 'smem constant byte address 0x4 - core index']
  #allocation1 [shape = 'u32[144,128]{1,0:T(1,128)}', space=vmem, size = 0x12000, scoped, tag = 'internal scratch']
  %s0 = inlined_call_operand.vmem [shape: f32[2,5,8], index: 0, kind: input, shape index: {}]
  %s1 = inlined_call_operand.vmem [shape: f32[2,8,32], index: 1, kind: input, shape index: {}]
  %s2 = inlined_call_operand.vmem [shape: f32[8,32], index: 2, kind: input, shape index: {}]
  %s3 = inlined_call_operand.vmem [shape: f32[1,32], index: 3, kind: input, shape index: {}]
  %s4 = inlined_call_operand.vmem [shape: f32[32,32], index: 4, kind: input, shape index: {}]
  %s5 = inlined_call_operand.hbm [shape: f32[1,32], index: 5, kind: input, shape index: {}]
  %s6 = inlined_call_operand.vmem [shape: f32[64,32], index: 6, kind: input, shape index: {}]
  %s7 = inlined_call_operand.hbm [shape: f32[1,32], index: 7, kind: input, shape index: {}]
  %s8 = inlined_call_operand.vmem [shape: f32[32,4], index: 8, kind: input, shape index: {}]
  %s9 = inlined_call_operand.hbm [shape: f32[1,4], index: 9, kind: input, shape index: {}]
  %s10 = inlined_call_operand.hbm [shape: f32[2,4], index: 10, kind: output, shape index: {}]
  %s11 = sld [smem:[#allocation0]]
  $region62: #{forward.7} parent=0
    _
  %s13 = ssub.s32 1, %s11
  %s14 = scalar_select 0, %s13, %s11
  $region1: #{forward.7} parent=0
    #allocation2 [shape = 'u8[512]{0}', space=vmem, size = 0x400, scoped, tag = 'input window, operand 5, single buffered']
    #allocation3 [shape = 's32[1]{0}', space=sflag, size = 0x4, scoped, tag = 'scoped memory for forward.7']
    #allocation4 [shape = 's32[1]{0}', space=sflag, size = 0x4, scoped, tag = 'scoped memory for forward.7']
    #allocation5 [shape = 'u8[512]{0}', space=vmem, size = 0x400, scoped, tag = 'input window, operand 7, single buffered']
    #allocation6 [shape = 's32[1]{0}', space=sflag, size = 0x4, scoped, tag = 'scoped memory for forward.7']
    #allocation7 [shape = 'u8[512]{0}', space=vmem, size = 0x400, scoped, tag = 'input window, operand 9, single buffered']
    #allocation8 [shape = 'u8[1024]{0}', space=vmem, size = 0x400, scoped, tag = 'output window, operand 0, single buffered']
    %15 = vsyncpa [#allocation3], 0
    %16 = vsyncpa [#allocation6], 0
    %17 = vsyncpa [#allocation4], 0
    // Predicated region
    $region2: #{forward.7} parent=1 // pred_check
      _
    $region3: #{forward.7} parent=1 // pred_check_branch
      %19 = sbr.rel (0) target = $region5
    $region4: #{forward.7} parent=1 // pred_region
      _
    $region5: #{forward.7} parent=1 // pred_fallthru
      _
    // Predicated region
    $region6: #{forward.7} parent=1 // pred_check
      _
    $region7: #{forward.7} parent=1 // pred_check_branch
      %21 = sbr.rel (0) target = $region9
    $region8: #{forward.7} parent=1 // pred_region
      _
    $region9: #{forward.7} parent=1 // pred_fallthru
      _
    // Predicated region
    $region10: #{forward.7} parent=1 // pred_check
      _
    $region11: #{forward.7} parent=1 // pred_check_branch
      %23 = sbr.rel (0) target = $region13
    $region12: #{forward.7} parent=1 // pred_region
      _
    $region13: #{forward.7} parent=1 // pred_fallthru
      _
    // Predicated region
    $region14: #{forward.7} parent=1 // pred_check
      _
    $region15: #{forward.7} parent=1 // pred_check_branch
      %25 = sbr.rel (0) target = $region17
    $region16: #{forward.7} parent=1 // pred_region
      _
    $region17: #{forward.7} parent=1 // pred_fallthru
      _
    // Predicated region
    $region18: #{forward.7} parent=1 // pred_check
      _
    $region19: #{forward.7} parent=1 // pred_check_branch
      %27 = sbr.rel (0) target = $region21
    $region20: #{forward.7} parent=1 // pred_region
      _
    $region21: #{forward.7} parent=1 // pred_fallthru
      _
    // Predicated region
    $region22: #{forward.7} parent=1 // pred_check
      _
    $region23: #{forward.7} parent=1 // pred_check_branch
      %29 = sbr.rel (0) target = $region25
    $region24: #{forward.7} parent=1 // pred_region
      %s31 = ssub.s32 16, 16
      %32 = vsyncadd [#allocation3], %s31
      %s34 = sshll.u32 [#allocation2], 4
      %s35 = int_to_ptr.vmem [resolvable:$true] %s34
      %37 = dma.hbm_to_vmem [thread:$0]  %s5, 16, %s35, [#allocation3]
    $region25: #{forward.7} parent=1 // pred_fallthru
      _
    // Predicated region
    $region26: #{forward.7} parent=1 // pred_check
      _
    $region27: #{forward.7} parent=1 // pred_check_branch
      %39 = sbr.rel (0) target = $region29
    $region28: #{forward.7} parent=1 // pred_region
      _
    $region29: #{forward.7} parent=1 // pred_fallthru
      _
    // Predicated region
    $region30: #{forward.7} parent=1 // pred_check
      _
    $region31: #{forward.7} parent=1 // pred_check_branch
      %41 = sbr.rel (0) target = $region33
    $region32: #{forward.7} parent=1 // pred_region
      %s43 = ssub.s32 16, 16
      %44 = vsyncadd [#allocation6], %s43
      %s46 = sshll.u32 [#allocation5], 4
      %s47 = int_to_ptr.vmem [resolvable:$true] %s46
      %49 = dma.hbm_to_vmem [thread:$0]  %s7, 16, %s47, [#allocation6]
    $region33: #{forward.7} parent=1 // pred_fallthru
      _
    // Predicated region
    $region34: #{forward.7} parent=1 // pred_check
      _
    $region35: #{forward.7} parent=1 // pred_check_branch
      %51 = sbr.rel (0) target = $region37
    $region36: #{forward.7} parent=1 // pred_region
      _
    $region37: #{forward.7} parent=1 // pred_fallthru
      _
    // Predicated region
    $region38: #{forward.7} parent=1 // pred_check
      _
    $region39: #{forward.7} parent=1 // pred_check_branch
      %53 = sbr.rel (0) target = $region41
    $region40: #{forward.7} parent=1 // pred_region
      %s55 = ssub.s32 16, 16
      %56 = vsyncadd [#allocation6], %s55
      %s58 = sshll.u32 [#allocation7], 4
      %s59 = int_to_ptr.vmem [resolvable:$true] %s58
      %61 = dma.hbm_to_vmem [thread:$0]  %s9, 16, %s59, [#allocation6]
    $region41: #{forward.7} parent=1 // pred_fallthru
      _
    // Predicated region
    $region42: #{forward.7} parent=1 // pred_check
      _
    $region43: #{forward.7} parent=1 // pred_check_branch
      %63 = sbr.rel (0) target = $region45
    $region44: #{forward.7} parent=1 // pred_region
      %64 = dma.done [#allocation3], 16
    $region45: #{forward.7} parent=1 // pred_fallthru
      _
    // Predicated region
    $region46: #{forward.7} parent=1 // pred_check
      _
    $region47: #{forward.7} parent=1 // pred_check_branch
      %66 = sbr.rel (0) target = $region49
    $region48: #{forward.7} parent=1 // pred_region
      %67 = dma.done [#allocation6], 16
    $region49: #{forward.7} parent=1 // pred_fallthru
      _
    // Predicated region
    $region50: #{forward.7} parent=1 // pred_check
      _
    $region51: #{forward.7} parent=1 // pred_check_branch
      %69 = sbr.rel (0) target = $region53
    $region52: #{forward.7} parent=1 // pred_region
      %70 = dma.done [#allocation6], 16
    $region53: #{forward.7} parent=1 // pred_fallthru
      _
    %v71 = vld [vmem:[%s0] sm:$0x1f]
    %v72 = vld [vmem:[%s0 + $0x8] sm:$0x1f]
    %vm73 = vcmask 61440
    %v74 = vsel %vm73, %v71, 0.0
    %v75 = vrot.slane %v74, 4
    %v76 = vadd.f32 %v74, %v75
    %v77 = vrot.slane %v76, 2
    %v78 = vadd.f32 %v76, %v77
    %v79 = vrot.slane %v78, 1
    %v80 = vadd.f32 %v78, %v79
    %v81 = vsel %vm73, %v72, 0.0
    %v82 = vrot.slane %v81, 4
    %v83 = vadd.f32 %v81, %v82
    %v84 = vrot.slane %v83, 2
    %v85 = vadd.f32 %v83, %v84
    %v86 = vrot.slane %v85, 1
    %v87 = vadd.f32 %v85, %v86
    %v88 = vrcp.pop 5.0
    %v89 = vmul.f32 %v80, %v88
    %v90 = vmul.f32 %v87, %v88
    %v91 = vld [vmem:[%s2] sm:$0xff]
    %v92 = vld [vmem:[%s3] sm:$0x1]
    %v94 = vlaneseq
    %v95 = vshrl.u32 %v94, 7
    %v96 = vsub.s32 0, %v95
    %v97 = vrot.slane %v92, %v96
    %vm101 = vcmask 1041409
    %v102 = vsel %vm101, %v90, %v89
    %vm103 = vcmask 64512
    %v104 = vsel %vm103, %v102, 0
    %106 = vmatprep.subr.mxu0 0.0
    %107 = vmatpush1.msra.mxu0 0.0
    %108 = vmatprep.subr.mxu0 0.0
    %109 = vmatpush1.msra.mxu0 0.0
    %110 = vmatprep.subr.mxu0 0.0
    %111 = vmatpush1.msra.mxu0 0.0
    %112 = vmatprep.subr.mxu0 0.0
    %113 = vmatpush1.msra.mxu0 0.0
    %114 = vmatprep.subr.mxu0 0.0
    %115 = vmatpush1.msra.mxu0 0.0
    %116 = vmatprep.subr.mxu0 0.0
    %117 = vmatpush1.msra.mxu0 0.0
    %118 = vmatprep.subr.mxu0 0.0
    %119 = vmatpush1.msra.mxu0 0.0
    %120 = vmatprep.subr.mxu0 0.0
    %121 = vmatpush1.msra.mxu0 0.0
    %122 = vmatprep.subr.mxu0 0.0
    %123 = vmatpush1.msra.mxu0 0.0
    %124 = vmatprep.subr.mxu0 0.0
    %125 = vmatpush1.msra.mxu0 0.0
    %126 = vmatprep.subr.mxu0 0.0
    %127 = vmatpush1.msra.mxu0 0.0
    %128 = vmatprep.subr.mxu0 0.0
    %129 = vmatpush1.msra.mxu0 0.0
    %130 = vmatprep.subr.mxu0 0.0
    %131 = vmatpush1.msra.mxu0 0.0
    %132 = vmatprep.subr.mxu0 0.0
    %133 = vmatpush1.msra.mxu0 0.0
    %134 = vmatprep.subr.mxu0 0.0
    %135 = vmatpush1.msra.mxu0 0.0
    %136 = vmatprep.subr.mxu0 0.0
    %137 = vmatpush1.msra.mxu0 %v91
    %138 = vmatprep.subr.mxu0 0.0
    %139 = vmatpush2.msra.mxu0 0.0
    %140 = vmatprep.subr.mxu0 0.0
    %141 = vmatpush2.msra.mxu0 0.0
    %142 = vmatprep.subr.mxu0 0.0
    %143 = vmatpush2.msra.mxu0 0.0
    %144 = vmatprep.subr.mxu0 0.0
    %145 = vmatpush2.msra.mxu0 0.0
    %146 = vmatprep.subr.mxu0 0.0
    %147 = vmatpush2.msra.mxu0 0.0
    %148 = vmatprep.subr.mxu0 0.0
    %149 = vmatpush2.msra.mxu0 0.0
    %150 = vmatprep.subr.mxu0 0.0
    %151 = vmatpush2.msra.mxu0 0.0
    %152 = vmatprep.subr.mxu0 0.0
    %153 = vmatpush2.msra.mxu0 0.0
    %154 = vmatprep.subr.mxu0 0.0
    %155 = vmatpush2.msra.mxu0 0.0
    %156 = vmatprep.subr.mxu0 0.0
    %157 = vmatpush2.msra.mxu0 0.0
    %158 = vmatprep.subr.mxu0 0.0
    %159 = vmatpush2.msra.mxu0 0.0
    %160 = vmatprep.subr.mxu0 0.0
    %161 = vmatpush2.msra.mxu0 0.0
    %162 = vmatprep.subr.mxu0 0.0
    %163 = vmatpush2.msra.mxu0 0.0
    %164 = vmatprep.subr.mxu0 0.0
    %165 = vmatpush2.msra.mxu0 0.0
    %166 = vmatprep.subr.mxu0 0.0
    %167 = vmatpush2.msra.mxu0 0.0
    %168 = vmatprep.subr.mxu0 0.0
    %169 = vmatpush2.msra.mxu0 0.0
    %170 = vmatprep.mubr.f32.mxu0 0.0
    %171 = vmatmul.mubr.f32.gmra.mxu0 %v104
    %v172 = vpop.f32.mrf.mxu0
    %v173 = vadd.f32 %v97, %v172
    %v174 = vpop.f32.mrf.mxu0
    %175 = vdwg.mxu0
    %v176 = vmax.f32 %v173, 0.0
    %v177 = vld [vmem:[%s4] sm:$0xff]
    %v178 = vld [vmem:[%s4 + $0x8] sm:$0xff]
    %v179 = vld [vmem:[%s4 + $0x10] sm:$0xff]
    %v180 = vld [vmem:[%s4 + $0x18] sm:$0xff]
    %v181 = vld [vmem:[#allocation2] sm:$0x1]
    %v183 = vlaneseq
    %v184 = vshrl.u32 %v183, 7
    %v185 = vsub.s32 0, %v184
    %v186 = vrot.slane %v181, %v185
    %vm188 = vcmask 261120
    %v190 = vsel %vm188, %v176, 0
    %192 = vmatprep.subr.mxu0 0.0
    %193 = vmatpush1.msra.mxu0 0.0
    %194 = vmatprep.subr.mxu0 0.0
    %195 = vmatpush1.msra.mxu0 0.0
    %196 = vmatprep.subr.mxu0 0.0
    %197 = vmatpush1.msra.mxu0 0.0
    %198 = vmatprep.subr.mxu0 0.0
    %199 = vmatpush1.msra.mxu0 0.0
    %200 = vmatprep.subr.mxu0 0.0
    %201 = vmatpush1.msra.mxu0 0.0
    %202 = vmatprep.subr.mxu0 0.0
    %203 = vmatpush1.msra.mxu0 0.0
    %204 = vmatprep.subr.mxu0 0.0
    %205 = vmatpush1.msra.mxu0 0.0
    %206 = vmatprep.subr.mxu0 0.0
    %207 = vmatpush1.msra.mxu0 0.0
    %208 = vmatprep.subr.mxu0 0.0
    %209 = vmatpush1.msra.mxu0 0.0
    %210 = vmatprep.subr.mxu0 0.0
    %211 = vmatpush1.msra.mxu0 0.0
    %212 = vmatprep.subr.mxu0 0.0
    %213 = vmatpush1.msra.mxu0 0.0
    %214 = vmatprep.subr.mxu0 0.0
    %215 = vmatpush1.msra.mxu0 0.0
    %216 = vmatprep.subr.mxu0 0.0
    %217 = vmatpush1.msra.mxu0 %v180
    %218 = vmatprep.subr.mxu0 0.0
    %219 = vmatpush1.msra.mxu0 %v179
    %220 = vmatprep.subr.mxu0 0.0
    %221 = vmatpush1.msra.mxu0 %v178
    %222 = vmatprep.subr.mxu0 0.0
    %223 = vmatpush1.msra.mxu0 %v177
    %224 = vmatprep.subr.mxu0 0.0
    %225 = vmatpush2.msra.mxu0 0.0
    %226 = vmatprep.subr.mxu0 0.0
    %227 = vmatpush2.msra.mxu0 0.0
    %228 = vmatprep.subr.mxu0 0.0
    %229 = vmatpush2.msra.mxu0 0.0
    %230 = vmatprep.subr.mxu0 0.0
    %231 = vmatpush2.msra.mxu0 0.0
    %232 = vmatprep.subr.mxu0 0.0
    %233 = vmatpush2.msra.mxu0 0.0
    %234 = vmatprep.subr.mxu0 0.0
    %235 = vmatpush2.msra.mxu0 0.0
    %236 = vmatprep.subr.mxu0 0.0
    %237 = vmatpush2.msra.mxu0 0.0
    %238 = vmatprep.subr.mxu0 0.0
    %239 = vmatpush2.msra.mxu0 0.0
    %240 = vmatprep.subr.mxu0 0.0
    %241 = vmatpush2.msra.mxu0 0.0
    %242 = vmatprep.subr.mxu0 0.0
    %243 = vmatpush2.msra.mxu0 0.0
    %244 = vmatprep.subr.mxu0 0.0
    %245 = vmatpush2.msra.mxu0 0.0
    %246 = vmatprep.subr.mxu0 0.0
    %247 = vmatpush2.msra.mxu0 0.0
    %248 = vmatprep.subr.mxu0 0.0
    %249 = vmatpush2.msra.mxu0 0.0
    %250 = vmatprep.subr.mxu0 0.0
    %251 = vmatpush2.msra.mxu0 0.0
    %252 = vmatprep.subr.mxu0 0.0
    %253 = vmatpush2.msra.mxu0 0.0
    %254 = vmatprep.subr.mxu0 0.0
    %255 = vmatpush2.msra.mxu0 0.0
    %256 = vmatprep.mubr.f32.mxu0 0.0
    %257 = vmatmul.mubr.f32.gmra.mxu0 %v190
    %v258 = vpop.f32.mrf.mxu0
    %v259 = vadd.f32 %v186, %v258
    %v260 = vpop.f32.mrf.mxu0
    %261 = vdwg.mxu0
    %v262 = vld [vmem:[%s1] sm:$0xff]
    %v263 = vld [vmem:[%s1 + $0x8] sm:$0xff]
    %v264 = vsel %vm188, %v262, 0.0
    %v265 = vrot.slane %v264, 4
    %v266 = vadd.f32 %v264, %v265
    %v267 = vrot.slane %v266, 2
    %v268 = vadd.f32 %v266, %v267
    %v269 = vrot.slane %v268, 1
    %v270 = vadd.f32 %v268, %v269
    %v271 = vsel %vm188, %v263, 0.0
    %v272 = vrot.slane %v271, 4
    %v273 = vadd.f32 %v271, %v272
    %v274 = vrot.slane %v273, 2
    %v275 = vadd.f32 %v273, %v274
    %v276 = vrot.slane %v275, 1
    %v277 = vadd.f32 %v275, %v276
    %v278 = vrcp.pop 8.0
    %v279 = vmul.f32 %v270, %v278
    %v280 = vmul.f32 %v277, %v278
    %v281 = vld [vmem:[%s6] sm:$0xff]
    %v282 = vld [vmem:[%s6 + $0x8] sm:$0xff]
    %v283 = vld [vmem:[%s6 + $0x10] sm:$0xff]
    %v284 = vld [vmem:[%s6 + $0x18] sm:$0xff]
    %v285 = vld [vmem:[%s6 + $0x20] sm:$0xff]
    %v286 = vld [vmem:[%s6 + $0x28] sm:$0xff]
    %v287 = vld [vmem:[%s6 + $0x30] sm:$0xff]
    %v288 = vld [vmem:[%s6 + $0x38] sm:$0xff]
    %v291 = vsel %vm101, %v280, %v279
    %v292 = vsel %vm188, %v291, 0
    %294 = vmatprep.subr.mxu0 0.0
    %295 = vmatpush1.msra.mxu0 0.0
    %296 = vmatprep.subr.mxu0 0.0
    %297 = vmatpush1.msra.mxu0 0.0
    %298 = vmatprep.subr.mxu0 0.0
    %299 = vmatpush1.msra.mxu0 0.0
    %300 = vmatprep.subr.mxu0 0.0
    %301 = vmatpush1.msra.mxu0 0.0
    %302 = vmatprep.subr.mxu0 0.0
    %303 = vmatpush1.msra.mxu0 0.0
    %304 = vmatprep.subr.mxu0 0.0
    %305 = vmatpush1.msra.mxu0 0.0
    %306 = vmatprep.subr.mxu0 0.0
    %307 = vmatpush1.msra.mxu0 0.0
    %308 = vmatprep.subr.mxu0 0.0
    %309 = vmatpush1.msra.mxu0 0.0
    %310 = vmatprep.subr.mxu0 0.0
    %311 = vmatpush1.msra.mxu0 0.0
    %312 = vmatprep.subr.mxu0 0.0
    %313 = vmatpush1.msra.mxu0 0.0
    %314 = vmatprep.subr.mxu0 0.0
    %315 = vmatpush1.msra.mxu0 0.0
    %316 = vmatprep.subr.mxu0 0.0
    %317 = vmatpush1.msra.mxu0 0.0
    %318 = vmatprep.subr.mxu0 0.0
    %319 = vmatpush1.msra.mxu0 %v288
    %320 = vmatprep.subr.mxu0 0.0
    %321 = vmatpush1.msra.mxu0 %v287
    %322 = vmatprep.subr.mxu0 0.0
    %323 = vmatpush1.msra.mxu0 %v286
    %324 = vmatprep.subr.mxu0 0.0
    %325 = vmatpush1.msra.mxu0 %v285
    %326 = vmatprep.subr.mxu0 0.0
    %327 = vmatpush2.msra.mxu0 0.0
    %328 = vmatprep.subr.mxu0 0.0
    %329 = vmatpush2.msra.mxu0 0.0
    %330 = vmatprep.subr.mxu0 0.0
    %331 = vmatpush2.msra.mxu0 0.0
    %332 = vmatprep.subr.mxu0 0.0
    %333 = vmatpush2.msra.mxu0 0.0
    %334 = vmatprep.subr.mxu0 0.0
    %335 = vmatpush2.msra.mxu0 0.0
    %336 = vmatprep.subr.mxu0 0.0
    %337 = vmatpush2.msra.mxu0 0.0
    %338 = vmatprep.subr.mxu0 0.0
    %339 = vmatpush2.msra.mxu0 0.0
    %340 = vmatprep.subr.mxu0 0.0
    %341 = vmatpush2.msra.mxu0 0.0
    %342 = vmatprep.subr.mxu0 0.0
    %343 = vmatpush2.msra.mxu0 0.0
    %344 = vmatprep.subr.mxu0 0.0
    %345 = vmatpush2.msra.mxu0 0.0
    %346 = vmatprep.subr.mxu0 0.0
    %347 = vmatpush2.msra.mxu0 0.0
    %348 = vmatprep.subr.mxu0 0.0
    %349 = vmatpush2.msra.mxu0 0.0
    %350 = vmatprep.subr.mxu0 0.0
    %351 = vmatpush2.msra.mxu0 0.0
    %352 = vmatprep.subr.mxu0 0.0
    %353 = vmatpush2.msra.mxu0 0.0
    %354 = vmatprep.subr.mxu0 0.0
    %355 = vmatpush2.msra.mxu0 0.0
    %356 = vmatprep.subr.mxu0 0.0
    %357 = vmatpush2.msra.mxu0 0.0
    %358 = vmatprep.mubr.f32.mxu0 0.0
    %359 = vmatmul.mubr.f32.gmra.mxu0 %v292
    %v360 = vpop.f32.mrf.mxu0
    %v361 = vadd.f32 0.0, %v360
    %v362 = vpop.f32.mrf.mxu0
    %363 = vdwg.mxu0
    %v365 = vsel %vm188, %v259, 0
    %367 = vmatprep.subr.mxu0 0.0
    %368 = vmatpush1.msra.mxu0 0.0
    %369 = vmatprep.subr.mxu0 0.0
    %370 = vmatpush1.msra.mxu0 0.0
    %371 = vmatprep.subr.mxu0 0.0
    %372 = vmatpush1.msra.mxu0 0.0
    %373 = vmatprep.subr.mxu0 0.0
    %374 = vmatpush1.msra.mxu0 0.0
    %375 = vmatprep.subr.mxu0 0.0
    %376 = vmatpush1.msra.mxu0 0.0
    %377 = vmatprep.subr.mxu0 0.0
    %378 = vmatpush1.msra.mxu0 0.0
    %379 = vmatprep.subr.mxu0 0.0
    %380 = vmatpush1.msra.mxu0 0.0
    %381 = vmatprep.subr.mxu0 0.0
    %382 = vmatpush1.msra.mxu0 0.0
    %383 = vmatprep.subr.mxu0 0.0
    %384 = vmatpush1.msra.mxu0 0.0
    %385 = vmatprep.subr.mxu0 0.0
    %386 = vmatpush1.msra.mxu0 0.0
    %387 = vmatprep.subr.mxu0 0.0
    %388 = vmatpush1.msra.mxu0 0.0
    %389 = vmatprep.subr.mxu0 0.0
    %390 = vmatpush1.msra.mxu0 0.0
    %391 = vmatprep.subr.mxu0 0.0
    %392 = vmatpush1.msra.mxu0 %v284
    %393 = vmatprep.subr.mxu0 0.0
    %394 = vmatpush1.msra.mxu0 %v283
    %395 = vmatprep.subr.mxu0 0.0
    %396 = vmatpush1.msra.mxu0 %v282
    %397 = vmatprep.subr.mxu0 0.0
    %398 = vmatpush1.msra.mxu0 %v281
    %399 = vmatprep.subr.mxu0 0.0
    %400 = vmatpush2.msra.mxu0 0.0
    %401 = vmatprep.subr.mxu0 0.0
    %402 = vmatpush2.msra.mxu0 0.0
    %403 = vmatprep.subr.mxu0 0.0
    %404 = vmatpush2.msra.mxu0 0.0
    %405 = vmatprep.subr.mxu0 0.0
    %406 = vmatpush2.msra.mxu0 0.0
    %407 = vmatprep.subr.mxu0 0.0
    %408 = vmatpush2.msra.mxu0 0.0
    %409 = vmatprep.subr.mxu0 0.0
    %410 = vmatpush2.msra.mxu0 0.0
    %411 = vmatprep.subr.mxu0 0.0
    %412 = vmatpush2.msra.mxu0 0.0
    %413 = vmatprep.subr.mxu0 0.0
    %414 = vmatpush2.msra.mxu0 0.0
    %415 = vmatprep.subr.mxu0 0.0
    %416 = vmatpush2.msra.mxu0 0.0
    %417 = vmatprep.subr.mxu0 0.0
    %418 = vmatpush2.msra.mxu0 0.0
    %419 = vmatprep.subr.mxu0 0.0
    %420 = vmatpush2.msra.mxu0 0.0
    %421 = vmatprep.subr.mxu0 0.0
    %422 = vmatpush2.msra.mxu0 0.0
    %423 = vmatprep.subr.mxu0 0.0
    %424 = vmatpush2.msra.mxu0 0.0
    %425 = vmatprep.subr.mxu0 0.0
    %426 = vmatpush2.msra.mxu0 0.0
    %427 = vmatprep.subr.mxu0 0.0
    %428 = vmatpush2.msra.mxu0 0.0
    %429 = vmatprep.subr.mxu0 0.0
    %430 = vmatpush2.msra.mxu0 0.0
    %431 = vmatprep.mubr.f32.mxu0 0.0
    %432 = vmatmul.mubr.f32.gmra.mxu0 %v365
    %v433 = vpop.f32.mrf.mxu0
    %v434 = vadd.f32 %v361, %v433
    %v435 = vpop.f32.mrf.mxu0
    %436 = vdwg.mxu0
    %v437 = vld [vmem:[#allocation5] sm:$0x1]
    %v439 = vlaneseq
    %v440 = vshrl.u32 %v439, 7
    %v441 = vsub.s32 0, %v440
    %v442 = vrot.slane %v437, %v441
    %v444 = vadd.f32 %v434, %v442
    %vm445 = vcmp.ge.f32.partialorder %v444, 0.0
    %v446 = vmul.f32 %v444, 0.01
    %v447 = vsel %vm445, %v444, %v446
    %v448 = vld [vmem:[%s8] sm:$0xff]
    %v449 = vld [vmem:[%s8 + $0x8] sm:$0xff]
    %v450 = vld [vmem:[%s8 + $0x10] sm:$0xff]
    %v451 = vld [vmem:[%s8 + $0x18] sm:$0xff]
    %v452 = vld [vmem:[#allocation7] sm:$0x1]
    %v454 = vlaneseq
    %v455 = vshrl.u32 %v454, 7
    %v456 = vsub.s32 0, %v455
    %v457 = vrot.slane %v452, %v456
    %v460 = vsel %vm188, %v447, 0
    %462 = vmatprep.subr.mxu0 0.0
    %463 = vmatpush1.msra.mxu0 0.0
    %464 = vmatprep.subr.mxu0 0.0
    %465 = vmatpush1.msra.mxu0 0.0
    %466 = vmatprep.subr.mxu0 0.0
    %467 = vmatpush1.msra.mxu0 0.0
    %468 = vmatprep.subr.mxu0 0.0
    %469 = vmatpush1.msra.mxu0 0.0
    %470 = vmatprep.subr.mxu0 0.0
    %471 = vmatpush1.msra.mxu0 0.0
    %472 = vmatprep.subr.mxu0 0.0
    %473 = vmatpush1.msra.mxu0 0.0
    %474 = vmatprep.subr.mxu0 0.0
    %475 = vmatpush1.msra.mxu0 0.0
    %476 = vmatprep.subr.mxu0 0.0
    %477 = vmatpush1.msra.mxu0 0.0
    %478 = vmatprep.subr.mxu0 0.0
    %479 = vmatpush1.msra.mxu0 0.0
    %480 = vmatprep.subr.mxu0 0.0
    %481 = vmatpush1.msra.mxu0 0.0
    %482 = vmatprep.subr.mxu0 0.0
    %483 = vmatpush1.msra.mxu0 0.0
    %484 = vmatprep.subr.mxu0 0.0
    %485 = vmatpush1.msra.mxu0 0.0
    %486 = vmatprep.subr.mxu0 0.0
    %487 = vmatpush1.msra.mxu0 %v451
    %488 = vmatprep.subr.mxu0 0.0
    %489 = vmatpush1.msra.mxu0 %v450
    %490 = vmatprep.subr.mxu0 0.0
    %491 = vmatpush1.msra.mxu0 %v449
    %492 = vmatprep.subr.mxu0 0.0
    %493 = vmatpush1.msra.mxu0 %v448
    %494 = vmatprep.subr.mxu0 0.0
    %495 = vmatpush2.msra.mxu0 0.0
    %496 = vmatprep.subr.mxu0 0.0
    %497 = vmatpush2.msra.mxu0 0.0
    %498 = vmatprep.subr.mxu0 0.0
    %499 = vmatpush2.msra.mxu0 0.0
    %500 = vmatprep.subr.mxu0 0.0
    %501 = vmatpush2.msra.mxu0 0.0
    %502 = vmatprep.subr.mxu0 0.0
    %503 = vmatpush2.msra.mxu0 0.0
    %504 = vmatprep.subr.mxu0 0.0
    %505 = vmatpush2.msra.mxu0 0.0
    %506 = vmatprep.subr.mxu0 0.0
    %507 = vmatpush2.msra.mxu0 0.0
    %508 = vmatprep.subr.mxu0 0.0
    %509 = vmatpush2.msra.mxu0 0.0
    %510 = vmatprep.subr.mxu0 0.0
    %511 = vmatpush2.msra.mxu0 0.0
    %512 = vmatprep.subr.mxu0 0.0
    %513 = vmatpush2.msra.mxu0 0.0
    %514 = vmatprep.subr.mxu0 0.0
    %515 = vmatpush2.msra.mxu0 0.0
    %516 = vmatprep.subr.mxu0 0.0
    %517 = vmatpush2.msra.mxu0 0.0
    %518 = vmatprep.subr.mxu0 0.0
    %519 = vmatpush2.msra.mxu0 0.0
    %520 = vmatprep.subr.mxu0 0.0
    %521 = vmatpush2.msra.mxu0 0.0
    %522 = vmatprep.subr.mxu0 0.0
    %523 = vmatpush2.msra.mxu0 0.0
    %524 = vmatprep.subr.mxu0 0.0
    %525 = vmatpush2.msra.mxu0 0.0
    %526 = vmatprep.mubr.f32.mxu0 0.0
    %527 = vmatmul.mubr.f32.gmra.mxu0 %v460
    %v528 = vpop.f32.mrf.mxu0
    %v529 = vadd.f32 %v457, %v528
    %v530 = vpop.f32.mrf.mxu0
    %531 = vdwg.mxu0
    %v532 = vsub.f32 0.0, %v529
    %v533 = vmul.f32 %v532, 1.442695
    %v534 = vpow.pop %v533
    %v535 = vadd.f32 %v534, 1.0
    %v536 = vrcp.pop %v535
    %v537 = vmul.f32 1.0, %v536
    %vm538 = vcmask 25600
    %539 = vst.msk [vmem:[#allocation8] sm:$0x3] %vm538, %v537
    // Predicated region
    $region54: #{forward.7} parent=1 // pred_check
      _
    $region55: #{forward.7} parent=1 // pred_check_branch
      %541 = sbr.rel (0) target = $region57
    $region56: #{forward.7} parent=1 // pred_region
      %s543 = ssub.s32 32, 32
      %544 = vsyncadd [#allocation4], %s543
      %s546 = sshll.u32 [#allocation8], 4
      %s547 = int_to_ptr.vmem [resolvable:$true] %s546
      %549 = dma.vmem_to_hbm [thread:$0]  %s547, 32, %s10, [#allocation4]
    $region57: #{forward.7} parent=1 // pred_fallthru
      _
    // Predicated region
    $region58: #{forward.7} parent=1 // pred_check
      _
    $region59: #{forward.7} parent=1 // pred_check_branch
      %551 = sbr.rel (0) target = $region61
    $region60: #{forward.7} parent=1 // pred_region
      %552 = dma.done [#allocation4], 32
    $region61: #{forward.7} parent=1 // pred_fallthru
      _
    %553 = vsyncpa [#allocation3], 1
    %554 = vsyncpa [#allocation6], 1
    %555 = vsyncpa [#allocation4], 1

// kernel: forward.5
$region0: #{forward.5}
  #allocation0 [shape = 'u32[]', space=smem, size = 0x4, offset = 0x4, fixed_abs, tag = 'smem constant byte address 0x4 - core index']
  #allocation1 [shape = 'u32[144,128]{1,0:T(1,128)}', space=vmem, size = 0x12000, scoped, tag = 'internal scratch']
  %s0 = inlined_call_operand.vmem [shape: f32[2,8,32], index: 0, kind: input, shape index: {}, may-alias: {0,1}]
  %s1 = inlined_call_operand.vmem [shape: f32[2,8,32], index: 1, kind: input, shape index: {}, may-alias: {0,1}]
  %s2 = inlined_call_operand.vmem [shape: bf16[32,32], index: 2, kind: input, shape index: {}]
  %s3 = inlined_call_operand.vmem [shape: f32[1,32], index: 3, kind: input, shape index: {}]
  %s4 = inlined_call_operand.vmem [shape: bf16[32,32], index: 4, kind: input, shape index: {}]
  %s5 = inlined_call_operand.vmem [shape: f32[1,32], index: 5, kind: input, shape index: {}]
  %s6 = inlined_call_operand.vmem [shape: bf16[32,32], index: 6, kind: input, shape index: {}]
  %s7 = inlined_call_operand.vmem [shape: f32[1,32], index: 7, kind: input, shape index: {}]
  %s8 = inlined_call_operand.vmem [shape: bf16[32,32], index: 8, kind: input, shape index: {}]
  %s9 = inlined_call_operand.vmem [shape: f32[1,32], index: 9, kind: input, shape index: {}]
  %s10 = inlined_call_operand.vmem [shape: bf16[32,2048], index: 10, kind: input, shape index: {}]
  %s11 = inlined_call_operand.vmem [shape: f32[1,2048], index: 11, kind: input, shape index: {}]
  %s12 = inlined_call_operand.vmem [shape: bf16[32,2048], index: 12, kind: input, shape index: {}]
  %s13 = inlined_call_operand.vmem [shape: f32[1,32], index: 13, kind: input, shape index: {}]
  %s14 = inlined_call_operand.vmem [shape: f32[1,32], index: 14, kind: input, shape index: {}]
  %s15 = inlined_call_operand.vmem [shape: f32[1,32], index: 15, kind: input, shape index: {}]
  %s16 = inlined_call_operand.vmem [shape: f32[1,32], index: 16, kind: input, shape index: {}]
  %s17 = inlined_call_operand.vmem [shape: f32[1,32], index: 17, kind: input, shape index: {}]
  %s18 = inlined_call_operand.vmem [shape: f32[2,8,32], index: 18, kind: output, shape index: {}]
  %s19 = sld [smem:[#allocation0]]
  $region105: #{forward.5} parent=0
    _
  %s21 = ssub.s32 1, %s19
  %s22 = scalar_select 0, %s21, %s19
  loop: start=0, step=1, limit=4
  $region2: #{forward.5} parent=0 // loop_pre_header
    _
  $region3: #{forward.5} parent=0 // loop_header
    %s24 = sphi 0, %s28
    %p25 = scmp.ge.s32.totalorder %s24, 4
    %s31 = sphi 0, %s43
    %s32 = sphi 0, %s39
    %s33 = sphi 0, %s31
    %s34 = sphi 0, %s32
    %s35 = sphi 0, %s33
    %s36 = sphi 0, %s34
    %s48 = sphi 0, %s50
    %s51 = sphi 0, %s48
    %s52 = sphi 0, %s51
    %s68 = sphi 0, %s52
    %s74 = sphi 0, %s76
    %s77 = sphi 0, %s74
    %s78 = sphi 0, %s77
    %s94 = sphi 0, %s78
    %s98 = sphi 0, %s98
    %s100 = sphi 0, %s98
    %s101 = sphi 0, %s100
    %s115 = sphi 0, %s101
    %s119 = sphi 0, %s119
    %s121 = sphi 0, %s119
    %s122 = sphi 0, %s121
    %s136 = sphi 0, %s122
    %s140 = sphi 0, %s140
    %s142 = sphi 0, %s140
    %s143 = sphi 0, %s142
    %s157 = sphi 0, %s143
    %s161 = sphi 0, %s161
    %s163 = sphi 0, %s161
    %s164 = sphi 0, %s163
    %s178 = sphi 0, %s164
    %s182 = sphi 0, %s182
    %s184 = sphi 0, %s182
    %s185 = sphi 0, %s184
    %s199 = sphi 0, %s185
    %s203 = sphi 0, %s203
    %s205 = sphi 0, %s203
    %s206 = sphi 0, %s205
    %s220 = sphi 0, %s206
    %s224 = sphi 0, %s224
    %s226 = sphi 0, %s224
    %s227 = sphi 0, %s226
    %s241 = sphi 0, %s227
    %s245 = sphi 0, %s245
    %s247 = sphi 0, %s245
    %s248 = sphi 0, %s247
    %s262 = sphi 0, %s248
    %s266 = sphi 0, %s266
    %s268 = sphi 0, %s266
    %s269 = sphi 0, %s268
    %s283 = sphi 0, %s269
    %s287 = sphi 0, %s287
    %s289 = sphi 0, %s287
    %s290 = sphi 0, %s289
    %s304 = sphi 0, %s290
    %s308 = sphi 0, %s308
    %s310 = sphi 0, %s308
    %s311 = sphi 0, %s310
    %s325 = sphi 0, %s311
    %s329 = sphi 0, %s329
    %s331 = sphi 0, %s329
    %s332 = sphi 0, %s331
    %s346 = sphi 0, %s332
    %s350 = sphi 0, %s350
    %s352 = sphi 0, %s350
    %s353 = sphi 0, %s352
    %s367 = sphi 0, %s353
    %s371 = sphi 0, %s371
    %s373 = sphi 0, %s371
    %s374 = sphi 0, %s373
    %s388 = sphi 0, %s374
    %s392 = sphi 0, %s392
    %s394 = sphi 0, %s392
    %s395 = sphi 0, %s394
    %s409 = sphi 0, %s395
    %s413 = sphi 0, %s413
    %s415 = sphi 0, %s413
    %s416 = sphi 0, %s415
    %s430 = sphi 0, %s416
    %s438 = sphi 0, %s440
    %s441 = sphi 0, %s438
    %s442 = sphi 0, %s441
    %s458 = sphi 0, %s442
  $region4: #{forward.5} parent=0 // loop_header_branch
    %27 = sbr.rel (%p25) target = $region8
  $region5: #{forward.5} parent=0 // loop_body
    %s29 = ssub.s32 %s24, 1
    %s30 = ssub.s32 %s24, 2
    %s37 = sadd.s32 1, %s32
    %p38 = scmp.ge.s32.totalorder %s37, 1
    %s39 = scalar_select %p38, 0, %s37
    %s40 = sadd.s32 1, %s31
    %s41 = scalar_select %p38, %s40, %s31
    %p42 = scmp.ge.s32.totalorder %s41, 2
    %s43 = scalar_select %p42, 0, %s41
    %s44 = ssub.s32 %s31, %s43
    %s45 = ssub.s32 %s32, %s39
    %s46 = sor.u32 %s44, %s45
    %p47 = scmp.eq.s32.totalorder %s46, 0
    %s49 = sadd.s32 %s48, 1
    %s50 = scalar_select %p47, %s48, %s49
    %p53 = pneg %p47
    %p54 = scmp.eq.s32.totalorder %s24, 1
    %p55 = por %p53, %p54
    %p56 = scmp.ne.s32.totalorder %s48, %s51
    %p57 = scmp.eq.s32.totalorder %s24, 0
    %p58 = por %p56, %p57
    %p59 = scmp.ne.s32.totalorder %s48, %s51
    %p60 = scmp.eq.s32.totalorder %s29, 1
    %p61 = por %p59, %p60
    %p62 = scmp.ne.s32.totalorder %s51, %s52
    %p63 = scmp.eq.s32.totalorder %s29, 0
    %p64 = por %p62, %p63
    %p65 = scmp.ne.s32.totalorder %s51, %s52
    %p66 = scmp.eq.s32.totalorder %s30, 1
    %p67 = por %p65, %p66
    %p69 = scmp.ne.s32.totalorder %s52, %s68
    %p70 = scmp.eq.s32.totalorder %s30, 0
    %p71 = por %p69, %p70
    %s72 = ssub.s32 %s31, %s43
    %p73 = scmp.eq.s32.totalorder %s72, 0
    %s75 = sadd.s32 %s74, 1
    %s76 = scalar_select %p73, %s74, %s75
    %p79 = pneg %p73
    %p80 = scmp.eq.s32.totalorder %s24, 1
    %p81 = por %p79, %p80
    %p82 = scmp.ne.s32.totalorder %s74, %s77
    %p83 = scmp.eq.s32.totalorder %s24, 0
    %p84 = por %p82, %p83
    %p85 = scmp.ne.s32.totalorder %s74, %s77
    %p86 = scmp.eq.s32.totalorder %s29, 1
    %p87 = por %p85, %p86
    %p88 = scmp.ne.s32.totalorder %s77, %s78
    %p89 = scmp.eq.s32.totalorder %s29, 0
    %p90 = por %p88, %p89
    %p91 = scmp.ne.s32.totalorder %s77, %s78
    %p92 = scmp.eq.s32.totalorder %s30, 1
    %p93 = por %p91, %p92
    %p95 = scmp.ne.s32.totalorder %s78, %s94
    %p96 = scmp.eq.s32.totalorder %s30, 0
    %p97 = por %p95, %p96
    %s99 = sadd.s32 %s98, 1
    %p102 = scmp.eq.s32.totalorder %s24, 1
    %p103 = scmp.ne.s32.totalorder %s98, %s100
    %p104 = scmp.eq.s32.totalorder %s24, 0
    %p105 = por %p103, %p104
    %p106 = scmp.ne.s32.totalorder %s98, %s100
    %p107 = scmp.eq.s32.totalorder %s29, 1
    %p108 = por %p106, %p107
    %p109 = scmp.ne.s32.totalorder %s100, %s101
    %p110 = scmp.eq.s32.totalorder %s29, 0
    %p111 = por %p109, %p110
    %p112 = scmp.ne.s32.totalorder %s100, %s101
    %p113 = scmp.eq.s32.totalorder %s30, 1
    %p114 = por %p112, %p113
    %p116 = scmp.ne.s32.totalorder %s101, %s115
    %p117 = scmp.eq.s32.totalorder %s30, 0
    %p118 = por %p116, %p117
    %s120 = sadd.s32 %s119, 1
    %p123 = scmp.eq.s32.totalorder %s24, 1
    %p124 = scmp.ne.s32.totalorder %s119, %s121
    %p125 = scmp.eq.s32.totalorder %s24, 0
    %p126 = por %p124, %p125
    %p127 = scmp.ne.s32.totalorder %s119, %s121
    %p128 = scmp.eq.s32.totalorder %s29, 1
    %p129 = por %p127, %p128
    %p130 = scmp.ne.s32.totalorder %s121, %s122
    %p131 = scmp.eq.s32.totalorder %s29, 0
    %p132 = por %p130, %p131
    %p133 = scmp.ne.s32.totalorder %s121, %s122
    %p134 = scmp.eq.s32.totalorder %s30, 1
    %p135 = por %p133, %p134
    %p137 = scmp.ne.s32.totalorder %s122, %s136
    %p138 = scmp.eq.s32.totalorder %s30, 0
    %p139 = por %p137, %p138
    %s141 = sadd.s32 %s140, 1
    %p144 = scmp.eq.s32.totalorder %s24, 1
    %p145 = scmp.ne.s32.totalorder %s140, %s142
    %p146 = scmp.eq.s32.totalorder %s24, 0
    %p147 = por %p145, %p146
    %p148 = scmp.ne.s32.totalorder %s140, %s142
    %p149 = scmp.eq.s32.totalorder %s29, 1
    %p150 = por %p148, %p149
    %p151 = scmp.ne.s32.totalorder %s142, %s143
    %p152 = scmp.eq.s32.totalorder %s29, 0
    %p153 = por %p151, %p152
    %p154 = scmp.ne.s32.totalorder %s142, %s143
    %p155 = scmp.eq.s32.totalorder %s30, 1
    %p156 = por %p154, %p155
    %p158 = scmp.ne.s32.totalorder %s143, %s157
    %p159 = scmp.eq.s32.totalorder %s30, 0
    %p160 = por %p158, %p159
    %s162 = sadd.s32 %s161, 1
    %p165 = scmp.eq.s32.totalorder %s24, 1
    %p166 = scmp.ne.s32.totalorder %s161, %s163
    %p167 = scmp.eq.s32.totalorder %s24, 0
    %p168 = por %p166, %p167
    %p169 = scmp.ne.s32.totalorder %s161, %s163
    %p170 = scmp.eq.s32.totalorder %s29, 1
    %p171 = por %p169, %p170
    %p172 = scmp.ne.s32.totalorder %s163, %s164
    %p173 = scmp.eq.s32.totalorder %s29, 0
    %p174 = por %p172, %p173
    %p175 = scmp.ne.s32.totalorder %s163, %s164
    %p176 = scmp.eq.s32.totalorder %s30, 1
    %p177 = por %p175, %p176
    %p179 = scmp.ne.s32.totalorder %s164, %s178
    %p180 = scmp.eq.s32.totalorder %s30, 0
    %p181 = por %p179, %p180
    %s183 = sadd.s32 %s182, 1
    %p186 = scmp.eq.s32.totalorder %s24, 1
    %p187 = scmp.ne.s32.totalorder %s182, %s184
    %p188 = scmp.eq.s32.totalorder %s24, 0
    %p189 = por %p187, %p188
    %p190 = scmp.ne.s32.totalorder %s182, %s184
    %p191 = scmp.eq.s32.totalorder %s29, 1
    %p192 = por %p190, %p191
    %p193 = scmp.ne.s32.totalorder %s184, %s185
    %p194 = scmp.eq.s32.totalorder %s29, 0
    %p195 = por %p193, %p194
    %p196 = scmp.ne.s32.totalorder %s184, %s185
    %p197 = scmp.eq.s32.totalorder %s30, 1
    %p198 = por %p196, %p197
    %p200 = scmp.ne.s32.totalorder %s185, %s199
    %p201 = scmp.eq.s32.totalorder %s30, 0
    %p202 = por %p200, %p201
    %s204 = sadd.s32 %s203, 1
    %p207 = scmp.eq.s32.totalorder %s24, 1
    %p208 = scmp.ne.s32.totalorder %s203, %s205
    %p209 = scmp.eq.s32.totalorder %s24, 0
    %p210 = por %p208, %p209
    %p211 = scmp.ne.s32.totalorder %s203, %s205
    %p212 = scmp.eq.s32.totalorder %s29, 1
    %p213 = por %p211, %p212
    %p214 = scmp.ne.s32.totalorder %s205, %s206
    %p215 = scmp.eq.s32.totalorder %s29, 0
    %p216 = por %p214, %p215
    %p217 = scmp.ne.s32.totalorder %s205, %s206
    %p218 = scmp.eq.s32.totalorder %s30, 1
    %p219 = por %p217, %p218
    %p221 = scmp.ne.s32.totalorder %s206, %s220
    %p222 = scmp.eq.s32.totalorder %s30, 0
    %p223 = por %p221, %p222
    %s225 = sadd.s32 %s224, 1
    %p228 = scmp.eq.s32.totalorder %s24, 1
    %p229 = scmp.ne.s32.totalorder %s224, %s226
    %p230 = scmp.eq.s32.totalorder %s24, 0
    %p231 = por %p229, %p230
    %p232 = scmp.ne.s32.totalorder %s224, %s226
    %p233 = scmp.eq.s32.totalorder %s29, 1
    %p234 = por %p232, %p233
    %p235 = scmp.ne.s32.totalorder %s226, %s227
    %p236 = scmp.eq.s32.totalorder %s29, 0
    %p237 = por %p235, %p236
    %p238 = scmp.ne.s32.totalorder %s226, %s227
    %p239 = scmp.eq.s32.totalorder %s30, 1
    %p240 = por %p238, %p239
    %p242 = scmp.ne.s32.totalorder %s227, %s241
    %p243 = scmp.eq.s32.totalorder %s30, 0
    %p244 = por %p242, %p243
    %s246 = sadd.s32 %s245, 1
    %p249 = scmp.eq.s32.totalorder %s24, 1
    %p250 = scmp.ne.s32.totalorder %s245, %s247
    %p251 = scmp.eq.s32.totalorder %s24, 0
    %p252 = por %p250, %p251
    %p253 = scmp.ne.s32.totalorder %s245, %s247
    %p254 = scmp.eq.s32.totalorder %s29, 1
    %p255 = por %p253, %p254
    %p256 = scmp.ne.s32.totalorder %s247, %s248
    %p257 = scmp.eq.s32.totalorder %s29, 0
    %p258 = por %p256, %p257
    %p259 = scmp.ne.s32.totalorder %s247, %s248
    %p260 = scmp.eq.s32.totalorder %s30, 1
    %p261 = por %p259, %p260
    %p263 = scmp.ne.s32.totalorder %s248, %s262
    %p264 = scmp.eq.s32.totalorder %s30, 0
    %p265 = por %p263, %p264
    %s267 = sadd.s32 %s266, 1
    %p270 = scmp.eq.s32.totalorder %s24, 1
    %p271 = scmp.ne.s32.totalorder %s266, %s268
    %p272 = scmp.eq.s32.totalorder %s24, 0
    %p273 = por %p271, %p272
    %p274 = scmp.ne.s32.totalorder %s266, %s268
    %p275 = scmp.eq.s32.totalorder %s29, 1
    %p276 = por %p274, %p275
    %p277 = scmp.ne.s32.totalorder %s268, %s269
    %p278 = scmp.eq.s32.totalorder %s29, 0
    %p279 = por %p277, %p278
    %p280 = scmp.ne.s32.totalorder %s268, %s269
    %p281 = scmp.eq.s32.totalorder %s30, 1
    %p282 = por %p280, %p281
    %p284 = scmp.ne.s32.totalorder %s269, %s283
    %p285 = scmp.eq.s32.totalorder %s30, 0
    %p286 = por %p284, %p285
    %s288 = sadd.s32 %s287, 1
    %p291 = scmp.eq.s32.totalorder %s24, 1
    %p292 = scmp.ne.s32.totalorder %s287, %s289
    %p293 = scmp.eq.s32.totalorder %s24, 0
    %p294 = por %p292, %p293
    %p295 = scmp.ne.s32.totalorder %s287, %s289
    %p296 = scmp.eq.s32.totalorder %s29, 1
    %p297 = por %p295, %p296
    %p298 = scmp.ne.s32.totalorder %s289, %s290
    %p299 = scmp.eq.s32.totalorder %s29, 0
    %p300 = por %p298, %p299
    %p301 = scmp.ne.s32.totalorder %s289, %s290
    %p302 = scmp.eq.s32.totalorder %s30, 1
    %p303 = por %p301, %p302
    %p305 = scmp.ne.s32.totalorder %s290, %s304
    %p306 = scmp.eq.s32.totalorder %s30, 0
    %p307 = por %p305, %p306
    %s309 = sadd.s32 %s308, 1
    %p312 = scmp.eq.s32.totalorder %s24, 1
    %p313 = scmp.ne.s32.totalorder %s308, %s310
    %p314 = scmp.eq.s32.totalorder %s24, 0
    %p315 = por %p313, %p314
    %p316 = scmp.ne.s32.totalorder %s308, %s310
    %p317 = scmp.eq.s32.totalorder %s29, 1
    %p318 = por %p316, %p317
    %p319 = scmp.ne.s32.totalorder %s310, %s311
    %p320 = scmp.eq.s32.totalorder %s29, 0
    %p321 = por %p319, %p320
    %p322 = scmp.ne.s32.totalorder %s310, %s311
    %p323 = scmp.eq.s32.totalorder %s30, 1
    %p324 = por %p322, %p323
    %p326 = scmp.ne.s32.totalorder %s311, %s325
    %p327 = scmp.eq.s32.totalorder %s30, 0
    %p328 = por %p326, %p327
    %s330 = sadd.s32 %s329, 1
    %p333 = scmp.eq.s32.totalorder %s24, 1
    %p334 = scmp.ne.s32.totalorder %s329, %s331
    %p335 = scmp.eq.s32.totalorder %s24, 0
    %p336 = por %p334, %p335
    %p337 = scmp.ne.s32.totalorder %s329, %s331
    %p338 = scmp.eq.s32.totalorder %s29, 1
    %p339 = por %p337, %p338
    %p340 = scmp.ne.s32.totalorder %s331, %s332
    %p341 = scmp.eq.s32.totalorder %s29, 0
    %p342 = por %p340, %p341
    %p343 = scmp.ne.s32.totalorder %s331, %s332
    %p344 = scmp.eq.s32.totalorder %s30, 1
    %p345 = por %p343, %p344
    %p347 = scmp.ne.s32.totalorder %s332, %s346
    %p348 = scmp.eq.s32.totalorder %s30, 0
    %p349 = por %p347, %p348
    %s351 = sadd.s32 %s350, 1
    %p354 = scmp.eq.s32.totalorder %s24, 1
    %p355 = scmp.ne.s32.totalorder %s350, %s352
    %p356 = scmp.eq.s32.totalorder %s24, 0
    %p357 = por %p355, %p356
    %p358 = scmp.ne.s32.totalorder %s350, %s352
    %p359 = scmp.eq.s32.totalorder %s29, 1
    %p360 = por %p358, %p359
    %p361 = scmp.ne.s32.totalorder %s352, %s353
    %p362 = scmp.eq.s32.totalorder %s29, 0
    %p363 = por %p361, %p362
    %p364 = scmp.ne.s32.totalorder %s352, %s353
    %p365 = scmp.eq.s32.totalorder %s30, 1
    %p366 = por %p364, %p365
    %p368 = scmp.ne.s32.totalorder %s353, %s367
    %p369 = scmp.eq.s32.totalorder %s30, 0
    %p370 = por %p368, %p369
    %s372 = sadd.s32 %s371, 1
    %p375 = scmp.eq.s32.totalorder %s24, 1
    %p376 = scmp.ne.s32.totalorder %s371, %s373
    %p377 = scmp.eq.s32.totalorder %s24, 0
    %p378 = por %p376, %p377
    %p379 = scmp.ne.s32.totalorder %s371, %s373
    %p380 = scmp.eq.s32.totalorder %s29, 1
    %p381 = por %p379, %p380
    %p382 = scmp.ne.s32.totalorder %s373, %s374
    %p383 = scmp.eq.s32.totalorder %s29, 0
    %p384 = por %p382, %p383
    %p385 = scmp.ne.s32.totalorder %s373, %s374
    %p386 = scmp.eq.s32.totalorder %s30, 1
    %p387 = por %p385, %p386
    %p389 = scmp.ne.s32.totalorder %s374, %s388
    %p390 = scmp.eq.s32.totalorder %s30, 0
    %p391 = por %p389, %p390
    %s393 = sadd.s32 %s392, 1
    %p396 = scmp.eq.s32.totalorder %s24, 1
    %p397 = scmp.ne.s32.totalorder %s392, %s394
    %p398 = scmp.eq.s32.totalorder %s24, 0
    %p399 = por %p397, %p398
    %p400 = scmp.ne.s32.totalorder %s392, %s394
    %p401 = scmp.eq.s32.totalorder %s29, 1
    %p402 = por %p400, %p401
    %p403 = scmp.ne.s32.totalorder %s394, %s395
    %p404 = scmp.eq.s32.totalorder %s29, 0
    %p405 = por %p403, %p404
    %p406 = scmp.ne.s32.totalorder %s394, %s395
    %p407 = scmp.eq.s32.totalorder %s30, 1
    %p408 = por %p406, %p407
    %p410 = scmp.ne.s32.totalorder %s395, %s409
    %p411 = scmp.eq.s32.totalorder %s30, 0
    %p412 = por %p410, %p411
    %s414 = sadd.s32 %s413, 1
    %p417 = scmp.eq.s32.totalorder %s24, 1
    %p418 = scmp.ne.s32.totalorder %s413, %s415
    %p419 = scmp.eq.s32.totalorder %s24, 0
    %p420 = por %p418, %p419
    %p421 = scmp.ne.s32.totalorder %s413, %s415
    %p422 = scmp.eq.s32.totalorder %s29, 1
    %p423 = por %p421, %p422
    %p424 = scmp.ne.s32.totalorder %s415, %s416
    %p425 = scmp.eq.s32.totalorder %s29, 0
    %p426 = por %p424, %p425
    %p427 = scmp.ne.s32.totalorder %s415, %s416
    %p428 = scmp.eq.s32.totalorder %s30, 1
    %p429 = por %p427, %p428
    %p431 = scmp.ne.s32.totalorder %s416, %s430
    %p432 = scmp.eq.s32.totalorder %s30, 0
    %p433 = por %p431, %p432
    %s434 = ssub.s32 %s31, %s43
    %s435 = ssub.s32 %s32, %s39
    %s436 = sor.u32 %s434, %s435
    %p437 = scmp.eq.s32.totalorder %s436, 0
    %s439 = sadd.s32 %s438, 1
    %s440 = scalar_select %p437, %s438, %s439
    %p443 = pneg %p437
    %p444 = scmp.eq.s32.totalorder %s24, 1
    %p445 = por %p443, %p444
    %p446 = scmp.ne.s32.totalorder %s438, %s441
    %p447 = scmp.eq.s32.totalorder %s24, 0
    %p448 = por %p446, %p447
    %p449 = scmp.ne.s32.totalorder %s438, %s441
    %p450 = scmp.eq.s32.totalorder %s29, 1
    %p451 = por %p449, %p450
    %p452 = scmp.ne.s32.totalorder %s441, %s442
    %p453 = scmp.eq.s32.totalorder %s29, 0
    %p454 = por %p452, %p453
    %p455 = scmp.ne.s32.totalorder %s441, %s442
    %p456 = scmp.eq.s32.totalorder %s30, 1
    %p457 = por %p455, %p456
    %p459 = scmp.ne.s32.totalorder %s442, %s458
    %p460 = scmp.eq.s32.totalorder %s30, 0
    %p461 = por %p459, %p460
    %p462 = scmp.le.s32.totalorder 1, %s24
    %p463 = scmp.lt.s32.totalorder %s24, 3
    %p464 = pnand %p462, %p463
    %p465 = pneg %p464
    // Predicated region
    $region9: #{forward.5} parent=5 // pred_check
      _
    $region10: #{forward.5} parent=5 // pred_check_branch
      %467 = sbr.rel (%p464) target = $region12
    $region11: #{forward.5} parent=5 // pred_region
      %s468 = ssub.s32 %s24, 1
      // Predicated region
      $region13: #{forward.5} parent=11 // pred_check
        %p469 = pneg %p111
      $region14: #{forward.5} parent=11 // pred_check_branch
        %471 = sbr.rel (%p469) target = $region16
      $region15: #{forward.5} parent=11 // pred_region
        _
      $region16: #{forward.5} parent=11 // pred_fallthru
        _
      // Predicated region
      $region17: #{forward.5} parent=11 // pred_check
        %p472 = pneg %p132
      $region18: #{forward.5} parent=11 // pred_check_branch
        %474 = sbr.rel (%p472) target = $region20
      $region19: #{forward.5} parent=11 // pred_region
        _
      $region20: #{forward.5} parent=11 // pred_fallthru
        _
      // Predicated region
      $region21: #{forward.5} parent=11 // pred_check
        %p475 = pneg %p153
      $region22: #{forward.5} parent=11 // pred_check_branch
        %477 = sbr.rel (%p475) target = $region24
      $region23: #{forward.5} parent=11 // pred_region
        _
      $region24: #{forward.5} parent=11 // pred_fallthru
        _
      // Predicated region
      $region25: #{forward.5} parent=11 // pred_check
        %p478 = pneg %p174
      $region26: #{forward.5} parent=11 // pred_check_branch
        %480 = sbr.rel (%p478) target = $region28
      $region27: #{forward.5} parent=11 // pred_region
        _
      $region28: #{forward.5} parent=11 // pred_fallthru
        _
      // Predicated region
      $region29: #{forward.5} parent=11 // pred_check
        %p481 = pneg %p195
      $region30: #{forward.5} parent=11 // pred_check_branch
        %483 = sbr.rel (%p481) target = $region32
      $region31: #{forward.5} parent=11 // pred_region
        _
      $region32: #{forward.5} parent=11 // pred_fallthru
        _
      // Predicated region
      $region33: #{forward.5} parent=11 // pred_check
        %p484 = pneg %p216
      $region34: #{forward.5} parent=11 // pred_check_branch
        %486 = sbr.rel (%p484) target = $region36
      $region35: #{forward.5} parent=11 // pred_region
        _
      $region36: #{forward.5} parent=11 // pred_fallthru
        _
      // Predicated region
      $region37: #{forward.5} parent=11 // pred_check
        %p487 = pneg %p237
      $region38: #{forward.5} parent=11 // pred_check_branch
        %489 = sbr.rel (%p487) target = $region40
      $region39: #{forward.5} parent=11 // pred_region
        _
      $region40: #{forward.5} parent=11 // pred_fallthru
        _
      // Predicated region
      $region41: #{forward.5} parent=11 // pred_check
        %p490 = pneg %p258
      $region42: #{forward.5} parent=11 // pred_check_branch
        %492 = sbr.rel (%p490) target = $region44
      $region43: #{forward.5} parent=11 // pred_region
        _
      $region44: #{forward.5} parent=11 // pred_fallthru
        _
      // Predicated region
      $region45: #{forward.5} parent=11 // pred_check
        %p493 = pneg %p279
      $region46: #{forward.5} parent=11 // pred_check_branch
        %495 = sbr.rel (%p493) target = $region48
      $region47: #{forward.5} parent=11 // pred_region
        _
      $region48: #{forward.5} parent=11 // pred_fallthru
        _
      // Predicated region
      $region49: #{forward.5} parent=11 // pred_check
        %p496 = pneg %p300
      $region50: #{forward.5} parent=11 // pred_check_branch
        %498 = sbr.rel (%p496) target = $region52
      $region51: #{forward.5} parent=11 // pred_region
        _
      $region52: #{forward.5} parent=11 // pred_fallthru
        _
      // Predicated region
      $region53: #{forward.5} parent=11 // pred_check
        %p499 = pneg %p321
      $region54: #{forward.5} parent=11 // pred_check_branch
        %501 = sbr.rel (%p499) target = $region56
      $region55: #{forward.5} parent=11 // pred_region
        _
      $region56: #{forward.5} parent=11 // pred_fallthru
        _
      // Predicated region
      $region57: #{forward.5} parent=11 // pred_check
        %p502 = pneg %p342
      $region58: #{forward.5} parent=11 // pred_check_branch
        %504 = sbr.rel (%p502) target = $region60
      $region59: #{forward.5} parent=11 // pred_region
        _
      $region60: #{forward.5} parent=11 // pred_fallthru
        _
      // Predicated region
      $region61: #{forward.5} parent=11 // pred_check
        %p505 = pneg %p363
      $region62: #{forward.5} parent=11 // pred_check_branch
        %507 = sbr.rel (%p505) target = $region64
      $region63: #{forward.5} parent=11 // pred_region
        _
      $region64: #{forward.5} parent=11 // pred_fallthru
        _
      // Predicated region
      $region65: #{forward.5} parent=11 // pred_check
        %p508 = pneg %p384
      $region66: #{forward.5} parent=11 // pred_check_branch
        %510 = sbr.rel (%p508) target = $region68
      $region67: #{forward.5} parent=11 // pred_region
        _
      $region68: #{forward.5} parent=11 // pred_fallthru
        _
      // Predicated region
      $region69: #{forward.5} parent=11 // pred_check
        %p511 = pneg %p405
      $region70: #{forward.5} parent=11 // pred_check_branch
        %513 = sbr.rel (%p511) target = $region72
      $region71: #{forward.5} parent=11 // pred_region
        _
      $region72: #{forward.5} parent=11 // pred_fallthru
        _
      // Predicated region
      $region73: #{forward.5} parent=11 // pred_check
        %p514 = pneg %p426
      $region74: #{forward.5} parent=11 // pred_check_branch
        %516 = sbr.rel (%p514) target = $region76
      $region75: #{forward.5} parent=11 // pred_region
        _
      $region76: #{forward.5} parent=11 // pred_fallthru
        _
    $region12: #{forward.5} parent=5 // pred_fallthru
      _
    %p517 = scmp.lt.s32.totalorder %s24, 2
    // Predicated region
    $region77: #{forward.5} parent=5 // pred_check
      %p518 = pneg %p517
    $region78: #{forward.5} parent=5 // pred_check_branch
      %520 = sbr.rel (%p518) target = $region80
    $region79: #{forward.5} parent=5 // pred_region
      // Predicated region
      $region81: #{forward.5} parent=79 // pred_check
        %p521 = pneg %p58
      $region82: #{forward.5} parent=79 // pred_check_branch
        %523 = sbr.rel (%p521) target = $region84
      $region83: #{forward.5} parent=79 // pred_region
        %p524 = scmp.lt.s32.totalorder %s31, 1
        %s525 = scalar_select %p524, %s31, 1
        %p526 = scmp.lt.s32.totalorder %s32, 0
        %s527 = scalar_select %p526, %s32, 0
        %s528 = sadd.s32 %s527, %s525
        %s529 = smul.addr %s528, 8
        %s530 = scalar_lea.vmem %s0, %s529
      $region84: #{forward.5} parent=79 // pred_fallthru
        _
      // Predicated region
      $region85: #{forward.5} parent=79 // pred_check
        %p531 = pneg %p84
      $region86: #{forward.5} parent=79 // pred_check_branch
        %533 = sbr.rel (%p531) target = $region88
      $region87: #{forward.5} parent=79 // pred_region
        %p534 = scmp.lt.s32.totalorder %s31, 1
        %s535 = scalar_select %p534, %s31, 1
        %s536 = smul.addr %s535, 8
        %s537 = scalar_lea.vmem %s1, %s536
      $region88: #{forward.5} parent=79 // pred_fallthru
        _
    $region80: #{forward.5} parent=5 // pred_fallthru
      _
    %p538 = scmp.le.s32.totalorder 1, %s24
    %p539 = scmp.lt.s32.totalorder %s24, 3
    %p540 = pnand %p538, %p539
    %p541 = pneg %p540
    // Predicated region
    $region89: #{forward.5} parent=5 // pred_check
      _
    $region90: #{forward.5} parent=5 // pred_check_branch
      %543 = sbr.rel (%p540) target = $region92
    $region91: #{forward.5} parent=5 // pred_region
      %s544 = ssub.s32 %s24, 1
      %p545 = scmp.lt.s32.totalorder %s33, 1
      %s546 = scalar_select %p545, %s33, 1
      %p547 = scmp.lt.s32.totalorder %s34, 0
      %s548 = scalar_select %p547, %s34, 0
      %s549 = sadd.s32 %s548, %s546
      %s550 = smul.addr %s549, 8
      %s551 = scalar_lea.vmem %s0, %s550
      %p552 = pneg %p64
      %p553 = pneg %p61
      %p554 = scmp.lt.s32.totalorder %s33, 1
      %s555 = scalar_select %p554, %s33, 1
      %s556 = smul.addr %s555, 8
      %s557 = scalar_lea.vmem %s1, %s556
      %p558 = pneg %p90
      %p559 = pneg %p87
      %p560 = pneg %p111
      %p561 = pneg %p108
      %p562 = pneg %p132
      %p563 = pneg %p129
      %p564 = pneg %p153
      %p565 = pneg %p150
      %p566 = pneg %p174
      %p567 = pneg %p171
      %p568 = pneg %p195
      %p569 = pneg %p192
      %p570 = pneg %p216
      %p571 = pneg %p213
      %p572 = pneg %p237
      %p573 = pneg %p234
      %p574 = pneg %p258
      %p575 = pneg %p255
      %p576 = pneg %p279
      %p577 = pneg %p276
      %p578 = pneg %p300
      %p579 = pneg %p297
      %p580 = pneg %p321
      %p581 = pneg %p318
      %p582 = pneg %p342
      %p583 = pneg %p339
      %p584 = pneg %p363
      %p585 = pneg %p360
      %p586 = pneg %p384
      %p587 = pneg %p381
      %p588 = pneg %p405
      %p589 = pneg %p402
      %p590 = pneg %p426
      %p591 = pneg %p423
      %p592 = pneg %p454
      %p593 = pneg %p451
      %p594 = scmp.lt.s32.totalorder %s33, 1
      %s595 = scalar_select %p594, %s33, 1
      %p596 = scmp.lt.s32.totalorder %s34, 0
      %s597 = scalar_select %p596, %s34, 0
      %s598 = sadd.s32 %s597, %s595
      %s599 = smul.addr %s598, 8
      %s600 = scalar_lea.vmem %s18, %s599
      %p601 = scmp.lt.s32.totalorder %s33, 1
      %s602 = scalar_select %p601, %s33, 1
      %p603 = scmp.lt.s32.totalorder %s34, 0
      %s604 = scalar_select %p603, %s34, 0
      %s605 = sadd.s32 %s604, %s602
      %s606 = smul.addr %s605, 8
      %s607 = scalar_lea.vmem %s0, %s606
      %p608 = scmp.lt.s32.totalorder %s33, 1
      %s609 = scalar_select %p608, %s33, 1
      %s610 = smul.addr %s609, 8
      %s611 = scalar_lea.vmem %s1, %s610
      %p612 = scmp.lt.s32.totalorder %s33, 1
      %s613 = scalar_select %p612, %s33, 1
      %p614 = scmp.lt.s32.totalorder %s34, 0
      %s615 = scalar_select %p614, %s34, 0
      %s616 = sadd.s32 %s615, %s613
      %s617 = smul.addr %s616, 8
      %s618 = scalar_lea.vmem %s18, %s617
      %v620 = vld [vmem:[%s607] sm:$0xff]
      %v621 = vpack.c.bf16 %v620, %v620
      %v622 = vld [vmem:[%s611] sm:$0xff]
      %v623 = vpack.c.bf16 %v622, %v622
      %v624 = vld [vmem:[%s2] sm:$0xf]
      %v625 = vld [vmem:[%s2 + $0x4] sm:$0xf]
      %v626 = vld [vmem:[%s2 + $0x8] sm:$0xf]
      %v627 = vld [vmem:[%s2 + $0xc] sm:$0xf]
      %v628 = vld [vmem:[%s3] sm:$0x1]
      %v630 = vlaneseq
      %v631 = vshrl.u32 %v630, 7
      %v632 = vsub.s32 0, %v631
      %v633 = vrot.slane %v628, %v632
      %v639 = vunpack.c.l.b16 %v624
      %v640 = vunpack.c.l.b16 %v625
      %v641 = vunpack.c.l.b16 %v626
      %v642 = vunpack.c.l.b16 %v627
      %v643 = vpack.c.b16 %v640, %v639
      %v644 = vpack.c.b16 %v642, %v641
      %vm647 = vcmask 261120
      %v649 = vsel %vm647, %v621, 0
      %651 = vmatprep.subr.bf16.mxu0 0
      %652 = vmatpush1.bf16.msra.mxu0 0
      %653 = vmatprep.subr.bf16.mxu0 0
      %654 = vmatpush1.bf16.msra.mxu0 0
      %655 = vmatprep.subr.bf16.mxu0 0
      %656 = vmatpush1.bf16.msra.mxu0 0
      %657 = vmatprep.subr.bf16.mxu0 0
      %658 = vmatpush1.bf16.msra.mxu0 0
      %659 = vmatprep.subr.bf16.mxu0 0
      %660 = vmatpush1.bf16.msra.mxu0 0
      %661 = vmatprep.subr.bf16.mxu0 0
      %662 = vmatpush1.bf16.msra.mxu0 0
      %663 = vmatprep.subr.bf16.mxu0 0
      %664 = vmatpush1.bf16.msra.mxu0 %v644
      %665 = vmatprep.subr.bf16.mxu0 0
      %666 = vmatpush1.bf16.msra.mxu0 %v643
      %667 = vmatprep.subr.bf16.mxu0 0
      %668 = vmatpush2.bf16.msra.mxu0 0
      %669 = vmatprep.subr.bf16.mxu0 0
      %670 = vmatpush2.bf16.msra.mxu0 0
      %671 = vmatprep.subr.bf16.mxu0 0
      %672 = vmatpush2.bf16.msra.mxu0 0
      %673 = vmatprep.subr.bf16.mxu0 0
      %674 = vmatpush2.bf16.msra.mxu0 0
      %675 = vmatprep.subr.bf16.mxu0 0
      %676 = vmatpush2.bf16.msra.mxu0 0
      %677 = vmatprep.subr.bf16.mxu0 0
      %678 = vmatpush2.bf16.msra.mxu0 0
      %679 = vmatprep.subr.bf16.mxu0 0
      %680 = vmatpush2.bf16.msra.mxu0 0
      %681 = vmatprep.subr.bf16.mxu0 0
      %682 = vmatpush2.bf16.msra.mxu0 0
      %683 = vmatprep.mubr.bf16.mxu0 0
      %684 = vmatmul.mubr.bf16.gmra.mxu0 %v649
      %v685 = vpop.f32.mrf.mxu0
      %v686 = vadd.f32 %v633, %v685
      %v687 = vpop.f32.mrf.mxu0
      %v688 = vpop.f32.mrf.mxu0
      %v689 = vpop.f32.mrf.mxu0
      %690 = vdwg.mxu0
      %v691 = vld [vmem:[%s4] sm:$0xf]
      %v692 = vld [vmem:[%s4 + $0x4] sm:$0xf]
      %v693 = vld [vmem:[%s4 + $0x8] sm:$0xf]
      %v694 = vld [vmem:[%s4 + $0xc] sm:$0xf]
      %v695 = vld [vmem:[%s5] sm:$0x1]
      %v697 = vlaneseq
      %v698 = vshrl.u32 %v697, 7
      %v699 = vsub.s32 0, %v698
      %v700 = vrot.slane %v695, %v699
      %v706 = vunpack.c.l.b16 %v691
      %v707 = vunpack.c.l.b16 %v692
      %v708 = vunpack.c.l.b16 %v693
      %v709 = vunpack.c.l.b16 %v694
      %v710 = vpack.c.b16 %v707, %v706
      %v711 = vpack.c.b16 %v709, %v708
      %v715 = vsel %vm647, %v623, 0
      %717 = vmatprep.subr.bf16.mxu0 0
      %718 = vmatpush1.bf16.msra.mxu0 0
      %719 = vmatprep.subr.bf16.mxu0 0
      %720 = vmatpush1.bf16.msra.mxu0 0
      %721 = vmatprep.subr.bf16.mxu0 0
      %722 = vmatpush1.bf16.msra.mxu0 0
      %723 = vmatprep.subr.bf16.mxu0 0
      %724 = vmatpush1.bf16.msra.mxu0 0
      %725 = vmatprep.subr.bf16.mxu0 0
      %726 = vmatpush1.bf16.msra.mxu0 0
      %727 = vmatprep.subr.bf16.mxu0 0
      %728 = vmatpush1.bf16.msra.mxu0 0
      %729 = vmatprep.subr.bf16.mxu0 0
      %730 = vmatpush1.bf16.msra.mxu0 %v711
      %731 = vmatprep.subr.bf16.mxu0 0
      %732 = vmatpush1.bf16.msra.mxu0 %v710
      %733 = vmatprep.subr.bf16.mxu0 0
      %734 = vmatpush2.bf16.msra.mxu0 0
      %735 = vmatprep.subr.bf16.mxu0 0
      %736 = vmatpush2.bf16.msra.mxu0 0
      %737 = vmatprep.subr.bf16.mxu0 0
      %738 = vmatpush2.bf16.msra.mxu0 0
      %739 = vmatprep.subr.bf16.mxu0 0
      %740 = vmatpush2.bf16.msra.mxu0 0
      %741 = vmatprep.subr.bf16.mxu0 0
      %742 = vmatpush2.bf16.msra.mxu0 0
      %743 = vmatprep.subr.bf16.mxu0 0
      %744 = vmatpush2.bf16.msra.mxu0 0
      %745 = vmatprep.subr.bf16.mxu0 0
      %746 = vmatpush2.bf16.msra.mxu0 0
      %747 = vmatprep.subr.bf16.mxu0 0
      %748 = vmatpush2.bf16.msra.mxu0 0
      %749 = vmatprep.mubr.bf16.mxu0 0
      %750 = vmatmul.mubr.bf16.gmra.mxu0 %v715
      %v751 = vpop.f32.mrf.mxu0
      %v752 = vadd.f32 %v700, %v751
      %v753 = vpop.f32.mrf.mxu0
      %v754 = vpop.f32.mrf.mxu0
      %v755 = vpop.f32.mrf.mxu0
      %756 = vdwg.mxu0
      %v757 = vld [vmem:[%s6] sm:$0xf]
      %v758 = vld [vmem:[%s6 + $0x4] sm:$0xf]
      %v759 = vld [vmem:[%s6 + $0x8] sm:$0xf]
      %v760 = vld [vmem:[%s6 + $0xc] sm:$0xf]
      %v761 = vld [vmem:[%s7] sm:$0x1]
      %v763 = vlaneseq
      %v764 = vshrl.u32 %v763, 7
      %v765 = vsub.s32 0, %v764
      %v766 = vrot.slane %v761, %v765
      %v772 = vunpack.c.l.b16 %v757
      %v773 = vunpack.c.l.b16 %v758
      %v774 = vunpack.c.l.b16 %v759
      %v775 = vunpack.c.l.b16 %v760
      %v776 = vpack.c.b16 %v773, %v772
      %v777 = vpack.c.b16 %v775, %v774
      %780 = vmatprep.subr.bf16.mxu0 0
      %781 = vmatpush1.bf16.msra.mxu0 0
      %782 = vmatprep.subr.bf16.mxu0 0
      %783 = vmatpush1.bf16.msra.mxu0 0
      %784 = vmatprep.subr.bf16.mxu0 0
      %785 = vmatpush1.bf16.msra.mxu0 0
      %786 = vmatprep.subr.bf16.mxu0 0
      %787 = vmatpush1.bf16.msra.mxu0 0
      %788 = vmatprep.subr.bf16.mxu0 0
      %789 = vmatpush1.bf16.msra.mxu0 0
      %790 = vmatprep.subr.bf16.mxu0 0
      %791 = vmatpush1.bf16.msra.mxu0 0
      %792 = vmatprep.subr.bf16.mxu0 0
      %793 = vmatpush1.bf16.msra.mxu0 %v777
      %794 = vmatprep.subr.bf16.mxu0 0
      %795 = vmatpush1.bf16.msra.mxu0 %v776
      %796 = vmatprep.subr.bf16.mxu0 0
      %797 = vmatpush2.bf16.msra.mxu0 0
      %798 = vmatprep.subr.bf16.mxu0 0
      %799 = vmatpush2.bf16.msra.mxu0 0
      %800 = vmatprep.subr.bf16.mxu0 0
      %801 = vmatpush2.bf16.msra.mxu0 0
      %802 = vmatprep.subr.bf16.mxu0 0
      %803 = vmatpush2.bf16.msra.mxu0 0
      %804 = vmatprep.subr.bf16.mxu0 0
      %805 = vmatpush2.bf16.msra.mxu0 0
      %806 = vmatprep.subr.bf16.mxu0 0
      %807 = vmatpush2.bf16.msra.mxu0 0
      %808 = vmatprep.subr.bf16.mxu0 0
      %809 = vmatpush2.bf16.msra.mxu0 0
      %810 = vmatprep.subr.bf16.mxu0 0
      %811 = vmatpush2.bf16.msra.mxu0 0
      %812 = vmatprep.mubr.bf16.mxu0 0
      %813 = vmatmul.mubr.bf16.gmra.mxu0 %v715
      %v814 = vpop.f32.mrf.mxu0
      %v815 = vadd.f32 %v766, %v814
      %v816 = vpop.f32.mrf.mxu0
      %v817 = vpop.f32.mrf.mxu0
      %v818 = vpop.f32.mrf.mxu0
      %819 = vdwg.mxu0
      %v820 = vpack.c.bf16 %v686, %v686
      %v821 = vpack.c.bf16 %v752, %v752
      %v822 = vpack.c.bf16 %v815, %v815
      %824 = vrot.lane.b32.xlu0 %v820, 120
      %v825 = vpop.permute.xlu0 %824
      %826 = vrot.lane.b32.xlu0 %v820, 112
      %v827 = vpop.permute.xlu0 %826
      %828 = vrot.lane.b32.xlu0 %v820, 104
      %v829 = vpop.permute.xlu0 %828
      %831 = vrot.lane.b32.xlu0 %v821, 120
      %v832 = vpop.permute.xlu0 %831
      %833 = vrot.lane.b32.xlu0 %v821, 112
      %v834 = vpop.permute.xlu0 %833
      %835 = vrot.lane.b32.xlu0 %v821, 104
      %v836 = vpop.permute.xlu0 %835
      %838 = vrot.lane.b32.xlu0 %v822, 120
      %v839 = vpop.permute.xlu0 %838
      %840 = vrot.lane.b32.xlu0 %v822, 112
      %v841 = vpop.permute.xlu0 %840
      %842 = vrot.lane.b32.xlu0 %v822, 104
      %v843 = vpop.permute.xlu0 %842
      %vm844 = vcmask 64512
      %v846 = vsel %vm844, %v820, 0
      %v849 = vsel %vm844, %v821, 0
      %851 = vmatprep.subr.bf16.mxu0 0
      %852 = vmatpush1.bf16.xpose.msra.mxu0 0
      %853 = vmatprep.subr.bf16.mxu0 0
      %854 = vmatpush1.bf16.xpose.msra.mxu0 0
      %855 = vmatprep.subr.bf16.mxu0 0
      %856 = vmatpush1.bf16.xpose.msra.mxu0 0
      %857 = vmatprep.subr.bf16.mxu0 0
      %858 = vmatpush1.bf16.xpose.msra.mxu0 0
      %859 = vmatprep.subr.bf16.mxu0 0
      %860 = vmatpush1.bf16.xpose.msra.mxu0 0
      %861 = vmatprep.subr.bf16.mxu0 0
      %862 = vmatpush1.bf16.xpose.msra.mxu0 0
      %863 = vmatprep.subr.bf16.mxu0 0
      %864 = vmatpush1.bf16.xpose.msra.mxu0 0
      %865 = vmatprep.subr.bf16.mxu0 0
      %866 = vmatpush1.bf16.xpose.msra.mxu0 %v849
      %867 = vmatprep.subr.bf16.mxu0 0
      %868 = vmatpush2.bf16.xpose.msra.mxu0 0
      %869 = vmatprep.subr.bf16.mxu0 0
      %870 = vmatpush2.bf16.xpose.msra.mxu0 0
      %871 = vmatprep.subr.bf16.mxu0 0
      %872 = vmatpush2.bf16.xpose.msra.mxu0 0
      %873 = vmatprep.subr.bf16.mxu0 0
      %874 = vmatpush2.bf16.xpose.msra.mxu0 0
      %875 = vmatprep.subr.bf16.mxu0 0
      %876 = vmatpush2.bf16.xpose.msra.mxu0 0
      %877 = vmatprep.subr.bf16.mxu0 0
      %878 = vmatpush2.bf16.xpose.msra.mxu0 0
      %879 = vmatprep.subr.bf16.mxu0 0
      %880 = vmatpush2.bf16.xpose.msra.mxu0 0
      %881 = vmatprep.subr.bf16.mxu0 0
      %882 = vmatpush2.bf16.xpose.msra.mxu0 0
      %883 = vmatprep.mubr.bf16.mxu0 0
      %884 = vmatmul.mubr.bf16.gmra.mxu0 %v846
      %v885 = vpop.f32.mrf.mxu0
      %v886 = vadd.f32 0.0, %v885
      %v887 = vpop.f32.mrf.mxu0
      %v888 = vpop.f32.mrf.mxu0
      %v889 = vpop.f32.mrf.mxu0
      %890 = vdwg.mxu0
      %v892 = vsel %vm844, %v825, 0
      %v895 = vsel %vm844, %v832, 0
      %897 = vmatprep.subr.bf16.mxu0 0
      %898 = vmatpush1.bf16.xpose.msra.mxu0 0
      %899 = vmatprep.subr.bf16.mxu0 0
      %900 = vmatpush1.bf16.xpose.msra.mxu0 0
      %901 = vmatprep.subr.bf16.mxu0 0
      %902 = vmatpush1.bf16.xpose.msra.mxu0 0
      %903 = vmatprep.subr.bf16.mxu0 0
      %904 = vmatpush1.bf16.xpose.msra.mxu0 0
      %905 = vmatprep.subr.bf16.mxu0 0
      %906 = vmatpush1.bf16.xpose.msra.mxu0 0
      %907 = vmatprep.subr.bf16.mxu0 0
      %908 = vmatpush1.bf16.xpose.msra.mxu0 0
      %909 = vmatprep.subr.bf16.mxu0 0
      %910 = vmatpush1.bf16.xpose.msra.mxu0 0
      %911 = vmatprep.subr.bf16.mxu0 0
      %912 = vmatpush1.bf16.xpose.msra.mxu0 %v895
      %913 = vmatprep.subr.bf16.mxu0 0
      %914 = vmatpush2.bf16.xpose.msra.mxu0 0
      %915 = vmatprep.subr.bf16.mxu0 0
      %916 = vmatpush2.bf16.xpose.msra.mxu0 0
      %917 = vmatprep.subr.bf16.mxu0 0
      %918 = vmatpush2.bf16.xpose.msra.mxu0 0
      %919 = vmatprep.subr.bf16.mxu0 0
      %920 = vmatpush2.bf16.xpose.msra.mxu0 0
      %921 = vmatprep.subr.bf16.mxu0 0
      %922 = vmatpush2.bf16.xpose.msra.mxu0 0
      %923 = vmatprep.subr.bf16.mxu0 0
      %924 = vmatpush2.bf16.xpose.msra.mxu0 0
      %925 = vmatprep.subr.bf16.mxu0 0
      %926 = vmatpush2.bf16.xpose.msra.mxu0 0
      %927 = vmatprep.subr.bf16.mxu0 0
      %928 = vmatpush2.bf16.xpose.msra.mxu0 0
      %929 = vmatprep.mubr.bf16.mxu0 0
      %930 = vmatmul.mubr.bf16.gmra.mxu0 %v892
      %v931 = vpop.f32.mrf.mxu0
      %v932 = vadd.f32 0.0, %v931
      %v933 = vpop.f32.mrf.mxu0
      %v934 = vpop.f32.mrf.mxu0
      %v935 = vpop.f32.mrf.mxu0
      %936 = vdwg.mxu0
      %v938 = vsel %vm844, %v827, 0
      %v941 = vsel %vm844, %v834, 0
      %943 = vmatprep.subr.bf16.mxu0 0
      %944 = vmatpush1.bf16.xpose.msra.mxu0 0
      %945 = vmatprep.subr.bf16.mxu0 0
      %946 = vmatpush1.bf16.xpose.msra.mxu0 0
      %947 = vmatprep.subr.bf16.mxu0 0
      %948 = vmatpush1.bf16.xpose.msra.mxu0 0
      %949 = vmatprep.subr.bf16.mxu0 0
      %950 = vmatpush1.bf16.xpose.msra.mxu0 0
      %951 = vmatprep.subr.bf16.mxu0 0
      %952 = vmatpush1.bf16.xpose.msra.mxu0 0
      %953 = vmatprep.subr.bf16.mxu0 0
      %954 = vmatpush1.bf16.xpose.msra.mxu0 0
      %955 = vmatprep.subr.bf16.mxu0 0
      %956 = vmatpush1.bf16.xpose.msra.mxu0 0
      %957 = vmatprep.subr.bf16.mxu0 0
      %958 = vmatpush1.bf16.xpose.msra.mxu0 %v941
      %959 = vmatprep.subr.bf16.mxu0 0
      %960 = vmatpush2.bf16.xpose.msra.mxu0 0
      %961 = vmatprep.subr.bf16.mxu0 0
      %962 = vmatpush2.bf16.xpose.msra.mxu0 0
      %963 = vmatprep.subr.bf16.mxu0 0
      %964 = vmatpush2.bf16.xpose.msra.mxu0 0
      %965 = vmatprep.subr.bf16.mxu0 0
      %966 = vmatpush2.bf16.xpose.msra.mxu0 0
      %967 = vmatprep.subr.bf16.mxu0 0
      %968 = vmatpush2.bf16.xpose.msra.mxu0 0
      %969 = vmatprep.subr.bf16.mxu0 0
      %970 = vmatpush2.bf16.xpose.msra.mxu0 0
      %971 = vmatprep.subr.bf16.mxu0 0
      %972 = vmatpush2.bf16.xpose.msra.mxu0 0
      %973 = vmatprep.subr.bf16.mxu0 0
      %974 = vmatpush2.bf16.xpose.msra.mxu0 0
      %975 = vmatprep.mubr.bf16.mxu0 0
      %976 = vmatmul.mubr.bf16.gmra.mxu0 %v938
      %v977 = vpop.f32.mrf.mxu0
      %v978 = vadd.f32 0.0, %v977
      %v979 = vpop.f32.mrf.mxu0
      %v980 = vpop.f32.mrf.mxu0
      %v981 = vpop.f32.mrf.mxu0
      %982 = vdwg.mxu0
      %v984 = vsel %vm844, %v829, 0
      %v987 = vsel %vm844, %v836, 0
      %989 = vmatprep.subr.bf16.mxu0 0
      %990 = vmatpush1.bf16.xpose.msra.mxu0 0
      %991 = vmatprep.subr.bf16.mxu0 0
      %992 = vmatpush1.bf16.xpose.msra.mxu0 0
      %993 = vmatprep.subr.bf16.mxu0 0
      %994 = vmatpush1.bf16.xpose.msra.mxu0 0
      %995 = vmatprep.subr.bf16.mxu0 0
      %996 = vmatpush1.bf16.xpose.msra.mxu0 0
      %997 = vmatprep.subr.bf16.mxu0 0
      %998 = vmatpush1.bf16.xpose.msra.mxu0 0
      %999 = vmatprep.subr.bf16.mxu0 0
      %1000 = vmatpush1.bf16.xpose.msra.mxu0 0
      %1001 = vmatprep.subr.bf16.mxu0 0
      %1002 = vmatpush1.bf16.xpose.msra.mxu0 0
      %1003 = vmatprep.subr.bf16.mxu0 0
      %1004 = vmatpush1.bf16.xpose.msra.mxu0 %v987
      %1005 = vmatprep.subr.bf16.mxu0 0
      %1006 = vmatpush2.bf16.xpose.msra.mxu0 0
      %1007 = vmatprep.subr.bf16.mxu0 0
      %1008 = vmatpush2.bf16.xpose.msra.mxu0 0
      %1009 = vmatprep.subr.bf16.mxu0 0
      %1010 = vmatpush2.bf16.xpose.msra.mxu0 0
      %1011 = vmatprep.subr.bf16.mxu0 0
      %1012 = vmatpush2.bf16.xpose.msra.mxu0 0
      %1013 = vmatprep.subr.bf16.mxu0 0
      %1014 = vmatpush2.bf16.xpose.msra.mxu0 0
      %1015 = vmatprep.subr.bf16.mxu0 0
      %1016 = vmatpush2.bf16.xpose.msra.mxu0 0
      %1017 = vmatprep.subr.bf16.mxu0 0
      %1018 = vmatpush2.bf16.xpose.msra.mxu0 0
      %1019 = vmatprep.subr.bf16.mxu0 0
      %1020 = vmatpush2.bf16.xpose.msra.mxu0 0
      %1021 = vmatprep.mubr.bf16.mxu0 0
      %1022 = vmatmul.mubr.bf16.gmra.mxu0 %v984
      %v1023 = vpop.f32.mrf.mxu0
      %v1024 = vadd.f32 0.0, %v1023
      %v1025 = vpop.f32.mrf.mxu0
      %v1026 = vpop.f32.mrf.mxu0
      %v1027 = vpop.f32.mrf.mxu0
      %1028 = vdwg.mxu0
      %v1029 = vmul.f32 %v886, 0.35355338
      %v1030 = vmul.f32 %v932, 0.35355338
      %v1031 = vmul.f32 %v978, 0.35355338
      %v1032 = vmul.f32 %v1024, 0.35355338
      %s1033 = smul.u32 %s34, 8
      %v1034 = vlaneseq
      %v1035 = vshrl.u32 %v1034, 7
      %v1036 = vstv %s1033
      %v1037 = vadd.s32 %v1036, %v1035
      %v1038 = vlaneseq
      %v1039 = vand.u32 %v1038, 127
      %vm1040 = vcmp.gt.s32.totalorder %v1039, %v1037
      %v1041 = vsel %vm1040, -1e+30, %v1029
      %v1042 = vsel %vm1040, -1e+30, %v1030
      %v1043 = vsel %vm1040, -1e+30, %v1031
      %v1044 = vsel %vm1040, -1e+30, %v1032
      %v1045 = vsel %vm844, %v1041, -inf
      %1046 = vmax.xlane.f32.xlu0 %v1045
      %v1047 = vpop.xlane.xlu0 %1046
      %v1048 = vsel %vm844, %v1042, -inf
      %1049 = vmax.xlane.f32.xlu0 %v1048
      %v1050 = vpop.xlane.xlu0 %1049
      %v1051 = vsel %vm844, %v1043, -inf
      %1052 = vmax.xlane.f32.xlu0 %v1051
      %v1053 = vpop.xlane.xlu0 %1052
      %v1054 = vsel %vm844, %v1044, -inf
      %1055 = vmax.xlane.f32.xlu0 %v1054
      %v1056 = vpop.xlane.xlu0 %1055
      %v1057 = vsub.f32 %v1041, %v1047
      %v1058 = vsub.f32 %v1042, %v1050
      %v1059 = vsub.f32 %v1043, %v1053
      %v1060 = vsub.f32 %v1044, %v1056
      %v1061 = vmul.f32 %v1057, 1.442695
      %v1062 = vpow.pop %v1061
      %v1063 = vmul.f32 %v1058, 1.442695
      %v1064 = vpow.pop %v1063
      %v1065 = vmul.f32 %v1059, 1.442695
      %v1066 = vpow.pop %v1065
      %v1067 = vmul.f32 %v1060, 1.442695
      %v1068 = vpow.pop %v1067
      %v1069 = vsel %vm844, %v1062, 0.0
      %1070 = vadd.xlane.f32.xlu0 %v1069
      %v1071 = vpop.xlane.xlu0 %1070
      %v1072 = vsel %vm844, %v1064, 0.0
      %1073 = vadd.xlane.f32.xlu0 %v1072
      %v1074 = vpop.xlane.xlu0 %1073
      %v1075 = vsel %vm844, %v1066, 0.0
      %1076 = vadd.xlane.f32.xlu0 %v1075
      %v1077 = vpop.xlane.xlu0 %1076
      %v1078 = vsel %vm844, %v1068, 0.0
      %1079 = vadd.xlane.f32.xlu0 %v1078
      %v1080 = vpop.xlane.xlu0 %1079
      %v1081 = vrcp.pop %v1071
      %v1082 = vrcp.pop %v1074
      %v1083 = vrcp.pop %v1077
      %v1084 = vrcp.pop %v1080
      %v1085 = vmul.f32 %v1062, %v1081
      %v1086 = vmul.f32 %v1064, %v1082
      %v1087 = vmul.f32 %v1066, %v1083
      %v1088 = vmul.f32 %v1068, %v1084
      %v1089 = vpack.c.bf16 %v1085, %v1085
      %v1090 = vpack.c.bf16 %v1086, %v1086
      %v1091 = vpack.c.bf16 %v1087, %v1087
      %v1092 = vpack.c.bf16 %v1088, %v1088
      %v1094 = vsel %vm844, %v1089, 0
      %vm1096 = vcmask 1043456
      %v1098 = vsel %vm1096, %v822, 0
      %1100 = vmatprep.subr.bf16.mxu0 0
      %1101 = vmatpush1.bf16.msra.mxu0 0
      %1102 = vmatprep.subr.bf16.mxu0 0
      %1103 = vmatpush1.bf16.msra.mxu0 0
      %1104 = vmatprep.subr.bf16.mxu0 0
      %1105 = vmatpush1.bf16.msra.mxu0 0
      %1106 = vmatprep.subr.bf16.mxu0 0
      %1107 = vmatpush1.bf16.msra.mxu0 0
      %1108 = vmatprep.subr.bf16.mxu0 0
      %1109 = vmatpush1.bf16.msra.mxu0 0
      %1110 = vmatprep.subr.bf16.mxu0 0
      %1111 = vmatpush1.bf16.msra.mxu0 0
      %1112 = vmatprep.subr.bf16.mxu0 0
      %1113 = vmatpush1.bf16.msra.mxu0 0
      %1114 = vmatprep.subr.bf16.mxu0 0
      %1115 = vmatpush1.bf16.msra.mxu0 %v1098
      %1116 = vmatprep.subr.bf16.mxu0 0
      %1117 = vmatpush2.bf16.msra.mxu0 0
      %1118 = vmatprep.subr.bf16.mxu0 0
      %1119 = vmatpush2.bf16.msra.mxu0 0
      %1120 = vmatprep.subr.bf16.mxu0 0
      %1121 = vmatpush2.bf16.msra.mxu0 0
      %1122 = vmatprep.subr.bf16.mxu0 0
      %1123 = vmatpush2.bf16.msra.mxu0 0
      %1124 = vmatprep.subr.bf16.mxu0 0
      %1125 = vmatpush2.bf16.msra.mxu0 0
      %1126 = vmatprep.subr.bf16.mxu0 0
      %1127 = vmatpush2.bf16.msra.mxu0 0
      %1128 = vmatprep.subr.bf16.mxu0 0
      %1129 = vmatpush2.bf16.msra.mxu0 0
      %1130 = vmatprep.subr.bf16.mxu0 0
      %1131 = vmatpush2.bf16.msra.mxu0 0
      %1132 = vmatprep.mubr.bf16.mxu0 0
      %1133 = vmatmul.mubr.bf16.gmra.mxu0 %v1094
      %v1134 = vpop.f32.mrf.mxu0
      %v1135 = vadd.f32 0.0, %v1134
      %v1136 = vpop.f32.mrf.mxu0
      %v1137 = vpop.f32.mrf.mxu0
      %v1138 = vpop.f32.mrf.mxu0
      %1139 = vdwg.mxu0
      %v1141 = vsel %vm844, %v1090, 0
      %v1144 = vsel %vm1096, %v839, 0
      %1146 = vmatprep.subr.bf16.mxu0 0
      %1147 = vmatpush1.bf16.msra.mxu0 0
      %1148 = vmatprep.subr.bf16.mxu0 0
      %1149 = vmatpush1.bf16.msra.mxu0 0
      %1150 = vmatprep.subr.bf16.mxu0 0
      %1151 = vmatpush1.bf16.msra.mxu0 0
      %1152 = vmatprep.subr.bf16.mxu0 0
      %1153 = vmatpush1.bf16.msra.mxu0 0
      %1154 = vmatprep.subr.bf16.mxu0 0
      %1155 = vmatpush1.bf16.msra.mxu0 0
      %1156 = vmatprep.subr.bf16.mxu0 0
      %1157 = vmatpush1.bf16.msra.mxu0 0
      %1158 = vmatprep.subr.bf16.mxu0 0
      %1159 = vmatpush1.bf16.msra.mxu0 0
      %1160 = vmatprep.subr.bf16.mxu0 0
      %1161 = vmatpush1.bf16.msra.mxu0 %v1144
      %1162 = vmatprep.subr.bf16.mxu0 0
      %1163 = vmatpush2.bf16.msra.mxu0 0
      %1164 = vmatprep.subr.bf16.mxu0 0
      %1165 = vmatpush2.bf16.msra.mxu0 0
      %1166 = vmatprep.subr.bf16.mxu0 0
      %1167 = vmatpush2.bf16.msra.mxu0 0
      %1168 = vmatprep.subr.bf16.mxu0 0
      %1169 = vmatpush2.bf16.msra.mxu0 0
      %1170 = vmatprep.subr.bf16.mxu0 0
      %1171 = vmatpush2.bf16.msra.mxu0 0
      %1172 = vmatprep.subr.bf16.mxu0 0
      %1173 = vmatpush2.bf16.msra.mxu0 0
      %1174 = vmatprep.subr.bf16.mxu0 0
      %1175 = vmatpush2.bf16.msra.mxu0 0
      %1176 = vmatprep.subr.bf16.mxu0 0
      %1177 = vmatpush2.bf16.msra.mxu0 0
      %1178 = vmatprep.mubr.bf16.mxu0 0
      %1179 = vmatmul.mubr.bf16.gmra.mxu0 %v1141
      %v1180 = vpop.f32.mrf.mxu0
      %v1181 = vadd.f32 0.0, %v1180
      %v1182 = vpop.f32.mrf.mxu0
      %v1183 = vpop.f32.mrf.mxu0
      %v1184 = vpop.f32.mrf.mxu0
      %1185 = vdwg.mxu0
      %v1187 = vsel %vm844, %v1091, 0
      %v1190 = vsel %vm1096, %v841, 0
      %1192 = vmatprep.subr.bf16.mxu0 0
      %1193 = vmatpush1.bf16.msra.mxu0 0
      %1194 = vmatprep.subr.bf16.mxu0 0
      %1195 = vmatpush1.bf16.msra.mxu0 0
      %1196 = vmatprep.subr.bf16.mxu0 0
      %1197 = vmatpush1.bf16.msra.mxu0 0
      %1198 = vmatprep.subr.bf16.mxu0 0
      %1199 = vmatpush1.bf16.msra.mxu0 0
      %1200 = vmatprep.subr.bf16.mxu0 0
      %1201 = vmatpush1.bf16.msra.mxu0 0
      %1202 = vmatprep.subr.bf16.mxu0 0
      %1203 = vmatpush1.bf16.msra.mxu0 0
      %1204 = vmatprep.subr.bf16.mxu0 0
      %1205 = vmatpush1.bf16.msra.mxu0 0
      %1206 = vmatprep.subr.bf16.mxu0 0
      %1207 = vmatpush1.bf16.msra.mxu0 %v1190
      %1208 = vmatprep.subr.bf16.mxu0 0
      %1209 = vmatpush2.bf16.msra.mxu0 0
      %1210 = vmatprep.subr.bf16.mxu0 0
      %1211 = vmatpush2.bf16.msra.mxu0 0
      %1212 = vmatprep.subr.bf16.mxu0 0
      %1213 = vmatpush2.bf16.msra.mxu0 0
      %1214 = vmatprep.subr.bf16.mxu0 0
      %1215 = vmatpush2.bf16.msra.mxu0 0
      %1216 = vmatprep.subr.bf16.mxu0 0
      %1217 = vmatpush2.bf16.msra.mxu0 0
      %1218 = vmatprep.subr.bf16.mxu0 0
      %1219 = vmatpush2.bf16.msra.mxu0 0
      %1220 = vmatprep.subr.bf16.mxu0 0
      %1221 = vmatpush2.bf16.msra.mxu0 0
      %1222 = vmatprep.subr.bf16.mxu0 0
      %1223 = vmatpush2.bf16.msra.mxu0 0
      %1224 = vmatprep.mubr.bf16.mxu0 0
      %1225 = vmatmul.mubr.bf16.gmra.mxu0 %v1187
      %v1226 = vpop.f32.mrf.mxu0
      %v1227 = vadd.f32 0.0, %v1226
      %v1228 = vpop.f32.mrf.mxu0
      %v1229 = vpop.f32.mrf.mxu0
      %v1230 = vpop.f32.mrf.mxu0
      %1231 = vdwg.mxu0
      %v1233 = vsel %vm844, %v1092, 0
      %v1236 = vsel %vm1096, %v843, 0
      %1238 = vmatprep.subr.bf16.mxu0 0
      %1239 = vmatpush1.bf16.msra.mxu0 0
      %1240 = vmatprep.subr.bf16.mxu0 0
      %1241 = vmatpush1.bf16.msra.mxu0 0
      %1242 = vmatprep.subr.bf16.mxu0 0
      %1243 = vmatpush1.bf16.msra.mxu0 0
      %1244 = vmatprep.subr.bf16.mxu0 0
      %1245 = vmatpush1.bf16.msra.mxu0 0
      %1246 = vmatprep.subr.bf16.mxu0 0
      %1247 = vmatpush1.bf16.msra.mxu0 0
      %1248 = vmatprep.subr.bf16.mxu0 0
      %1249 = vmatpush1.bf16.msra.mxu0 0
      %1250 = vmatprep.subr.bf16.mxu0 0
      %1251 = vmatpush1.bf16.msra.mxu0 0
      %1252 = vmatprep.subr.bf16.mxu0 0
      %1253 = vmatpush1.bf16.msra.mxu0 %v1236
      %1254 = vmatprep.subr.bf16.mxu0 0
      %1255 = vmatpush2.bf16.msra.mxu0 0
      %1256 = vmatprep.subr.bf16.mxu0 0
      %1257 = vmatpush2.bf16.msra.mxu0 0
      %1258 = vmatprep.subr.bf16.mxu0 0
      %1259 = vmatpush2.bf16.msra.mxu0 0
      %1260 = vmatprep.subr.bf16.mxu0 0
      %1261 = vmatpush2.bf16.msra.mxu0 0
      %1262 = vmatprep.subr.bf16.mxu0 0
      %1263 = vmatpush2.bf16.msra.mxu0 0
      %1264 = vmatprep.subr.bf16.mxu0 0
      %1265 = vmatpush2.bf16.msra.mxu0 0
      %1266 = vmatprep.subr.bf16.mxu0 0
      %1267 = vmatpush2.bf16.msra.mxu0 0
      %1268 = vmatprep.subr.bf16.mxu0 0
      %1269 = vmatpush2.bf16.msra.mxu0 0
      %1270 = vmatprep.mubr.bf16.mxu0 0
      %1271 = vmatmul.mubr.bf16.gmra.mxu0 %v1233
      %v1272 = vpop.f32.mrf.mxu0
      %v1273 = vadd.f32 0.0, %v1272
      %v1274 = vpop.f32.mrf.mxu0
      %v1275 = vpop.f32.mrf.mxu0
      %v1276 = vpop.f32.mrf.mxu0
      %1277 = vdwg.mxu0
      %1279 = vrot.lane.b32.xlu0 %v1181, 8
      %v1280 = vpop.permute.xlu0 %1279
      %1283 = vrot.lane.b32.xlu0 %v1227, 16
      %v1284 = vpop.permute.xlu0 %1283
      %1287 = vrot.lane.b32.xlu0 %v1273, 24
      %v1288 = vpop.permute.xlu0 %1287
      %v1290 = vsel %vm844, %v1135, %v1280
      %vm1291 = vcmask 130048
      %v1292 = vsel %vm1291, %v1290, %v1284
      %vm1293 = vcmask 195584
      %v1294 = vsel %vm1293, %v1292, %v1288
      %v1295 = vpack.c.bf16 %v1294, %v1294
      %v1296 = vld [vmem:[%s8] sm:$0xf]
      %v1297 = vld [vmem:[%s8 + $0x4] sm:$0xf]
      %v1298 = vld [vmem:[%s8 + $0x8] sm:$0xf]
      %v1299 = vld [vmem:[%s8 + $0xc] sm:$0xf]
      %v1300 = vld [vmem:[%s9] sm:$0x1]
      %v1302 = vlaneseq
      %v1303 = vshrl.u32 %v1302, 7
      %v1304 = vsub.s32 0, %v1303
      %v1305 = vrot.slane %v1300, %v1304
      %v1311 = vunpack.c.l.b16 %v1296
      %v1312 = vunpack.c.l.b16 %v1297
      %v1313 = vunpack.c.l.b16 %v1298
      %v1314 = vunpack.c.l.b16 %v1299
      %v1315 = vpack.c.b16 %v1312, %v1311
      %v1316 = vpack.c.b16 %v1314, %v1313
      %v1320 = vsel %vm647, %v1295, 0
      %1322 = vmatprep.subr.bf16.mxu0 0
      %1323 = vmatpush1.bf16.msra.mxu0 0
      %1324 = vmatprep.subr.bf16.mxu0 0
      %1325 = vmatpush1.bf16.msra.mxu0 0
      %1326 = vmatprep.subr.bf16.mxu0 0
      %1327 = vmatpush1.bf16.msra.mxu0 0
      %1328 = vmatprep.subr.bf16.mxu0 0
      %1329 = vmatpush1.bf16.msra.mxu0 0
      %1330 = vmatprep.subr.bf16.mxu0 0
      %1331 = vmatpush1.bf16.msra.mxu0 0
      %1332 = vmatprep.subr.bf16.mxu0 0
      %1333 = vmatpush1.bf16.msra.mxu0 0
      %1334 = vmatprep.subr.bf16.mxu0 0
      %1335 = vmatpush1.bf16.msra.mxu0 %v1316
      %1336 = vmatprep.subr.bf16.mxu0 0
      %1337 = vmatpush1.bf16.msra.mxu0 %v1315
      %1338 = vmatprep.subr.bf16.mxu0 0
      %1339 = vmatpush2.bf16.msra.mxu0 0
      %1340 = vmatprep.subr.bf16.mxu0 0
      %1341 = vmatpush2.bf16.msra.mxu0 0
      %1342 = vmatprep.subr.bf16.mxu0 0
      %1343 = vmatpush2.bf16.msra.mxu0 0
      %1344 = vmatprep.subr.bf16.mxu0 0
      %1345 = vmatpush2.bf16.msra.mxu0 0
      %1346 = vmatprep.subr.bf16.mxu0 0
      %1347 = vmatpush2.bf16.msra.mxu0 0
      %1348 = vmatprep.subr.bf16.mxu0 0
      %1349 = vmatpush2.bf16.msra.mxu0 0
      %1350 = vmatprep.subr.bf16.mxu0 0
      %1351 = vmatpush2.bf16.msra.mxu0 0
      %1352 = vmatprep.subr.bf16.mxu0 0
      %1353 = vmatpush2.bf16.msra.mxu0 0
      %1354 = vmatprep.mubr.bf16.mxu0 0
      %1355 = vmatmul.mubr.bf16.gmra.mxu0 %v1320
      %v1356 = vpop.f32.mrf.mxu0
      %v1357 = vadd.f32 %v1305, %v1356
      %v1358 = vpop.f32.mrf.mxu0
      %v1359 = vpop.f32.mrf.mxu0
      %v1360 = vpop.f32.mrf.mxu0
      %1361 = vdwg.mxu0
      %v1362 = vadd.f32 %v620, %v1357
      %v1363 = vld [vmem:[%s14] sm:$0x1]
      %v1364 = vld [vmem:[%s15] sm:$0x1]
      %v1365 = vsel %vm647, %v1362, 0.0
      %1366 = vadd.xlane.f32.xlu0 %v1365
      %v1367 = vpop.xlane.xlu0 %1366
      %v1368 = vrcp.pop 32.0
      %v1369 = vmul.f32 %v1367, %v1368
      %v1370 = vsub.f32 %v1362, %v1369
      %v1371 = vmul.f32 %v1370, %v1370
      %v1372 = vsel %vm647, %v1371, 0.0
      %1373 = vadd.xlane.f32.xlu0 %v1372
      %v1374 = vpop.xlane.xlu0 %1373
      %v1375 = vmul.f32 %v1374, %v1368
      %v1376 = vadd.f32 %v1375, 1e-05
      %v1377 = vrsqrt.pop %v1376
      %v1378 = vmul.f32 %v1370, %v1377
      %v1380 = vlaneseq
      %v1381 = vshrl.u32 %v1380, 7
      %v1382 = vsub.s32 0, %v1381
      %v1383 = vrot.slane %v1363, %v1382
      %v1385 = vmul.f32 %v1378, %v1383
      %v1387 = vlaneseq
      %v1388 = vshrl.u32 %v1387, 7
      %v1389 = vsub.s32 0, %v1388
      %v1390 = vrot.slane %v1364, %v1389
      %v1392 = vadd.f32 %v1385, %v1390
      %v1393 = vpack.c.bf16 %v1392, %v1392
      %v1394 = vld [vmem:[%s10] sm:$0xff]
      %v1395 = vld [vmem:[%s10 + $0x8] sm:$0xff]
      %v1396 = vld [vmem:[%s10 + $0x10] sm:$0xff]
      %v1397 = vld [vmem:[%s10 + $0x18] sm:$0xff]
      %v1398 = vld [vmem:[%s10 + $0x20] sm:$0xff]
      %v1399 = vld [vmem:[%s10 + $0x28] sm:$0xff]
      %v1400 = vld [vmem:[%s10 + $0x30] sm:$0xff]
      %v1401 = vld [vmem:[%s10 + $0x38] sm:$0xff]
      %v1402 = vld [vmem:[%s10 + $0x40] sm:$0xff]
      %v1403 = vld [vmem:[%s10 + $0x48] sm:$0xff]
      %v1404 = vld [vmem:[%s10 + $0x50] sm:$0xff]
      %v1405 = vld [vmem:[%s10 + $0x58] sm:$0xff]
      %v1406 = vld [vmem:[%s10 + $0x60] sm:$0xff]
      %v1407 = vld [vmem:[%s10 + $0x68] sm:$0xff]
      %v1408 = vld [vmem:[%s10 + $0x70] sm:$0xff]
      %v1409 = vld [vmem:[%s10 + $0x78] sm:$0xff]
      %v1410 = vld [vmem:[%s10 + $0x80] sm:$0xff]
      %v1411 = vld [vmem:[%s10 + $0x88] sm:$0xff]
      %v1412 = vld [vmem:[%s10 + $0x90] sm:$0xff]
      %v1413 = vld [vmem:[%s10 + $0x98] sm:$0xff]
      %v1414 = vld [vmem:[%s10 + $0xa0] sm:$0xff]
      %v1415 = vld [vmem:[%s10 + $0xa8] sm:$0xff]
      %v1416 = vld [vmem:[%s10 + $0xb0] sm:$0xff]
      %v1417 = vld [vmem:[%s10 + $0xb8] sm:$0xff]
      %v1418 = vld [vmem:[%s10 + $0xc0] sm:$0xff]
      %v1419 = vld [vmem:[%s10 + $0xc8] sm:$0xff]
      %v1420 = vld [vmem:[%s10 + $0xd0] sm:$0xff]
      %v1421 = vld [vmem:[%s10 + $0xd8] sm:$0xff]
      %v1422 = vld [vmem:[%s10 + $0xe0] sm:$0xff]
      %v1423 = vld [vmem:[%s10 + $0xe8] sm:$0xff]
      %v1424 = vld [vmem:[%s10 + $0xf0] sm:$0xff]
      %v1425 = vld [vmem:[%s10 + $0xf8] sm:$0xff]
      %v1426 = vld [vmem:[%s11] sm:$0xff]
      %v1427 = vld [vmem:[%s11 + $0x8] sm:$0xff]
      %v1430 = vlaneseq
      %v1431 = vshrl.u32 %v1430, 7
      %v1432 = vsub.s32 0, %v1431
      %v1433 = vrot.slane %v1426, %v1432
      %v1434 = vlaneseq
      %v1435 = vshrl.u32 %v1434, 7
      %v1436 = vsub.s32 1, %v1435
      %v1437 = vrot.slane %v1426, %v1436
      %v1438 = vlaneseq
      %v1439 = vshrl.u32 %v1438, 7
      %v1440 = vsub.s32 2, %v1439
      %v1441 = vrot.slane %v1426, %v1440
      %v1442 = vlaneseq
      %v1443 = vshrl.u32 %v1442, 7
      %v1444 = vsub.s32 3, %v1443
      %v1445 = vrot.slane %v1426, %v1444
      %v1446 = vlaneseq
      %v1447 = vshrl.u32 %v1446, 7
      %v1448 = vsub.s32 4, %v1447
      %v1449 = vrot.slane %v1426, %v1448
      %v1450 = vlaneseq
      %v1451 = vshrl.u32 %v1450, 7
      %v1452 = vsub.s32 5, %v1451
      %v1453 = vrot.slane %v1426, %v1452
      %v1454 = vlaneseq
      %v1455 = vshrl.u32 %v1454, 7
      %v1456 = vsub.s32 6, %v1455
      %v1457 = vrot.slane %v1426, %v1456
      %v1458 = vlaneseq
      %v1459 = vshrl.u32 %v1458, 7
      %v1460 = vsub.s32 7, %v1459
      %v1461 = vrot.slane %v1426, %v1460
      %v1462 = vlaneseq
      %v1463 = vshrl.u32 %v1462, 7
      %v1464 = vsub.s32 0, %v1463
      %v1465 = vrot.slane %v1427, %v1464
      %v1466 = vlaneseq
      %v1467 = vshrl.u32 %v1466, 7
      %v1468 = vsub.s32 1, %v1467
      %v1469 = vrot.slane %v1427, %v1468
      %v1470 = vlaneseq
      %v1471 = vshrl.u32 %v1470, 7
      %v1472 = vsub.s32 2, %v1471
      %v1473 = vrot.slane %v1427, %v1472
      %v1474 = vlaneseq
      %v1475 = vshrl.u32 %v1474, 7
      %v1476 = vsub.s32 3, %v1475
      %v1477 = vrot.slane %v1427, %v1476
      %v1478 = vlaneseq
      %v1479 = vshrl.u32 %v1478, 7
      %v1480 = vsub.s32 4, %v1479
      %v1481 = vrot.slane %v1427, %v1480
      %v1482 = vlaneseq
      %v1483 = vshrl.u32 %v1482, 7
      %v1484 = vsub.s32 5, %v1483
      %v1485 = vrot.slane %v1427, %v1484
      %v1486 = vlaneseq
      %v1487 = vshrl.u32 %v1486, 7
      %v1488 = vsub.s32 6, %v1487
      %v1489 = vrot.slane %v1427, %v1488
      %v1490 = vlaneseq
      %v1491 = vshrl.u32 %v1490, 7
      %v1492 = vsub.s32 7, %v1491
      %v1493 = vrot.slane %v1427, %v1492
      %v1542 = vunpack.c.l.b16 %v1394
      %v1543 = vunpack.c.h.b16 %v1394
      %v1544 = vunpack.c.l.b16 %v1395
      %v1545 = vunpack.c.h.b16 %v1395
      %v1546 = vunpack.c.l.b16 %v1396
      %v1547 = vunpack.c.h.b16 %v1396
      %v1548 = vunpack.c.l.b16 %v1397
      %v1549 = vunpack.c.h.b16 %v1397
      %v1550 = vunpack.c.l.b16 %v1398
      %v1551 = vunpack.c.h.b16 %v1398
      %v1552 = vunpack.c.l.b16 %v1399
      %v1553 = vunpack.c.h.b16 %v1399
      %v1554 = vunpack.c.l.b16 %v1400
      %v1555 = vunpack.c.h.b16 %v1400
      %v1556 = vunpack.c.l.b16 %v1401
      %v1557 = vunpack.c.h.b16 %v1401
      %v1558 = vunpack.c.l.b16 %v1402
      %v1559 = vunpack.c.h.b16 %v1402
      %v1560 = vunpack.c.l.b16 %v1403
      %v1561 = vunpack.c.h.b16 %v1403
      %v1562 = vunpack.c.l.b16 %v1404
      %v1563 = vunpack.c.h.b16 %v1404
      %v1564 = vunpack.c.l.b16 %v1405
      %v1565 = vunpack.c.h.b16 %v1405
      %v1566 = vunpack.c.l.b16 %v1406
      %v1567 = vunpack.c.h.b16 %v1406
      %v1568 = vunpack.c.l.b16 %v1407
      %v1569 = vunpack.c.h.b16 %v1407
      %v1570 = vunpack.c.l.b16 %v1408
      %v1571 = vunpack.c.h.b16 %v1408
      %v1572 = vunpack.c.l.b16 %v1409
      %v1573 = vunpack.c.h.b16 %v1409
      %v1574 = vunpack.c.l.b16 %v1410
      %v1575 = vunpack.c.h.b16 %v1410
      %v1576 = vunpack.c.l.b16 %v1411
      %v1577 = vunpack.c.h.b16 %v1411
      %v1578 = vunpack.c.l.b16 %v1412
      %v1579 = vunpack.c.h.b16 %v1412
      %v1580 = vunpack.c.l.b16 %v1413
      %v1581 = vunpack.c.h.b16 %v1413
      %v1582 = vunpack.c.l.b16 %v1414
      %v1583 = vunpack.c.h.b16 %v1414
      %v1584 = vunpack.c.l.b16 %v1415
      %v1585 = vunpack.c.h.b16 %v1415
      %v1586 = vunpack.c.l.b16 %v1416
      %v1587 = vunpack.c.h.b16 %v1416
      %v1588 = vunpack.c.l.b16 %v1417
      %v1589 = vunpack.c.h.b16 %v1417
      %v1590 = vunpack.c.l.b16 %v1418
      %v1591 = vunpack.c.h.b16 %v1418
      %v1592 = vunpack.c.l.b16 %v1419
      %v1593 = vunpack.c.h.b16 %v1419
      %v1594 = vunpack.c.l.b16 %v1420
      %v1595 = vunpack.c.h.b16 %v1420
      %v1596 = vunpack.c.l.b16 %v1421
      %v1597 = vunpack.c.h.b16 %v1421
      %v1598 = vunpack.c.l.b16 %v1422
      %v1599 = vunpack.c.h.b16 %v1422
      %v1600 = vunpack.c.l.b16 %v1423
      %v1601 = vunpack.c.h.b16 %v1423
      %v1602 = vunpack.c.l.b16 %v1424
      %v1603 = vunpack.c.h.b16 %v1424
      %v1604 = vunpack.c.l.b16 %v1425
      %v1605 = vunpack.c.h.b16 %v1425
      %v1606 = vpack.c.b16 %v1558, %v1542
      %v1607 = vpack.c.b16 %v1559, %v1543
      %v1608 = vpack.c.b16 %v1560, %v1544
      %v1609 = vpack.c.b16 %v1561, %v1545
      %v1610 = vpack.c.b16 %v1562, %v1546
      %v1611 = vpack.c.b16 %v1563, %v1547
      %v1612 = vpack.c.b16 %v1564, %v1548
      %v1613 = vpack.c.b16 %v1565, %v1549
      %v1614 = vpack.c.b16 %v1566, %v1550
      %v1615 = vpack.c.b16 %v1567, %v1551
      %v1616 = vpack.c.b16 %v1568, %v1552
      %v1617 = vpack.c.b16 %v1569, %v1553
      %v1618 = vpack.c.b16 %v1570, %v1554
      %v1619 = vpack.c.b16 %v1571, %v1555
      %v1620 = vpack.c.b16 %v1572, %v1556
      %v1621 = vpack.c.b16 %v1573, %v1557
      %v1622 = vpack.c.b16 %v1590, %v1574
      %v1623 = vpack.c.b16 %v1591, %v1575
      %v1624 = vpack.c.b16 %v1592, %v1576
      %v1625 = vpack.c.b16 %v1593, %v1577
      %v1626 = vpack.c.b16 %v1594, %v1578
      %v1627 = vpack.c.b16 %v1595, %v1579
      %v1628 = vpack.c.b16 %v1596, %v1580
      %v1629 = vpack.c.b16 %v1597, %v1581
      %v1630 = vpack.c.b16 %v1598, %v1582
      %v1631 = vpack.c.b16 %v1599, %v1583
      %v1632 = vpack.c.b16 %v1600, %v1584
      %v1633 = vpack.c.b16 %v1601, %v1585
      %v1634 = vpack.c.b16 %v1602, %v1586
      %v1635 = vpack.c.b16 %v1603, %v1587
      %v1636 = vpack.c.b16 %v1604, %v1588
      %v1637 = vpack.c.b16 %v1605, %v1589
      %v1671 = vsel %vm647, %v1393, 0
      %1673 = vmatprep.subr.bf16.mxu0 0
      %1674 = vmatpush1.bf16.msra.mxu0 0
      %1675 = vmatprep.subr.bf16.mxu0 0
      %1676 = vmatpush1.bf16.msra.mxu0 0
      %1677 = vmatprep.subr.bf16.mxu0 0
      %1678 = vmatpush1.bf16.msra.mxu0 0
      %1679 = vmatprep.subr.bf16.mxu0 0
      %1680 = vmatpush1.bf16.msra.mxu0 0
      %1681 = vmatprep.subr.bf16.mxu0 0
      %1682 = vmatpush1.bf16.msra.mxu0 0
      %1683 = vmatprep.subr.bf16.mxu0 0
      %1684 = vmatpush1.bf16.msra.mxu0 0
      %1685 = vmatprep.subr.bf16.mxu0 %v1623
      %1686 = vmatpush1.bf16.msra.mxu0 %v1622
      %1687 = vmatprep.subr.bf16.mxu0 %v1607
      %1688 = vmatpush1.bf16.msra.mxu0 %v1606
      %1689 = vmatprep.subr.bf16.mxu0 0
      %1690 = vmatpush2.bf16.msra.mxu0 0
      %1691 = vmatprep.subr.bf16.mxu0 0
      %1692 = vmatpush2.bf16.msra.mxu0 0
      %1693 = vmatprep.subr.bf16.mxu0 0
      %1694 = vmatpush2.bf16.msra.mxu0 0
      %1695 = vmatprep.subr.bf16.mxu0 0
      %1696 = vmatpush2.bf16.msra.mxu0 0
      %1697 = vmatprep.subr.bf16.mxu0 0
      %1698 = vmatpush2.bf16.msra.mxu0 0
      %1699 = vmatprep.subr.bf16.mxu0 0
      %1700 = vmatpush2.bf16.msra.mxu0 0
      %1701 = vmatprep.subr.bf16.mxu0 0
      %1702 = vmatpush2.bf16.msra.mxu0 0
      %1703 = vmatprep.subr.bf16.mxu0 0
      %1704 = vmatpush2.bf16.msra.mxu0 0
      %1705 = vmatprep.mubr.bf16.mxu0 0
      %1706 = vmatmul.mubr.bf16.gmra.mxu0 %v1671
      %v1707 = vpop.f32.mrf.mxu0
      %v1708 = vadd.f32 %v1433, %v1707
      %v1709 = vpop.f32.mrf.mxu0
      %v1710 = vadd.f32 %v1437, %v1709
      %v1711 = vpop.f32.mrf.mxu0
      %v1712 = vpop.f32.mrf.mxu0
      %1713 = vdwg.mxu0
      %1714 = vmatprep.subr.bf16.mxu0 0
      %1715 = vmatpush1.bf16.msra.mxu0 0
      %1716 = vmatprep.subr.bf16.mxu0 0
      %1717 = vmatpush1.bf16.msra.mxu0 0
      %1718 = vmatprep.subr.bf16.mxu0 0
      %1719 = vmatpush1.bf16.msra.mxu0 0
      %1720 = vmatprep.subr.bf16.mxu0 0
      %1721 = vmatpush1.bf16.msra.mxu0 0
      %1722 = vmatprep.subr.bf16.mxu0 0
      %1723 = vmatpush1.bf16.msra.mxu0 0
      %1724 = vmatprep.subr.bf16.mxu0 0
      %1725 = vmatpush1.bf16.msra.mxu0 0
      %1726 = vmatprep.subr.bf16.mxu0 %v1625
      %1727 = vmatpush1.bf16.msra.mxu0 %v1624
      %1728 = vmatprep.subr.bf16.mxu0 %v1609
      %1729 = vmatpush1.bf16.msra.mxu0 %v1608
      %1730 = vmatprep.subr.bf16.mxu0 0
      %1731 = vmatpush2.bf16.msra.mxu0 0
      %1732 = vmatprep.subr.bf16.mxu0 0
      %1733 = vmatpush2.bf16.msra.mxu0 0
      %1734 = vmatprep.subr.bf16.mxu0 0
      %1735 = vmatpush2.bf16.msra.mxu0 0
      %1736 = vmatprep.subr.bf16.mxu0 0
      %1737 = vmatpush2.bf16.msra.mxu0 0
      %1738 = vmatprep.subr.bf16.mxu0 0
      %1739 = vmatpush2.bf16.msra.mxu0 0
      %1740 = vmatprep.subr.bf16.mxu0 0
      %1741 = vmatpush2.bf16.msra.mxu0 0
      %1742 = vmatprep.subr.bf16.mxu0 0
      %1743 = vmatpush2.bf16.msra.mxu0 0
      %1744 = vmatprep.subr.bf16.mxu0 0
      %1745 = vmatpush2.bf16.msra.mxu0 0
      %1746 = vmatprep.mubr.bf16.mxu0 0
      %1747 = vmatmul.mubr.bf16.gmra.mxu0 %v1671
      %v1748 = vpop.f32.mrf.mxu0
      %v1749 = vadd.f32 %v1441, %v1748
      %v1750 = vpop.f32.mrf.mxu0
      %v1751 = vadd.f32 %v1445, %v1750
      %v1752 = vpop.f32.mrf.mxu0
      %v1753 = vpop.f32.mrf.mxu0
      %1754 = vdwg.mxu0
      %1755 = vmatprep.subr.bf16.mxu0 0
      %1756 = vmatpush1.bf16.msra.mxu0 0
      %1757 = vmatprep.subr.bf16.mxu0 0
      %1758 = vmatpush1.bf16.msra.mxu0 0
      %1759 = vmatprep.subr.bf16.mxu0 0
      %1760 = vmatpush1.bf16.msra.mxu0 0
      %1761 = vmatprep.subr.bf16.mxu0 0
      %1762 = vmatpush1.bf16.msra.mxu0 0
      %1763 = vmatprep.subr.bf16.mxu0 0
      %1764 = vmatpush1.bf16.msra.mxu0 0
      %1765 = vmatprep.subr.bf16.mxu0 0
      %1766 = vmatpush1.bf16.msra.mxu0 0
      %1767 = vmatprep.subr.bf16.mxu0 %v1627
      %1768 = vmatpush1.bf16.msra.mxu0 %v1626
      %1769 = vmatprep.subr.bf16.mxu0 %v1611
      %1770 = vmatpush1.bf16.msra.mxu0 %v1610
      %1771 = vmatprep.subr.bf16.mxu0 0
      %1772 = vmatpush2.bf16.msra.mxu0 0
      %1773 = vmatprep.subr.bf16.mxu0 0
      %1774 = vmatpush2.bf16.msra.mxu0 0
      %1775 = vmatprep.subr.bf16.mxu0 0
      %1776 = vmatpush2.bf16.msra.mxu0 0
      %1777 = vmatprep.subr.bf16.mxu0 0
      %1778 = vmatpush2.bf16.msra.mxu0 0
      %1779 = vmatprep.subr.bf16.mxu0 0
      %1780 = vmatpush2.bf16.msra.mxu0 0
      %1781 = vmatprep.subr.bf16.mxu0 0
      %1782 = vmatpush2.bf16.msra.mxu0 0
      %1783 = vmatprep.subr.bf16.mxu0 0
      %1784 = vmatpush2.bf16.msra.mxu0 0
      %1785 = vmatprep.subr.bf16.mxu0 0
      %1786 = vmatpush2.bf16.msra.mxu0 0
      %1787 = vmatprep.mubr.bf16.mxu0 0
      %1788 = vmatmul.mubr.bf16.gmra.mxu0 %v1671
      %v1789 = vpop.f32.mrf.mxu0
      %v1790 = vadd.f32 %v1449, %v1789
      %v1791 = vpop.f32.mrf.mxu0
      %v1792 = vadd.f32 %v1453, %v1791
      %v1793 = vpop.f32.mrf.mxu0
      %v1794 = vpop.f32.mrf.mxu0
      %1795 = vdwg.mxu0
      %1796 = vmatprep.subr.bf16.mxu0 0
      %1797 = vmatpush1.bf16.msra.mxu0 0
      %1798 = vmatprep.subr.bf16.mxu0 0
      %1799 = vmatpush1.bf16.msra.mxu0 0
      %1800 = vmatprep.subr.bf16.mxu0 0
      %1801 = vmatpush1.bf16.msra.mxu0 0
      %1802 = vmatprep.subr.bf16.mxu0 0
      %1803 = vmatpush1.bf16.msra.mxu0 0
      %1804 = vmatprep.subr.bf16.mxu0 0
      %1805 = vmatpush1.bf16.msra.mxu0 0
      %1806 = vmatprep.subr.bf16.mxu0 0
      %1807 = vmatpush1.bf16.msra.mxu0 0
      %1808 = vmatprep.subr.bf16.mxu0 %v1629
      %1809 = vmatpush1.bf16.msra.mxu0 %v1628
      %1810 = vmatprep.subr.bf16.mxu0 %v1613
      %1811 = vmatpush1.bf16.msra.mxu0 %v1612
      %1812 = vmatprep.subr.bf16.mxu0 0
      %1813 = vmatpush2.bf16.msra.mxu0 0
      %1814 = vmatprep.subr.bf16.mxu0 0
      %1815 = vmatpush2.bf16.msra.mxu0 0
      %1816 = vmatprep.subr.bf16.mxu0 0
      %1817 = vmatpush2.bf16.msra.mxu0 0
      %1818 = vmatprep.subr.bf16.mxu0 0
      %1819 = vmatpush2.bf16.msra.mxu0 0
      %1820 = vmatprep.subr.bf16.mxu0 0
      %1821 = vmatpush2.bf16.msra.mxu0 0
      %1822 = vmatprep.subr.bf16.mxu0 0
      %1823 = vmatpush2.bf16.msra.mxu0 0
      %1824 = vmatprep.subr.bf16.mxu0 0
      %1825 = vmatpush2.bf16.msra.mxu0 0
      %1826 = vmatprep.subr.bf16.mxu0 0
      %1827 = vmatpush2.bf16.msra.mxu0 0
      %1828 = vmatprep.mubr.bf16.mxu0 0
      %1829 = vmatmul.mubr.bf16.gmra.mxu0 %v1671
      %v1830 = vpop.f32.mrf.mxu0
      %v1831 = vadd.f32 %v1457, %v1830
      %v1832 = vpop.f32.mrf.mxu0
      %v1833 = vadd.f32 %v1461, %v1832
      %v1834 = vpop.f32.mrf.mxu0
      %v1835 = vpop.f32.mrf.mxu0
      %1836 = vdwg.mxu0
      %1837 = vmatprep.subr.bf16.mxu0 0
      %1838 = vmatpush1.bf16.msra.mxu0 0
      %1839 = vmatprep.subr.bf16.mxu0 0
      %1840 = vmatpush1.bf16.msra.mxu0 0
      %1841 = vmatprep.subr.bf16.mxu0 0
      %1842 = vmatpush1.bf16.msra.mxu0 0
      %1843 = vmatprep.subr.bf16.mxu0 0
      %1844 = vmatpush1.bf16.msra.mxu0 0
      %1845 = vmatprep.subr.bf16.mxu0 0
      %1846 = vmatpush1.bf16.msra.mxu0 0
      %1847 = vmatprep.subr.bf16.mxu0 0
      %1848 = vmatpush1.bf16.msra.mxu0 0
      %1849 = vmatprep.subr.bf16.mxu0 %v1631
      %1850 = vmatpush1.bf16.msra.mxu0 %v1630
      %1851 = vmatprep.subr.bf16.mxu0 %v1615
      %1852 = vmatpush1.bf16.msra.mxu0 %v1614
      %1853 = vmatprep.subr.bf16.mxu0 0
      %1854 = vmatpush2.bf16.msra.mxu0 0
      %1855 = vmatprep.subr.bf16.mxu0 0
      %1856 = vmatpush2.bf16.msra.mxu0 0
      %1857 = vmatprep.subr.bf16.mxu0 0
      %1858 = vmatpush2.bf16.msra.mxu0 0
      %1859 = vmatprep.subr.bf16.mxu0 0
      %1860 = vmatpush2.bf16.msra.mxu0 0
      %1861 = vmatprep.subr.bf16.mxu0 0
      %1862 = vmatpush2.bf16.msra.mxu0 0
      %1863 = vmatprep.subr.bf16.mxu0 0
      %1864 = vmatpush2.bf16.msra.mxu0 0
      %1865 = vmatprep.subr.bf16.mxu0 0
      %1866 = vmatpush2.bf16.msra.mxu0 0
      %1867 = vmatprep.subr.bf16.mxu0 0
      %1868 = vmatpush2.bf16.msra.mxu0 0
      %1869 = vmatprep.mubr.bf16.mxu0 0
      %1870 = vmatmul.mubr.bf16.gmra.mxu0 %v1671
      %v1871 = vpop.f32.mrf.mxu0
      %v1872 = vadd.f32 %v1465, %v1871
      %v1873 = vpop.f32.mrf.mxu0
      %v1874 = vadd.f32 %v1469, %v1873
      %v1875 = vpop.f32.mrf.mxu0
      %v1876 = vpop.f32.mrf.mxu0
      %1877 = vdwg.mxu0
      %1878 = vmatprep.subr.bf16.mxu0 0
      %1879 = vmatpush1.bf16.msra.mxu0 0
      %1880 = vmatprep.subr.bf16.mxu0 0
      %1881 = vmatpush1.bf16.msra.mxu0 0
      %1882 = vmatprep.subr.bf16.mxu0 0
      %1883 = vmatpush1.bf16.msra.mxu0 0
      %1884 = vmatprep.subr.bf16.mxu0 0
      %1885 = vmatpush1.bf16.msra.mxu0 0
      %1886 = vmatprep.subr.bf16.mxu0 0
      %1887 = vmatpush1.bf16.msra.mxu0 0
      %1888 = vmatprep.subr.bf16.mxu0 0
      %1889 = vmatpush1.bf16.msra.mxu0 0
      %1890 = vmatprep.subr.bf16.mxu0 %v1633
      %1891 = vmatpush1.bf16.msra.mxu0 %v1632
      %1892 = vmatprep.subr.bf16.mxu0 %v1617
      %1893 = vmatpush1.bf16.msra.mxu0 %v1616
      %1894 = vmatprep.subr.bf16.mxu0 0
      %1895 = vmatpush2.bf16.msra.mxu0 0
      %1896 = vmatprep.subr.bf16.mxu0 0
      %1897 = vmatpush2.bf16.msra.mxu0 0
      %1898 = vmatprep.subr.bf16.mxu0 0
      %1899 = vmatpush2.bf16.msra.mxu0 0
      %1900 = vmatprep.subr.bf16.mxu0 0
      %1901 = vmatpush2.bf16.msra.mxu0 0
      %1902 = vmatprep.subr.bf16.mxu0 0
      %1903 = vmatpush2.bf16.msra.mxu0 0
      %1904 = vmatprep.subr.bf16.mxu0 0
      %1905 = vmatpush2.bf16.msra.mxu0 0
      %1906 = vmatprep.subr.bf16.mxu0 0
      %1907 = vmatpush2.bf16.msra.mxu0 0
      %1908 = vmatprep.subr.bf16.mxu0 0
      %1909 = vmatpush2.bf16.msra.mxu0 0
      %1910 = vmatprep.mubr.bf16.mxu0 0
      %1911 = vmatmul.mubr.bf16.gmra.mxu0 %v1671
      %v1912 = vpop.f32.mrf.mxu0
      %v1913 = vadd.f32 %v1473, %v1912
      %v1914 = vpop.f32.mrf.mxu0
      %v1915 = vadd.f32 %v1477, %v1914
      %v1916 = vpop.f32.mrf.mxu0
      %v1917 = vpop.f32.mrf.mxu0
      %1918 = vdwg.mxu0
      %1919 = vmatprep.subr.bf16.mxu0 0
      %1920 = vmatpush1.bf16.msra.mxu0 0
      %1921 = vmatprep.subr.bf16.mxu0 0
      %1922 = vmatpush1.bf16.msra.mxu0 0
      %1923 = vmatprep.subr.bf16.mxu0 0
      %1924 = vmatpush1.bf16.msra.mxu0 0
      %1925 = vmatprep.subr.bf16.mxu0 0
      %1926 = vmatpush1.bf16.msra.mxu0 0
      %1927 = vmatprep.subr.bf16.mxu0 0
      %1928 = vmatpush1.bf16.msra.mxu0 0
      %1929 = vmatprep.subr.bf16.mxu0 0
      %1930 = vmatpush1.bf16.msra.mxu0 0
      %1931 = vmatprep.subr.bf16.mxu0 %v1635
      %1932 = vmatpush1.bf16.msra.mxu0 %v1634
      %1933 = vmatprep.subr.bf16.mxu0 %v1619
      %1934 = vmatpush1.bf16.msra.mxu0 %v1618
      %1935 = vmatprep.subr.bf16.mxu0 0
      %1936 = vmatpush2.bf16.msra.mxu0 0
      %1937 = vmatprep.subr.bf16.mxu0 0
      %1938 = vmatpush2.bf16.msra.mxu0 0
      %1939 = vmatprep.subr.bf16.mxu0 0
      %1940 = vmatpush2.bf16.msra.mxu0 0
      %1941 = vmatprep.subr.bf16.mxu0 0
      %1942 = vmatpush2.bf16.msra.mxu0 0
      %1943 = vmatprep.subr.bf16.mxu0 0
      %1944 = vmatpush2.bf16.msra.mxu0 0
      %1945 = vmatprep.subr.bf16.mxu0 0
      %1946 = vmatpush2.bf16.msra.mxu0 0
      %1947 = vmatprep.subr.bf16.mxu0 0
      %1948 = vmatpush2.bf16.msra.mxu0 0
      %1949 = vmatprep.subr.bf16.mxu0 0
      %1950 = vmatpush2.bf16.msra.mxu0 0
      %1951 = vmatprep.mubr.bf16.mxu0 0
      %1952 = vmatmul.mubr.bf16.gmra.mxu0 %v1671
      %v1953 = vpop.f32.mrf.mxu0
      %v1954 = vadd.f32 %v1481, %v1953
      %v1955 = vpop.f32.mrf.mxu0
      %v1956 = vadd.f32 %v1485, %v1955
      %v1957 = vpop.f32.mrf.mxu0
      %v1958 = vpop.f32.mrf.mxu0
      %1959 = vdwg.mxu0
      %1960 = vmatprep.subr.bf16.mxu0 0
      %1961 = vmatpush1.bf16.msra.mxu0 0
      %1962 = vmatprep.subr.bf16.mxu0 0
      %1963 = vmatpush1.bf16.msra.mxu0 0
      %1964 = vmatprep.subr.bf16.mxu0 0
      %1965 = vmatpush1.bf16.msra.mxu0 0
      %1966 = vmatprep.subr.bf16.mxu0 0
      %1967 = vmatpush1.bf16.msra.mxu0 0
      %1968 = vmatprep.subr.bf16.mxu0 0
      %1969 = vmatpush1.bf16.msra.mxu0 0
      %1970 = vmatprep.subr.bf16.mxu0 0
      %1971 = vmatpush1.bf16.msra.mxu0 0
      %1972 = vmatprep.subr.bf16.mxu0 %v1637
      %1973 = vmatpush1.bf16.msra.mxu0 %v1636
      %1974 = vmatprep.subr.bf16.mxu0 %v1621
      %1975 = vmatpush1.bf16.msra.mxu0 %v1620
      %1976 = vmatprep.subr.bf16.mxu0 0
      %1977 = vmatpush2.bf16.msra.mxu0 0
      %1978 = vmatprep.subr.bf16.mxu0 0
      %1979 = vmatpush2.bf16.msra.mxu0 0
      %1980 = vmatprep.subr.bf16.mxu0 0
      %1981 = vmatpush2.bf16.msra.mxu0 0
      %1982 = vmatprep.subr.bf16.mxu0 0
      %1983 = vmatpush2.bf16.msra.mxu0 0
      %1984 = vmatprep.subr.bf16.mxu0 0
      %1985 = vmatpush2.bf16.msra.mxu0 0
      %1986 = vmatprep.subr.bf16.mxu0 0
      %1987 = vmatpush2.bf16.msra.mxu0 0
      %1988 = vmatprep.subr.bf16.mxu0 0
      %1989 = vmatpush2.bf16.msra.mxu0 0
      %1990 = vmatprep.subr.bf16.mxu0 0
      %1991 = vmatpush2.bf16.msra.mxu0 0
      %1992 = vmatprep.mubr.bf16.mxu0 0
      %1993 = vmatmul.mubr.bf16.gmra.mxu0 %v1671
      %v1994 = vpop.f32.mrf.mxu0
      %v1995 = vadd.f32 %v1489, %v1994
      %v1996 = vpop.f32.mrf.mxu0
      %v1997 = vadd.f32 %v1493, %v1996
      %v1998 = vpop.f32.mrf.mxu0
      %v1999 = vpop.f32.mrf.mxu0
      %2000 = vdwg.mxu0
      %v2001 = vmax.f32 %v1708, 0.0
      %v2002 = vmax.f32 %v1710, 0.0
      %v2003 = vmax.f32 %v1749, 0.0
      %v2004 = vmax.f32 %v1751, 0.0
      %v2005 = vmax.f32 %v1790, 0.0
      %v2006 = vmax.f32 %v1792, 0.0
      %v2007 = vmax.f32 %v1831, 0.0
      %v2008 = vmax.f32 %v1833, 0.0
      %v2009 = vmax.f32 %v1872, 0.0
      %v2010 = vmax.f32 %v1874, 0.0
      %v2011 = vmax.f32 %v1913, 0.0
      %v2012 = vmax.f32 %v1915, 0.0
      %v2013 = vmax.f32 %v1954, 0.0
      %v2014 = vmax.f32 %v1956, 0.0
      %v2015 = vmax.f32 %v1995, 0.0
      %v2016 = vmax.f32 %v1997, 0.0
      %v2017 = vpack.c.bf16 %v2001, %v2001
      %v2018 = vpack.c.bf16 %v2002, %v2002
      %v2019 = vpack.c.bf16 %v2003, %v2003
      %v2020 = vpack.c.bf16 %v2004, %v2004
      %v2021 = vpack.c.bf16 %v2005, %v2005
      %v2022 = vpack.c.bf16 %v2006, %v2006
      %v2023 = vpack.c.bf16 %v2007, %v2007
      %v2024 = vpack.c.bf16 %v2008, %v2008
      %v2025 = vpack.c.bf16 %v2009, %v2009
      %v2026 = vpack.c.bf16 %v2010, %v2010
      %v2027 = vpack.c.bf16 %v2011, %v2011
      %v2028 = vpack.c.bf16 %v2012, %v2012
      %v2029 = vpack.c.bf16 %v2013, %v2013
      %v2030 = vpack.c.bf16 %v2014, %v2014
      %v2031 = vpack.c.bf16 %v2015, %v2015
      %v2032 = vpack.c.bf16 %v2016, %v2016
      %v2033 = vld [vmem:[%s12] sm:$0xff]
      %v2034 = vld [vmem:[%s12 + $0x8] sm:$0xff]
      %v2035 = vld [vmem:[%s12 + $0x10] sm:$0xff]
      %v2036 = vld [vmem:[%s12 + $0x18] sm:$0xff]
      %v2037 = vld [vmem:[%s12 + $0x20] sm:$0xff]
      %v2038 = vld [vmem:[%s12 + $0x28] sm:$0xff]
      %v2039 = vld [vmem:[%s12 + $0x30] sm:$0xff]
      %v2040 = vld [vmem:[%s12 + $0x38] sm:$0xff]
      %v2041 = vld [vmem:[%s12 + $0x40] sm:$0xff]
      %v2042 = vld [vmem:[%s12 + $0x48] sm:$0xff]
      %v2043 = vld [vmem:[%s12 + $0x50] sm:$0xff]
      %v2044 = vld [vmem:[%s12 + $0x58] sm:$0xff]
      %v2045 = vld [vmem:[%s12 + $0x60] sm:$0xff]
      %v2046 = vld [vmem:[%s12 + $0x68] sm:$0xff]
      %v2047 = vld [vmem:[%s12 + $0x70] sm:$0xff]
      %v2048 = vld [vmem:[%s12 + $0x78] sm:$0xff]
      %v2049 = vld [vmem:[%s12 + $0x80] sm:$0xff]
      %v2050 = vld [vmem:[%s12 + $0x88] sm:$0xff]
      %v2051 = vld [vmem:[%s12 + $0x90] sm:$0xff]
      %v2052 = vld [vmem:[%s12 + $0x98] sm:$0xff]
      %v2053 = vld [vmem:[%s12 + $0xa0] sm:$0xff]
      %v2054 = vld [vmem:[%s12 + $0xa8] sm:$0xff]
      %v2055 = vld [vmem:[%s12 + $0xb0] sm:$0xff]
      %v2056 = vld [vmem:[%s12 + $0xb8] sm:$0xff]
      %v2057 = vld [vmem:[%s12 + $0xc0] sm:$0xff]
      %v2058 = vld [vmem:[%s12 + $0xc8] sm:$0xff]
      %v2059 = vld [vmem:[%s12 + $0xd0] sm:$0xff]
      %v2060 = vld [vmem:[%s12 + $0xd8] sm:$0xff]
      %v2061 = vld [vmem:[%s12 + $0xe0] sm:$0xff]
      %v2062 = vld [vmem:[%s12 + $0xe8] sm:$0xff]
      %v2063 = vld [vmem:[%s12 + $0xf0] sm:$0xff]
      %v2064 = vld [vmem:[%s12 + $0xf8] sm:$0xff]
      %v2065 = vld [vmem:[%s13] sm:$0x1]
      %v2067 = vlaneseq
      %v2068 = vshrl.u32 %v2067, 7
      %v2069 = vsub.s32 0, %v2068
      %v2070 = vrot.slane %v2065, %v2069
      %v2104 = vunpack.c.l.b16 %v2033
      %v2105 = vunpack.c.h.b16 %v2033
      %v2106 = vunpack.c.l.b16 %v2034
      %v2107 = vunpack.c.h.b16 %v2034
      %v2108 = vunpack.c.l.b16 %v2035
      %v2109 = vunpack.c.h.b16 %v2035
      %v2110 = vunpack.c.l.b16 %v2036
      %v2111 = vunpack.c.h.b16 %v2036
      %v2112 = vunpack.c.l.b16 %v2037
      %v2113 = vunpack.c.h.b16 %v2037
      %v2114 = vunpack.c.l.b16 %v2038
      %v2115 = vunpack.c.h.b16 %v2038
      %v2116 = vunpack.c.l.b16 %v2039
      %v2117 = vunpack.c.h.b16 %v2039
      %v2118 = vunpack.c.l.b16 %v2040
      %v2119 = vunpack.c.h.b16 %v2040
      %v2120 = vunpack.c.l.b16 %v2041
      %v2121 = vunpack.c.h.b16 %v2041
      %v2122 = vunpack.c.l.b16 %v2042
      %v2123 = vunpack.c.h.b16 %v2042
      %v2124 = vunpack.c.l.b16 %v2043
      %v2125 = vunpack.c.h.b16 %v2043
      %v2126 = vunpack.c.l.b16 %v2044
      %v2127 = vunpack.c.h.b16 %v2044
      %v2128 = vunpack.c.l.b16 %v2045
      %v2129 = vunpack.c.h.b16 %v2045
      %v2130 = vunpack.c.l.b16 %v2046
      %v2131 = vunpack.c.h.b16 %v2046
      %v2132 = vunpack.c.l.b16 %v2047
      %v2133 = vunpack.c.h.b16 %v2047
      %v2134 = vunpack.c.l.b16 %v2048
      %v2135 = vunpack.c.h.b16 %v2048
      %v2136 = vunpack.c.l.b16 %v2049
      %v2137 = vunpack.c.h.b16 %v2049
      %v2138 = vunpack.c.l.b16 %v2050
      %v2139 = vunpack.c.h.b16 %v2050
      %v2140 = vunpack.c.l.b16 %v2051
      %v2141 = vunpack.c.h.b16 %v2051
      %v2142 = vunpack.c.l.b16 %v2052
      %v2143 = vunpack.c.h.b16 %v2052
      %v2144 = vunpack.c.l.b16 %v2053
      %v2145 = vunpack.c.h.b16 %v2053
      %v2146 = vunpack.c.l.b16 %v2054
      %v2147 = vunpack.c.h.b16 %v2054
      %v2148 = vunpack.c.l.b16 %v2055
      %v2149 = vunpack.c.h.b16 %v2055
      %v2150 = vunpack.c.l.b16 %v2056
      %v2151 = vunpack.c.h.b16 %v2056
      %v2152 = vunpack.c.l.b16 %v2057
      %v2153 = vunpack.c.h.b16 %v2057
      %v2154 = vunpack.c.l.b16 %v2058
      %v2155 = vunpack.c.h.b16 %v2058
      %v2156 = vunpack.c.l.b16 %v2059
      %v2157 = vunpack.c.h.b16 %v2059
      %v2158 = vunpack.c.l.b16 %v2060
      %v2159 = vunpack.c.h.b16 %v2060
      %v2160 = vunpack.c.l.b16 %v2061
      %v2161 = vunpack.c.h.b16 %v2061
      %v2162 = vunpack.c.l.b16 %v2062
      %v2163 = vunpack.c.h.b16 %v2062
      %v2164 = vunpack.c.l.b16 %v2063
      %v2165 = vunpack.c.h.b16 %v2063
      %v2166 = vunpack.c.l.b16 %v2064
      %v2167 = vunpack.c.h.b16 %v2064
      %v2168 = vpack.c.b16 %v2120, %v2104
      %v2169 = vpack.c.b16 %v2121, %v2105
      %v2170 = vpack.c.b16 %v2122, %v2106
      %v2171 = vpack.c.b16 %v2123, %v2107
      %v2172 = vpack.c.b16 %v2124, %v2108
      %v2173 = vpack.c.b16 %v2125, %v2109
      %v2174 = vpack.c.b16 %v2126, %v2110
      %v2175 = vpack.c.b16 %v2127, %v2111
      %v2176 = vpack.c.b16 %v2128, %v2112
      %v2177 = vpack.c.b16 %v2129, %v2113
      %v2178 = vpack.c.b16 %v2130, %v2114
      %v2179 = vpack.c.b16 %v2131, %v2115
      %v2180 = vpack.c.b16 %v2132, %v2116
      %v2181 = vpack.c.b16 %v2133, %v2117
      %v2182 = vpack.c.b16 %v2134, %v2118
      %v2183 = vpack.c.b16 %v2135, %v2119
      %v2184 = vpack.c.b16 %v2152, %v2136
      %v2185 = vpack.c.b16 %v2153, %v2137
      %v2186 = vpack.c.b16 %v2154, %v2138
      %v2187 = vpack.c.b16 %v2155, %v2139
      %v2188 = vpack.c.b16 %v2156, %v2140
      %v2189 = vpack.c.b16 %v2157, %v2141
      %v2190 = vpack.c.b16 %v2158, %v2142
      %v2191 = vpack.c.b16 %v2159, %v2143
      %v2192 = vpack.c.b16 %v2160, %v2144
      %v2193 = vpack.c.b16 %v2161, %v2145
      %v2194 = vpack.c.b16 %v2162, %v2146
      %v2195 = vpack.c.b16 %v2163, %v2147
      %v2196 = vpack.c.b16 %v2164, %v2148
      %v2197 = vpack.c.b16 %v2165, %v2149
      %v2198 = vpack.c.b16 %v2166, %v2150
      %v2199 = vpack.c.b16 %v2167, %v2151
      %2232 = vmatprep.subr.bf16.mxu0 0
      %2233 = vmatpush1.bf16.xpose.msra.mxu0 0
      %2234 = vmatprep.subr.bf16.mxu0 0
      %2235 = vmatpush1.bf16.xpose.msra.mxu0 0
      %2236 = vmatprep.subr.bf16.mxu0 0
      %2237 = vmatpush1.bf16.xpose.msra.mxu0 0
      %2238 = vmatprep.subr.bf16.mxu0 0
      %2239 = vmatpush1.bf16.xpose.msra.mxu0 0
      %2240 = vmatprep.subr.bf16.mxu0 0
      %2241 = vmatpush1.bf16.xpose.msra.mxu0 0
      %2242 = vmatprep.subr.bf16.mxu0 0
      %2243 = vmatpush1.bf16.xpose.msra.mxu0 0
      %2244 = vmatprep.subr.bf16.mxu0 %v2185
      %2245 = vmatpush1.bf16.xpose.msra.mxu0 %v2184
      %2246 = vmatprep.subr.bf16.mxu0 %v2169
      %2247 = vmatpush1.bf16.xpose.msra.mxu0 %v2168
      %2248 = vmatprep.subr.bf16.mxu0 0
      %2249 = vmatpush2.bf16.xpose.msra.mxu0 0
      %2250 = vmatprep.subr.bf16.mxu0 0
      %2251 = vmatpush2.bf16.xpose.msra.mxu0 0
      %2252 = vmatprep.subr.bf16.mxu0 0
      %2253 = vmatpush2.bf16.xpose.msra.mxu0 0
      %2254 = vmatprep.subr.bf16.mxu0 0
      %2255 = vmatpush2.bf16.xpose.msra.mxu0 0
      %2256 = vmatprep.subr.bf16.mxu0 0
      %2257 = vmatpush2.bf16.xpose.msra.mxu0 0
      %2258 = vmatprep.subr.bf16.mxu0 0
      %2259 = vmatpush2.bf16.xpose.msra.mxu0 0
      %2260 = vmatprep.subr.bf16.mxu0 0
      %2261 = vmatpush2.bf16.xpose.msra.mxu0 0
      %2262 = vmatprep.subr.bf16.mxu0 0
      %2263 = vmatpush2.bf16.xpose.msra.mxu0 0
      %2264 = vmatprep.mubr.bf16.mxu0 %v2018
      %2265 = vmatmul.mubr.bf16.gmra.mxu0 %v2017
      %v2266 = vpop.f32.mrf.mxu0
      %v2267 = vadd.f32 %v2070, %v2266
      %v2268 = vpop.f32.mrf.mxu0
      %v2269 = vpop.f32.mrf.mxu0
      %v2270 = vpop.f32.mrf.mxu0
      %2271 = vdwg.mxu0
      %2272 = vmatprep.subr.bf16.mxu0 0
      %2273 = vmatpush1.bf16.xpose.msra.mxu0 0
      %2274 = vmatprep.subr.bf16.mxu0 0
      %2275 = vmatpush1.bf16.xpose.msra.mxu0 0
      %2276 = vmatprep.subr.bf16.mxu0 0
      %2277 = vmatpush1.bf16.xpose.msra.mxu0 0
      %2278 = vmatprep.subr.bf16.mxu0 0
      %2279 = vmatpush1.bf16.xpose.msra.mxu0 0
      %2280 = vmatprep.subr.bf16.mxu0 0
      %2281 = vmatpush1.bf16.xpose.msra.mxu0 0
      %2282 = vmatprep.subr.bf16.mxu0 0
      %2283 = vmatpush1.bf16.xpose.msra.mxu0 0
      %2284 = vmatprep.subr.bf16.mxu0 %v2187
      %2285 = vmatpush1.bf16.xpose.msra.mxu0 %v2186
      %2286 = vmatprep.subr.bf16.mxu0 %v2171
      %2287 = vmatpush1.bf16.xpose.msra.mxu0 %v2170
      %2288 = vmatprep.subr.bf16.mxu0 0
      %2289 = vmatpush2.bf16.xpose.msra.mxu0 0
      %2290 = vmatprep.subr.bf16.mxu0 0
      %2291 = vmatpush2.bf16.xpose.msra.mxu0 0
      %2292 = vmatprep.subr.bf16.mxu0 0
      %2293 = vmatpush2.bf16.xpose.msra.mxu0 0
      %2294 = vmatprep.subr.bf16.mxu0 0
      %2295 = vmatpush2.bf16.xpose.msra.mxu0 0
      %2296 = vmatprep.subr.bf16.mxu0 0
      %2297 = vmatpush2.bf16.xpose.msra.mxu0 0
      %2298 = vmatprep.subr.bf16.mxu0 0
      %2299 = vmatpush2.bf16.xpose.msra.mxu0 0
      %2300 = vmatprep.subr.bf16.mxu0 0
      %2301 = vmatpush2.bf16.xpose.msra.mxu0 0
      %2302 = vmatprep.subr.bf16.mxu0 0
      %2303 = vmatpush2.bf16.xpose.msra.mxu0 0
      %2304 = vmatprep.mubr.bf16.mxu0 %v2020
      %2305 = vmatmul.mubr.bf16.gmra.mxu0 %v2019
      %v2306 = vpop.f32.mrf.mxu0
      %v2307 = vadd.f32 %v2267, %v2306
      %v2308 = vpop.f32.mrf.mxu0
      %v2309 = vpop.f32.mrf.mxu0
      %v2310 = vpop.f32.mrf.mxu0
      %2311 = vdwg.mxu0
      %2312 = vmatprep.subr.bf16.mxu0 0
      %2313 = vmatpush1.bf16.xpose.msra.mxu0 0
      %2314 = vmatprep.subr.bf16.mxu0 0
      %2315 = vmatpush1.bf16.xpose.msra.mxu0 0
      %2316 = vmatprep.subr.bf16.mxu0 0
      %2317 = vmatpush1.bf16.xpose.msra.mxu0 0
      %2318 = vmatprep.subr.bf16.mxu0 0
      %2319 = vmatpush1.bf16.xpose.msra.mxu0 0
      %2320 = vmatprep.subr.bf16.mxu0 0
      %2321 = vmatpush1.bf16.xpose.msra.mxu0 0
      %2322 = vmatprep.subr.bf16.mxu0 0
      %2323 = vmatpush1.bf16.xpose.msra.mxu0 0
      %2324 = vmatprep.subr.bf16.mxu0 %v2189
      %2325 = vmatpush1.bf16.xpose.msra.mxu0 %v2188
      %2326 = vmatprep.subr.bf16.mxu0 %v2173
      %2327 = vmatpush1.bf16.xpose.msra.mxu0 %v2172
      %2328 = vmatprep.subr.bf16.mxu0 0
      %2329 = vmatpush2.bf16.xpose.msra.mxu0 0
      %2330 = vmatprep.subr.bf16.mxu0 0
      %2331 = vmatpush2.bf16.xpose.msra.mxu0 0
      %2332 = vmatprep.subr.bf16.mxu0 0
      %2333 = vmatpush2.bf16.xpose.msra.mxu0 0
      %2334 = vmatprep.subr.bf16.mxu0 0
      %2335 = vmatpush2.bf16.xpose.msra.mxu0 0
      %2336 = vmatprep.subr.bf16.mxu0 0
      %2337 = vmatpush2.bf16.xpose.msra.mxu0 0
      %2338 = vmatprep.subr.bf16.mxu0 0
      %2339 = vmatpush2.bf16.xpose.msra.mxu0 0
      %2340 = vmatprep.subr.bf16.mxu0 0
      %2341 = vmatpush2.bf16.xpose.msra.mxu0 0
      %2342 = vmatprep.subr.bf16.mxu0 0
      %2343 = vmatpush2.bf16.xpose.msra.mxu0 0
      %2344 = vmatprep.mubr.bf16.mxu0 %v2022
      %2345 = vmatmul.mubr.bf16.gmra.mxu0 %v2021
      %v2346 = vpop.f32.mrf.mxu0
      %v2347 = vadd.f32 %v2307, %v2346
      %v2348 = vpop.f32.mrf.mxu0
      %v2349 = vpop.f32.mrf.mxu0
      %v2350 = vpop.f32.mrf.mxu0
      %2351 = vdwg.mxu0
      %2352 = vmatprep.subr.bf16.mxu0 0
      %2353 = vmatpush1.bf16.xpose.msra.mxu0 0
      %2354 = vmatprep.subr.bf16.mxu0 0
      %2355 = vmatpush1.bf16.xpose.msra.mxu0 0
      %2356 = vmatprep.subr.bf16.mxu0 0
      %2357 = vmatpush1.bf16.xpose.msra.mxu0 0
      %2358 = vmatprep.subr.bf16.mxu0 0
      %2359 = vmatpush1.bf16.xpose.msra.mxu0 0
      %2360 = vmatprep.subr.bf16.mxu0 0
      %2361 = vmatpush1.bf16.xpose.msra.mxu0 0
      %2362 = vmatprep.subr.bf16.mxu0 0
      %2363 = vmatpush1.bf16.xpose.msra.mxu0 0
      %2364 = vmatprep.subr.bf16.mxu0 %v2191
      %2365 = vmatpush1.bf16.xpose.msra.mxu0 %v2190
      %2366 = vmatprep.subr.bf16.mxu0 %v2175
      %2367 = vmatpush1.bf16.xpose.msra.mxu0 %v2174
      %2368 = vmatprep.subr.bf16.mxu0 0
      %2369 = vmatpush2.bf16.xpose.msra.mxu0 0
      %2370 = vmatprep.subr.bf16.mxu0 0
      %2371 = vmatpush2.bf16.xpose.msra.mxu0 0
      %2372 = vmatprep.subr.bf16.mxu0 0
      %2373 = vmatpush2.bf16.xpose.msra.mxu0 0
      %2374 = vmatprep.subr.bf16.mxu0 0
      %2375 = vmatpush2.bf16.xpose.msra.mxu0 0
      %2376 = vmatprep.subr.bf16.mxu0 0
      %2377 = vmatpush2.bf16.xpose.msra.mxu0 0
      %2378 = vmatprep.subr.bf16.mxu0 0
      %2379 = vmatpush2.bf16.xpose.msra.mxu0 0
      %2380 = vmatprep.subr.bf16.mxu0 0
      %2381 = vmatpush2.bf16.xpose.msra.mxu0 0
      %2382 = vmatprep.subr.bf16.mxu0 0
      %2383 = vmatpush2.bf16.xpose.msra.mxu0 0
      %2384 = vmatprep.mubr.bf16.mxu0 %v2024
      %2385 = vmatmul.mubr.bf16.gmra.mxu0 %v2023
      %v2386 = vpop.f32.mrf.mxu0
      %v2387 = vadd.f32 %v2347, %v2386
      %v2388 = vpop.f32.mrf.mxu0
      %v2389 = vpop.f32.mrf.mxu0
      %v2390 = vpop.f32.mrf.mxu0
      %2391 = vdwg.mxu0
      %2392 = vmatprep.subr.bf16.mxu0 0
      %2393 = vmatpush1.bf16.xpose.msra.mxu0 0
      %2394 = vmatprep.subr.bf16.mxu0 0
      %2395 = vmatpush1.bf16.xpose.msra.mxu0 0
      %2396 = vmatprep.subr.bf16.mxu0 0
      %2397 = vmatpush1.bf16.xpose.msra.mxu0 0
      %2398 = vmatprep.subr.bf16.mxu0 0
      %2399 = vmatpush1.bf16.xpose.msra.mxu0 0
      %2400 = vmatprep.subr.bf16.mxu0 0
      %2401 = vmatpush1.bf16.xpose.msra.mxu0 0
      %2402 = vmatprep.subr.bf16.mxu0 0
      %2403 = vmatpush1.bf16.xpose.msra.mxu0 0
      %2404 = vmatprep.subr.bf16.mxu0 %v2193
      %2405 = vmatpush1.bf16.xpose.msra.mxu0 %v2192
      %2406 = vmatprep.subr.bf16.mxu0 %v2177
      %2407 = vmatpush1.bf16.xpose.msra.mxu0 %v2176
      %2408 = vmatprep.subr.bf16.mxu0 0
      %2409 = vmatpush2.bf16.xpose.msra.mxu0 0
      %2410 = vmatprep.subr.bf16.mxu0 0
      %2411 = vmatpush2.bf16.xpose.msra.mxu0 0
      %2412 = vmatprep.subr.bf16.mxu0 0
      %2413 = vmatpush2.bf16.xpose.msra.mxu0 0
      %2414 = vmatprep.subr.bf16.mxu0 0
      %2415 = vmatpush2.bf16.xpose.msra.mxu0 0
      %2416 = vmatprep.subr.bf16.mxu0 0
      %2417 = vmatpush2.bf16.xpose.msra.mxu0 0
      %2418 = vmatprep.subr.bf16.mxu0 0
      %2419 = vmatpush2.bf16.xpose.msra.mxu0 0
      %2420 = vmatprep.subr.bf16.mxu0 0
      %2421 = vmatpush2.bf16.xpose.msra.mxu0 0
      %2422 = vmatprep.subr.bf16.mxu0 0
      %2423 = vmatpush2.bf16.xpose.msra.mxu0 0
      %2424 = vmatprep.mubr.bf16.mxu0 %v2026
      %2425 = vmatmul.mubr.bf16.gmra.mxu0 %v2025
      %v2426 = vpop.f32.mrf.mxu0
      %v2427 = vadd.f32 %v2387, %v2426
      %v2428 = vpop.f32.mrf.mxu0
      %v2429 = vpop.f32.mrf.mxu0
      %v2430 = vpop.f32.mrf.mxu0
      %2431 = vdwg.mxu0
      %2432 = vmatprep.subr.bf16.mxu0 0
      %2433 = vmatpush1.bf16.xpose.msra.mxu0 0
      %2434 = vmatprep.subr.bf16.mxu0 0
      %2435 = vmatpush1.bf16.xpose.msra.mxu0 0
      %2436 = vmatprep.subr.bf16.mxu0 0
      %2437 = vmatpush1.bf16.xpose.msra.mxu0 0
      %2438 = vmatprep.subr.bf16.mxu0 0
      %2439 = vmatpush1.bf16.xpose.msra.mxu0 0
      %2440 = vmatprep.subr.bf16.mxu0 0
      %2441 = vmatpush1.bf16.xpose.msra.mxu0 0
      %2442 = vmatprep.subr.bf16.mxu0 0
      %2443 = vmatpush1.bf16.xpose.msra.mxu0 0
      %2444 = vmatprep.subr.bf16.mxu0 %v2195
      %2445 = vmatpush1.bf16.xpose.msra.mxu0 %v2194
      %2446 = vmatprep.subr.bf16.mxu0 %v2179
      %2447 = vmatpush1.bf16.xpose.msra.mxu0 %v2178
      %2448 = vmatprep.subr.bf16.mxu0 0
      %2449 = vmatpush2.bf16.xpose.msra.mxu0 0
      %2450 = vmatprep.subr.bf16.mxu0 0
      %2451 = vmatpush2.bf16.xpose.msra.mxu0 0
      %2452 = vmatprep.subr.bf16.mxu0 0
      %2453 = vmatpush2.bf16.xpose.msra.mxu0 0
      %2454 = vmatprep.subr.bf16.mxu0 0
      %2455 = vmatpush2.bf16.xpose.msra.mxu0 0
      %2456 = vmatprep.subr.bf16.mxu0 0
      %2457 = vmatpush2.bf16.xpose.msra.mxu0 0
      %2458 = vmatprep.subr.bf16.mxu0 0
      %2459 = vmatpush2.bf16.xpose.msra.mxu0 0
      %2460 = vmatprep.subr.bf16.mxu0 0
      %2461 = vmatpush2.bf16.xpose.msra.mxu0 0
      %2462 = vmatprep.subr.bf16.mxu0 0
      %2463 = vmatpush2.bf16.xpose.msra.mxu0 0
      %2464 = vmatprep.mubr.bf16.mxu0 %v2028
      %2465 = vmatmul.mubr.bf16.gmra.mxu0 %v2027
      %v2466 = vpop.f32.mrf.mxu0
      %v2467 = vadd.f32 %v2427, %v2466
      %v2468 = vpop.f32.mrf.mxu0
      %v2469 = vpop.f32.mrf.mxu0
      %v2470 = vpop.f32.mrf.mxu0
      %2471 = vdwg.mxu0
      %2472 = vmatprep.subr.bf16.mxu0 0
      %2473 = vmatpush1.bf16.xpose.msra.mxu0 0
      %2474 = vmatprep.subr.bf16.mxu0 0
      %2475 = vmatpush1.bf16.xpose.msra.mxu0 0
      %2476 = vmatprep.subr.bf16.mxu0 0
      %2477 = vmatpush1.bf16.xpose.msra.mxu0 0
      %2478 = vmatprep.subr.bf16.mxu0 0
      %2479 = vmatpush1.bf16.xpose.msra.mxu0 0
      %2480 = vmatprep.subr.bf16.mxu0 0
      %2481 = vmatpush1.bf16.xpose.msra.mxu0 0
      %2482 = vmatprep.subr.bf16.mxu0 0
      %2483 = vmatpush1.bf16.xpose.msra.mxu0 0
      %2484 = vmatprep.subr.bf16.mxu0 %v2197
      %2485 = vmatpush1.bf16.xpose.msra.mxu0 %v2196
      %2486 = vmatprep.subr.bf16.mxu0 %v2181
      %2487 = vmatpush1.bf16.xpose.msra.mxu0 %v2180
      %2488 = vmatprep.subr.bf16.mxu0 0
      %2489 = vmatpush2.bf16.xpose.msra.mxu0 0
      %2490 = vmatprep.subr.bf16.mxu0 0
      %2491 = vmatpush2.bf16.xpose.msra.mxu0 0
      %2492 = vmatprep.subr.bf16.mxu0 0
      %2493 = vmatpush2.bf16.xpose.msra.mxu0 0
      %2494 = vmatprep.subr.bf16.mxu0 0
      %2495 = vmatpush2.bf16.xpose.msra.mxu0 0
      %2496 = vmatprep.subr.bf16.mxu0 0
      %2497 = vmatpush2.bf16.xpose.msra.mxu0 0
      %2498 = vmatprep.subr.bf16.mxu0 0
      %2499 = vmatpush2.bf16.xpose.msra.mxu0 0
      %2500 = vmatprep.subr.bf16.mxu0 0
      %2501 = vmatpush2.bf16.xpose.msra.mxu0 0
      %2502 = vmatprep.subr.bf16.mxu0 0
      %2503 = vmatpush2.bf16.xpose.msra.mxu0 0
      %2504 = vmatprep.mubr.bf16.mxu0 %v2030
      %2505 = vmatmul.mubr.bf16.gmra.mxu0 %v2029
      %v2506 = vpop.f32.mrf.mxu0
      %v2507 = vadd.f32 %v2467, %v2506
      %v2508 = vpop.f32.mrf.mxu0
      %v2509 = vpop.f32.mrf.mxu0
      %v2510 = vpop.f32.mrf.mxu0
      %2511 = vdwg.mxu0
      %2512 = vmatprep.subr.bf16.mxu0 0
      %2513 = vmatpush1.bf16.xpose.msra.mxu0 0
      %2514 = vmatprep.subr.bf16.mxu0 0
      %2515 = vmatpush1.bf16.xpose.msra.mxu0 0
      %2516 = vmatprep.subr.bf16.mxu0 0
      %2517 = vmatpush1.bf16.xpose.msra.mxu0 0
      %2518 = vmatprep.subr.bf16.mxu0 0
      %2519 = vmatpush1.bf16.xpose.msra.mxu0 0
      %2520 = vmatprep.subr.bf16.mxu0 0
      %2521 = vmatpush1.bf16.xpose.msra.mxu0 0
      %2522 = vmatprep.subr.bf16.mxu0 0
      %2523 = vmatpush1.bf16.xpose.msra.mxu0 0
      %2524 = vmatprep.subr.bf16.mxu0 %v2199
      %2525 = vmatpush1.bf16.xpose.msra.mxu0 %v2198
      %2526 = vmatprep.subr.bf16.mxu0 %v2183
      %2527 = vmatpush1.bf16.xpose.msra.mxu0 %v2182
      %2528 = vmatprep.subr.bf16.mxu0 0
      %2529 = vmatpush2.bf16.xpose.msra.mxu0 0
      %2530 = vmatprep.subr.bf16.mxu0 0
      %2531 = vmatpush2.bf16.xpose.msra.mxu0 0
      %2532 = vmatprep.subr.bf16.mxu0 0
      %2533 = vmatpush2.bf16.xpose.msra.mxu0 0
      %2534 = vmatprep.subr.bf16.mxu0 0
      %2535 = vmatpush2.bf16.xpose.msra.mxu0 0
      %2536 = vmatprep.subr.bf16.mxu0 0
      %2537 = vmatpush2.bf16.xpose.msra.mxu0 0
      %2538 = vmatprep.subr.bf16.mxu0 0
      %2539 = vmatpush2.bf16.xpose.msra.mxu0 0
      %2540 = vmatprep.subr.bf16.mxu0 0
      %2541 = vmatpush2.bf16.xpose.msra.mxu0 0
      %2542 = vmatprep.subr.bf16.mxu0 0
      %2543 = vmatpush2.bf16.xpose.msra.mxu0 0
      %2544 = vmatprep.mubr.bf16.mxu0 %v2032
      %2545 = vmatmul.mubr.bf16.gmra.mxu0 %v2031
      %v2546 = vpop.f32.mrf.mxu0
      %v2547 = vadd.f32 %v2507, %v2546
      %v2548 = vpop.f32.mrf.mxu0
      %v2549 = vpop.f32.mrf.mxu0
      %v2550 = vpop.f32.mrf.mxu0
      %2551 = vdwg.mxu0
      %v2552 = vadd.f32 %v1392, %v2547
      %v2553 = vld [vmem:[%s16] sm:$0x1]
      %v2554 = vld [vmem:[%s17] sm:$0x1]
      %v2555 = vsel %vm647, %v2552, 0.0
      %2556 = vadd.xlane.f32.xlu0 %v2555
      %v2557 = vpop.xlane.xlu0 %2556
      %v2558 = vmul.f32 %v2557, %v1368
      %v2559 = vsub.f32 %v2552, %v2558
      %v2560 = vmul.f32 %v2559, %v2559
      %v2561 = vsel %vm647, %v2560, 0.0
      %2562 = vadd.xlane.f32.xlu0 %v2561
      %v2563 = vpop.xlane.xlu0 %2562
      %v2564 = vmul.f32 %v2563, %v1368
      %v2565 = vadd.f32 %v2564, 1e-05
      %v2566 = vrsqrt.pop %v2565
      %v2567 = vmul.f32 %v2559, %v2566
      %v2569 = vlaneseq
      %v2570 = vshrl.u32 %v2569, 7
      %v2571 = vsub.s32 0, %v2570
      %v2572 = vrot.slane %v2553, %v2571
      %v2574 = vmul.f32 %v2567, %v2572
      %v2576 = vlaneseq
      %v2577 = vshrl.u32 %v2576, 7
      %v2578 = vsub.s32 0, %v2577
      %v2579 = vrot.slane %v2554, %v2578
      %v2581 = vadd.f32 %v2574, %v2579
      %2582 = vst.msk [vmem:[%s618] sm:$0xff] %vm647, %v2581
      %p2583 = scmp.lt.s32.totalorder %s33, 1
      %s2584 = scalar_select %p2583, %s33, 1
      %p2585 = scmp.lt.s32.totalorder %s34, 0
      %s2586 = scalar_select %p2585, %s34, 0
      %s2587 = sadd.s32 %s2586, %s2584
      %s2588 = smul.addr %s2587, 8
      %s2589 = scalar_lea.vmem %s18, %s2588
      // Predicated region
      $region93: #{forward.5} parent=91 // pred_check
        %p2590 = pneg %p451
      $region94: #{forward.5} parent=91 // pred_check_branch
        %2592 = sbr.rel (%p2590) target = $region96
      $region95: #{forward.5} parent=91 // pred_region
        _
      $region96: #{forward.5} parent=91 // pred_fallthru
        _
    $region92: #{forward.5} parent=5 // pred_fallthru
      _
    %p2593 = scmp.le.s32.totalorder 2, %s24
    // Predicated region
    $region97: #{forward.5} parent=5 // pred_check
      %p2594 = pneg %p2593
    $region98: #{forward.5} parent=5 // pred_check_branch
      %2596 = sbr.rel (%p2594) target = $region100
    $region99: #{forward.5} parent=5 // pred_region
      %s2597 = ssub.s32 %s24, 2
      // Predicated region
      $region101: #{forward.5} parent=99 // pred_check
        %p2598 = pneg %p457
      $region102: #{forward.5} parent=99 // pred_check_branch
        %2600 = sbr.rel (%p2598) target = $region104
      $region103: #{forward.5} parent=99 // pred_region
        %p2601 = scmp.lt.s32.totalorder %s35, 1
        %s2602 = scalar_select %p2601, %s35, 1
        %p2603 = scmp.lt.s32.totalorder %s36, 0
        %s2604 = scalar_select %p2603, %s36, 0
        %s2605 = sadd.s32 %s2604, %s2602
        %s2606 = smul.addr %s2605, 8
        %s2607 = scalar_lea.vmem %s18, %s2606
      $region104: #{forward.5} parent=99 // pred_fallthru
        _
    $region100: #{forward.5} parent=5 // pred_fallthru
      _
  $region6: #{forward.5} parent=0 // loop_footer
    %s28 = sadd.s32 1, %s24
  $region7: #{forward.5} parent=0 // loop_footer_branch
    %23 = sbr.rel target = $region3
  $region8: #{forward.5} parent=0 // loop_exit
    _

</llo_original>
